<compile_context>
chip_gen: v5e
topology: v5e:2x2
jax: 0.10.0
libtpu: 0.0.40
codegen_flags: <defaults>
</compile_context>

<pallas_src>
import jax
import jax.numpy as jnp
import numpy as np
from jax.experimental import pallas as pl
from jax.experimental.pallas import tpu as pltpu


def _round_up(n, m):
    return (n + m - 1) // m * m


def _vae_kernel(x_ref, eps_ref,
                w1_ref, b1_ref, w2_ref, b2_ref,
                wml_ref, bml_ref,
                wd1_ref, bd1_ref, wd2_ref, bd2_ref, wd3_ref, bd3_ref,
                xrec_ref, mulv_ref):
    bf16 = jnp.bfloat16
    f32 = jnp.float32

    x = x_ref[...]

    # ---- encoder: Linear -> ReLU -> Linear -> ReLU (bf16 weights, fp32 accum) ----
    h = jnp.dot(x.astype(bf16), w1_ref[...], preferred_element_type=f32) + b1_ref[...]
    h = jnp.maximum(h, 0.0)
    h = jnp.dot(h.astype(bf16), w2_ref[...], preferred_element_type=f32) + b2_ref[...]
    h = jnp.maximum(h, 0.0)

    # ---- fused latent heads: one (hidden, 2*latent) matmul instead of two ----
    mulv = jnp.dot(h.astype(bf16), wml_ref[...], preferred_element_type=f32) + bml_ref[...]
    latent = mulv.shape[1] // 2
    mu = mulv[:, :latent]
    logvar = mulv[:, latent:]

    # ---- reparameterization: z = mu + eps * exp(0.5 * logvar) (fp32 VPU/EUP) ----
    z = mu + eps_ref[...] * jnp.exp(0.5 * logvar)

    # ---- decoder layer 1: K == latent_dim is tiny -> VPU FMAs, skip the MXU ----
    d = bd1_ref[...]
    for l in range(latent):                  # latent_dim is static; unrolled at trace time
        d = d + z[:, l:l + 1] * wd1_ref[l:l + 1, :]
    d = jnp.maximum(d, 0.0)

    # ---- decoder layers 2 & 3: Linear -> ReLU -> Linear -> Sigmoid ----
    d = jnp.dot(d.astype(bf16), wd2_ref[...], preferred_element_type=f32) + bd2_ref[...]
    d = jnp.maximum(d, 0.0)
    logits = jnp.dot(d.astype(bf16), wd3_ref[...], preferred_element_type=f32) + bd3_ref[...]

    xrec_ref[...] = jax.nn.sigmoid(logits)
    mulv_ref[...] = mulv


def pack_params(p):
    """One-time packing: fuse mu/logvar heads, pad 784-dims to 896, cast big weights to bf16."""
    input_dim = p["wd3"].shape[1]
    d_pad = _round_up(input_dim, 128)

    w1 = jnp.pad(p["w1"], ((0, d_pad - input_dim), (0, 0)))     # zero rows: exact math
    wd3 = jnp.pad(p["wd3"], ((0, 0), (0, d_pad - input_dim)))   # zero output cols
    bd3 = jnp.pad(p["bd3"], ((0, 0), (0, d_pad - input_dim)))

    return {
        "w1": w1.astype(jnp.bfloat16), "b1": p["b1"],
        "w2": p["w2"].astype(jnp.bfloat16), "b2": p["b2"],
        "wml": jnp.concatenate([p["wmu"], p["wlv"]], axis=1).astype(jnp.bfloat16),
        "bml": jnp.concatenate([p["bmu"], p["blv"]], axis=1),
        "wd1": p["wd1"], "bd1": p["bd1"],   # tiny (latent, hidden): fp32, consumed on the VPU
        "wd2": p["wd2"].astype(jnp.bfloat16), "bd2": p["bd2"],
        "wd3": wd3.astype(jnp.bfloat16), "bd3": bd3,
    }


@jax.jit
def vae_forward(x, eps, pk):
    """Fused VAE forward on pre-packed params. Returns (x_recon, mu, logvar)."""
    B, input_dim = x.shape
    latent = eps.shape[1]
    d_pad = pk["w1"].shape[0]

    # Batch tiling: whole (sublane-padded) batch if small, otherwise 128-row tiles.
    block_b = _round_up(B, 8) if B <= 256 else 128
    b_pad = _round_up(B, block_b)

    xp = jnp.pad(x, ((0, b_pad - B), (0, d_pad - input_dim)))
    epsp = jnp.pad(eps, ((0, b_pad - B), (0, 0)))

    def row_spec(cols):
        return pl.BlockSpec((block_b, cols), lambda i: (i, 0))

    def pinned(arr):  # weights/biases: same block every grid step -> one DMA, held resident
        return pl.BlockSpec(arr.shape, lambda i: (0, 0))

    xrec, mulv = pl.pallas_call(
        _vae_kernel,
        grid=(b_pad // block_b,),
        in_specs=[
            row_spec(d_pad),                     # x
            row_spec(latent),                    # eps
            pinned(pk["w1"]), pinned(pk["b1"]),
            pinned(pk["w2"]), pinned(pk["b2"]),
            pinned(pk["wml"]), pinned(pk["bml"]),
            pinned(pk["wd1"]), pinned(pk["bd1"]),
            pinned(pk["wd2"]), pinned(pk["bd2"]),
            pinned(pk["wd3"]), pinned(pk["bd3"]),
        ],
        out_specs=(row_spec(d_pad), row_spec(2 * latent)),
        out_shape=(
            jax.ShapeDtypeStruct((b_pad, d_pad), jnp.float32),       # padded x_recon
            jax.ShapeDtypeStruct((b_pad, 2 * latent), jnp.float32),  # mu | logvar
        ),
        compiler_params=pltpu.CompilerParams(
            dimension_semantics=("parallel",),   # batch tiles shard across TCs on v7x
            vmem_limit_bytes=32 << 20,           # well under v7x's 64 MiB physical VMEM
        ),
    )(xp, epsp,
      pk["w1"], pk["b1"], pk["w2"], pk["b2"],
      pk["wml"], pk["bml"],
      pk["wd1"], pk["bd1"], pk["wd2"], pk["bd2"], pk["wd3"], pk["bd3"])

    x_recon = xrec[:B, :input_dim]
    mu = mulv[:B, :latent]
    logvar = mulv[:B, latent:]
    return x_recon, mu, logvar


def init_params(key, input_dim, latent_dim, hidden_dim):
    """torch.nn.Linear-style init (U[-1/sqrt(fan_in), 1/sqrt(fan_in)]); weights (in, out)."""
    def linear(key, fan_in, fan_out):
        kw, kb = jax.random.split(key)
        bound = 1.0 / np.sqrt(fan_in)
        w = jax.random.uniform(kw, (fan_in, fan_out), jnp.float32, -bound, bound)
        b = jax.random.uniform(kb, (1, fan_out), jnp.float32, -bound, bound)
        return w, b

    keys = jax.random.split(key, 7)
    p = {}
    p["w1"], p["b1"] = linear(keys[0], input_dim, hidden_dim)     # encoder[0]
    p["w2"], p["b2"] = linear(keys[1], hidden_dim, hidden_dim)    # encoder[2]
    p["wmu"], p["bmu"] = linear(keys[2], hidden_dim, latent_dim)  # fc_mu
    p["wlv"], p["blv"] = linear(keys[3], hidden_dim, latent_dim)  # fc_logvar
    p["wd1"], p["bd1"] = linear(keys[4], latent_dim, hidden_dim)  # decoder[0]
    p["wd2"], p["bd2"] = linear(keys[5], hidden_dim, hidden_dim)  # decoder[2]
    p["wd3"], p["bd3"] = linear(keys[6], hidden_dim, input_dim)   # decoder[4]
    return p


def vae_forward_ref(x, eps, pk):
    """Pure-JAX reference mirroring the kernel math (same bf16 casts / padding)."""
    bf16, f32 = jnp.bfloat16, jnp.float32
    d_pad = pk["w1"].shape[0]
    latent = eps.shape[1]
    xp = jnp.pad(x, ((0, 0), (0, d_pad - x.shape[1])))
    h = jax.nn.relu(jnp.dot(xp.astype(bf16), pk["w1"], preferred_element_type=f32) + pk["b1"])
    h = jax.nn.relu(jnp.dot(h.astype(bf16), pk["w2"], preferred_element_type=f32) + pk["b2"])
    mulv = jnp.dot(h.astype(bf16), pk["wml"], preferred_element_type=f32) + pk["bml"]
    mu, logvar = mulv[:, :latent], mulv[:, latent:]
    z = mu + eps * jnp.exp(0.5 * logvar)
    d = pk["bd1"]
    for l in range(latent):
        d = d + z[:, l:l + 1] * pk["wd1"][l:l + 1, :]
    d = jax.nn.relu(d)
    d = jax.nn.relu(jnp.dot(d.astype(bf16), pk["wd2"], preferred_element_type=f32) + pk["bd2"])
    logits = jnp.dot(d.astype(bf16), pk["wd3"], preferred_element_type=f32) + pk["bd3"]
    x_recon = jax.nn.sigmoid(logits)[:, :x.shape[1]]
    return x_recon, mu, logvar


if __name__ == "__main__":
    # Small shapes consistent with the module (VAE defaults: 784 / 2 / 512).
    B, INPUT_DIM, LATENT_DIM, HIDDEN_DIM = 8, 784, 2, 512

    key = jax.random.PRNGKey(0)
    k_params, k_x, k_eps = jax.random.split(key, 3)

    params = init_params(k_params, INPUT_DIM, LATENT_DIM, HIDDEN_DIM)
    packed = pack_params(params)   # one-time offline packing (pad / fuse / bf16)

    x = jax.random.uniform(k_x, (B, INPUT_DIM), jnp.float32)      # MNIST-like in [0,1)
    # eps for the reparameterization trick (torch.randn_like equivalent), drawn
    # outside the kernel so the sample is deterministic/reproducible.
    eps = jax.random.normal(k_eps, (B, LATENT_DIM), jnp.float32)

    x_recon, mu, logvar = vae_forward(x, eps, packed)
    jax.block_until_ready((x_recon, mu, logvar))

    # Sanity-check against a pure-JAX reference computing identical math.
    xr_r, mu_r, lv_r = vae_forward_ref(x, eps, packed)
    np.testing.assert_allclose(np.asarray(x_recon), np.asarray(xr_r), atol=1e-3, rtol=1e-3)
    np.testing.assert_allclose(np.asarray(mu), np.asarray(mu_r), atol=1e-3, rtol=1e-3)
    np.testing.assert_allclose(np.asarray(logvar), np.asarray(lv_r), atol=1e-3, rtol=1e-3)

    print("KERNEL_OK")
</pallas_src>

<mosaic_0001>
module attributes {stable_mosaic.version = 11 : i64} {
  func.func @_vae_kernel(%arg0: i32, %arg1: memref<8x896xf32, #tpu.memory_space<vmem>>, %arg2: memref<8x2xf32, #tpu.memory_space<vmem>>, %arg3: memref<896x512xbf16, #tpu.memory_space<vmem>>, %arg4: memref<1x512xf32, #tpu.memory_space<vmem>>, %arg5: memref<512x512xbf16, #tpu.memory_space<vmem>>, %arg6: memref<1x512xf32, #tpu.memory_space<vmem>>, %arg7: memref<512x4xbf16, #tpu.memory_space<vmem>>, %arg8: memref<1x4xf32, #tpu.memory_space<vmem>>, %arg9: memref<2x512xf32, #tpu.memory_space<vmem>>, %arg10: memref<1x512xf32, #tpu.memory_space<vmem>>, %arg11: memref<512x512xbf16, #tpu.memory_space<vmem>>, %arg12: memref<1x512xf32, #tpu.memory_space<vmem>>, %arg13: memref<512x896xbf16, #tpu.memory_space<vmem>>, %arg14: memref<1x896xf32, #tpu.memory_space<vmem>>, %arg15: memref<8x896xf32, #tpu.memory_space<vmem>>, %arg16: memref<8x4xf32, #tpu.memory_space<vmem>>) attributes {dimension_semantics = [#tpu.dimension_semantics<parallel>], iteration_bounds = array<i64: 1>, scalar_prefetch = 0 : i64, scratch_operands = 0 : i64, tpu.core_type = #tpu.core_type<tc>, window_params = [{transform_indices = @transform_0, window_bounds = array<i64: 8, 896>}, {transform_indices = @transform_1, window_bounds = array<i64: 8, 2>}, {pipeline_mode = #tpu.pipeline_mode<synchronous>, transform_indices = @transform_2, window_bounds = array<i64: 896, 512>}, {pipeline_mode = #tpu.pipeline_mode<synchronous>, transform_indices = @transform_3, window_bounds = array<i64: 1, 512>}, {pipeline_mode = #tpu.pipeline_mode<synchronous>, transform_indices = @transform_4, window_bounds = array<i64: 512, 512>}, {pipeline_mode = #tpu.pipeline_mode<synchronous>, transform_indices = @transform_5, window_bounds = array<i64: 1, 512>}, {pipeline_mode = #tpu.pipeline_mode<synchronous>, transform_indices = @transform_6, window_bounds = array<i64: 512, 4>}, {pipeline_mode = #tpu.pipeline_mode<synchronous>, transform_indices = @transform_7, window_bounds = array<i64: 1, 4>}, {pipeline_mode = #tpu.pipeline_mode<synchronous>, transform_indices = @transform_8, window_bounds = array<i64: 2, 512>}, {pipeline_mode = #tpu.pipeline_mode<synchronous>, transform_indices = @transform_9, window_bounds = array<i64: 1, 512>}, {pipeline_mode = #tpu.pipeline_mode<synchronous>, transform_indices = @transform_10, window_bounds = array<i64: 512, 512>}, {pipeline_mode = #tpu.pipeline_mode<synchronous>, transform_indices = @transform_11, window_bounds = array<i64: 1, 512>}, {pipeline_mode = #tpu.pipeline_mode<synchronous>, transform_indices = @transform_12, window_bounds = array<i64: 512, 896>}, {pipeline_mode = #tpu.pipeline_mode<synchronous>, transform_indices = @transform_13, window_bounds = array<i64: 1, 896>}, {transform_indices = @transform_14, window_bounds = array<i64: 8, 896>}, {transform_indices = @transform_15, window_bounds = array<i64: 8, 4>}]} {
    %c0 = arith.constant 0 : index
    %c0_0 = arith.constant 0 : index
    %0 = vector.load %arg1[%c0, %c0_0] : memref<8x896xf32, #tpu.memory_space<vmem>>, vector<8x896xf32>
    %1 = arith.truncf %0 : vector<8x896xf32> to vector<8x896xbf16>
    %c0_1 = arith.constant 0 : index
    %c0_2 = arith.constant 0 : index
    %2 = vector.load %arg3[%c0_1, %c0_2] : memref<896x512xbf16, #tpu.memory_space<vmem>>, vector<896x512xbf16>
    %cst = arith.constant dense<0.000000e+00> : vector<8x512xf32>
    %3 = tpu.matmul %1, %2, %cst {dimension_numbers = #tpu.dot_dimension_numbers<[1], [0], [0], [1], [0, 0, 1, 1], [], []>} : vector<8x896xbf16>, vector<896x512xbf16>, vector<8x512xf32> -> vector<8x512xf32>
    %c0_3 = arith.constant 0 : index
    %c0_4 = arith.constant 0 : index
    %4 = vector.load %arg4[%c0_3, %c0_4] : memref<1x512xf32, #tpu.memory_space<vmem>>, vector<1x512xf32>
    %5 = vector.broadcast %4 : vector<1x512xf32> to vector<8x512xf32>
    %6 = arith.addf %3, %5 : vector<8x512xf32>
    %cst_5 = arith.constant 0.000000e+00 : f32
    %7 = vector.broadcast %cst_5 : f32 to vector<8x512xf32>
    %8 = arith.maximumf %6, %7 : vector<8x512xf32>
    %9 = arith.truncf %8 : vector<8x512xf32> to vector<8x512xbf16>
    %c0_6 = arith.constant 0 : index
    %c0_7 = arith.constant 0 : index
    %10 = vector.load %arg5[%c0_6, %c0_7] : memref<512x512xbf16, #tpu.memory_space<vmem>>, vector<512x512xbf16>
    %cst_8 = arith.constant dense<0.000000e+00> : vector<8x512xf32>
    %11 = tpu.matmul %9, %10, %cst_8 {dimension_numbers = #tpu.dot_dimension_numbers<[1], [0], [0], [1], [0, 0, 1, 1], [], []>} : vector<8x512xbf16>, vector<512x512xbf16>, vector<8x512xf32> -> vector<8x512xf32>
    %c0_9 = arith.constant 0 : index
    %c0_10 = arith.constant 0 : index
    %12 = vector.load %arg6[%c0_9, %c0_10] : memref<1x512xf32, #tpu.memory_space<vmem>>, vector<1x512xf32>
    %13 = vector.broadcast %12 : vector<1x512xf32> to vector<8x512xf32>
    %14 = arith.addf %11, %13 : vector<8x512xf32>
    %cst_11 = arith.constant 0.000000e+00 : f32
    %15 = vector.broadcast %cst_11 : f32 to vector<8x512xf32>
    %16 = arith.maximumf %14, %15 : vector<8x512xf32>
    %17 = arith.truncf %16 : vector<8x512xf32> to vector<8x512xbf16>
    %c0_12 = arith.constant 0 : index
    %c0_13 = arith.constant 0 : index
    %18 = vector.load %arg7[%c0_12, %c0_13] : memref<512x4xbf16, #tpu.memory_space<vmem>>, vector<512x4xbf16>
    %cst_14 = arith.constant dense<0.000000e+00> : vector<8x4xf32>
    %19 = tpu.matmul %17, %18, %cst_14 {dimension_numbers = #tpu.dot_dimension_numbers<[1], [0], [0], [1], [0, 0, 1, 1], [], []>} : vector<8x512xbf16>, vector<512x4xbf16>, vector<8x4xf32> -> vector<8x4xf32>
    %c0_15 = arith.constant 0 : index
    %c0_16 = arith.constant 0 : index
    %20 = vector.load %arg8[%c0_15, %c0_16] : memref<1x4xf32, #tpu.memory_space<vmem>>, vector<1x4xf32>
    %21 = vector.broadcast %20 : vector<1x4xf32> to vector<8x4xf32>
    %22 = arith.addf %19, %21 : vector<8x4xf32>
    %23 = vector.extract_strided_slice %22 {offsets = [0, 0], sizes = [8, 2], strides = [1, 1]} : vector<8x4xf32> to vector<8x2xf32>
    %24 = vector.extract_strided_slice %22 {offsets = [0, 2], sizes = [8, 2], strides = [1, 1]} : vector<8x4xf32> to vector<8x2xf32>
    %c0_17 = arith.constant 0 : index
    %c0_18 = arith.constant 0 : index
    %25 = vector.load %arg2[%c0_17, %c0_18] : memref<8x2xf32, #tpu.memory_space<vmem>>, vector<8x2xf32>
    %cst_19 = arith.constant 5.000000e-01 : f32
    %26 = vector.broadcast %cst_19 : f32 to vector<8x2xf32>
    %27 = arith.mulf %26, %24 : vector<8x2xf32>
    %28 = math.exp %27 : vector<8x2xf32>
    %29 = arith.mulf %25, %28 : vector<8x2xf32>
    %30 = arith.addf %23, %29 : vector<8x2xf32>
    %c0_20 = arith.constant 0 : index
    %c0_21 = arith.constant 0 : index
    %31 = vector.load %arg10[%c0_20, %c0_21] : memref<1x512xf32, #tpu.memory_space<vmem>>, vector<1x512xf32>
    %32 = vector.extract_strided_slice %30 {offsets = [0, 0], sizes = [8, 1], strides = [1, 1]} : vector<8x2xf32> to vector<8x1xf32>
    %c0_22 = arith.constant 0 : index
    %c0_23 = arith.constant 0 : index
    %33 = vector.load %arg9[%c0_22, %c0_23] : memref<2x512xf32, #tpu.memory_space<vmem>>, vector<1x512xf32>
    %34 = vector.broadcast %32 : vector<8x1xf32> to vector<8x512xf32>
    %35 = vector.broadcast %33 : vector<1x512xf32> to vector<8x512xf32>
    %36 = arith.mulf %34, %35 : vector<8x512xf32>
    %37 = vector.broadcast %31 : vector<1x512xf32> to vector<8x512xf32>
    %38 = arith.addf %37, %36 : vector<8x512xf32>
    %39 = vector.extract_strided_slice %30 {offsets = [0, 1], sizes = [8, 1], strides = [1, 1]} : vector<8x2xf32> to vector<8x1xf32>
    %c1 = arith.constant 1 : index
    %c0_24 = arith.constant 0 : index
    %40 = vector.load %arg9[%c1, %c0_24] : memref<2x512xf32, #tpu.memory_space<vmem>>, vector<1x512xf32>
    %41 = vector.broadcast %39 : vector<8x1xf32> to vector<8x512xf32>
    %42 = vector.broadcast %40 : vector<1x512xf32> to vector<8x512xf32>
    %43 = arith.mulf %41, %42 : vector<8x512xf32>
    %44 = arith.addf %38, %43 : vector<8x512xf32>
    %cst_25 = arith.constant 0.000000e+00 : f32
    %45 = vector.broadcast %cst_25 : f32 to vector<8x512xf32>
    %46 = arith.maximumf %44, %45 : vector<8x512xf32>
    %47 = arith.truncf %46 : vector<8x512xf32> to vector<8x512xbf16>
    %c0_26 = arith.constant 0 : index
    %c0_27 = arith.constant 0 : index
    %48 = vector.load %arg11[%c0_26, %c0_27] : memref<512x512xbf16, #tpu.memory_space<vmem>>, vector<512x512xbf16>
    %cst_28 = arith.constant dense<0.000000e+00> : vector<8x512xf32>
    %49 = tpu.matmul %47, %48, %cst_28 {dimension_numbers = #tpu.dot_dimension_numbers<[1], [0], [0], [1], [0, 0, 1, 1], [], []>} : vector<8x512xbf16>, vector<512x512xbf16>, vector<8x512xf32> -> vector<8x512xf32>
    %c0_29 = arith.constant 0 : index
    %c0_30 = arith.constant 0 : index
    %50 = vector.load %arg12[%c0_29, %c0_30] : memref<1x512xf32, #tpu.memory_space<vmem>>, vector<1x512xf32>
    %51 = vector.broadcast %50 : vector<1x512xf32> to vector<8x512xf32>
    %52 = arith.addf %49, %51 : vector<8x512xf32>
    %cst_31 = arith.constant 0.000000e+00 : f32
    %53 = vector.broadcast %cst_31 : f32 to vector<8x512xf32>
    %54 = arith.maximumf %52, %53 : vector<8x512xf32>
    %55 = arith.truncf %54 : vector<8x512xf32> to vector<8x512xbf16>
    %c0_32 = arith.constant 0 : index
    %c0_33 = arith.constant 0 : index
    %56 = vector.load %arg13[%c0_32, %c0_33] : memref<512x896xbf16, #tpu.memory_space<vmem>>, vector<512x896xbf16>
    %cst_34 = arith.constant dense<0.000000e+00> : vector<8x896xf32>
    %57 = tpu.matmul %55, %56, %cst_34 {dimension_numbers = #tpu.dot_dimension_numbers<[1], [0], [0], [1], [0, 0, 1, 1], [], []>} : vector<8x512xbf16>, vector<512x896xbf16>, vector<8x896xf32> -> vector<8x896xf32>
    %c0_35 = arith.constant 0 : index
    %c0_36 = arith.constant 0 : index
    %58 = vector.load %arg14[%c0_35, %c0_36] : memref<1x896xf32, #tpu.memory_space<vmem>>, vector<1x896xf32>
    %59 = vector.broadcast %58 : vector<1x896xf32> to vector<8x896xf32>
    %60 = arith.addf %57, %59 : vector<8x896xf32>
    %61 = arith.negf %60 : vector<8x896xf32>
    %62 = math.exp %61 : vector<8x896xf32>
    %cst_37 = arith.constant 1.000000e+00 : f32
    %63 = vector.broadcast %cst_37 : f32 to vector<8x896xf32>
    %64 = arith.addf %63, %62 : vector<8x896xf32>
    %65 = arith.divf %63, %64 : vector<8x896xf32>
    %c0_38 = arith.constant 0 : index
    %c0_39 = arith.constant 0 : index
    %66 = vector.load %arg15[%c0_38, %c0_39] : memref<8x896xf32, #tpu.memory_space<vmem>>, vector<8x896xf32>
    tpu.vector_store %arg15[%c0_38, %c0_39], %65 {strides = array<i32>} : memref<8x896xf32, #tpu.memory_space<vmem>>, vector<8x896xf32>,
    %c0_40 = arith.constant 0 : index
    %c0_41 = arith.constant 0 : index
    %67 = vector.load %arg16[%c0_40, %c0_41] : memref<8x4xf32, #tpu.memory_space<vmem>>, vector<8x4xf32>
    tpu.vector_store %arg16[%c0_40, %c0_41], %22 {strides = array<i32>} : memref<8x4xf32, #tpu.memory_space<vmem>>, vector<8x4xf32>,
    return
  }
  func.func @transform_0(%arg0: i32) -> (i32, i32) {
    %c0_i32 = arith.constant 0 : i32
    %c0_i32_0 = arith.constant 0 : i32
    return %arg0, %c0_i32 : i32, i32
  }
  func.func @transform_1(%arg0: i32) -> (i32, i32) {
    %c0_i32 = arith.constant 0 : i32
    %c0_i32_0 = arith.constant 0 : i32
    return %arg0, %c0_i32 : i32, i32
  }
  func.func @transform_2(%arg0: i32) -> (i32, i32) {
    %c0_i32 = arith.constant 0 : i32
    %c0_i32_0 = arith.constant 0 : i32
    %c0_i32_1 = arith.constant 0 : i32
    return %c0_i32, %c0_i32_0 : i32, i32
  }
  func.func @transform_3(%arg0: i32) -> (i32, i32) {
    %c0_i32 = arith.constant 0 : i32
    %c0_i32_0 = arith.constant 0 : i32
    %c0_i32_1 = arith.constant 0 : i32
    return %c0_i32, %c0_i32_0 : i32, i32
  }
  func.func @transform_4(%arg0: i32) -> (i32, i32) {
    %c0_i32 = arith.constant 0 : i32
    %c0_i32_0 = arith.constant 0 : i32
    %c0_i32_1 = arith.constant 0 : i32
    return %c0_i32, %c0_i32_0 : i32, i32
  }
  func.func @transform_5(%arg0: i32) -> (i32, i32) {
    %c0_i32 = arith.constant 0 : i32
    %c0_i32_0 = arith.constant 0 : i32
    %c0_i32_1 = arith.constant 0 : i32
    return %c0_i32, %c0_i32_0 : i32, i32
  }
  func.func @transform_6(%arg0: i32) -> (i32, i32) {
    %c0_i32 = arith.constant 0 : i32
    %c0_i32_0 = arith.constant 0 : i32
    %c0_i32_1 = arith.constant 0 : i32
    return %c0_i32, %c0_i32_0 : i32, i32
  }
  func.func @transform_7(%arg0: i32) -> (i32, i32) {
    %c0_i32 = arith.constant 0 : i32
    %c0_i32_0 = arith.constant 0 : i32
    %c0_i32_1 = arith.constant 0 : i32
    return %c0_i32, %c0_i32_0 : i32, i32
  }
  func.func @transform_8(%arg0: i32) -> (i32, i32) {
    %c0_i32 = arith.constant 0 : i32
    %c0_i32_0 = arith.constant 0 : i32
    %c0_i32_1 = arith.constant 0 : i32
    return %c0_i32, %c0_i32_0 : i32, i32
  }
  func.func @transform_9(%arg0: i32) -> (i32, i32) {
    %c0_i32 = arith.constant 0 : i32
    %c0_i32_0 = arith.constant 0 : i32
    %c0_i32_1 = arith.constant 0 : i32
    return %c0_i32, %c0_i32_0 : i32, i32
  }
  func.func @transform_10(%arg0: i32) -> (i32, i32) {
    %c0_i32 = arith.constant 0 : i32
    %c0_i32_0 = arith.constant 0 : i32
    %c0_i32_1 = arith.constant 0 : i32
    return %c0_i32, %c0_i32_0 : i32, i32
  }
  func.func @transform_11(%arg0: i32) -> (i32, i32) {
    %c0_i32 = arith.constant 0 : i32
    %c0_i32_0 = arith.constant 0 : i32
    %c0_i32_1 = arith.constant 0 : i32
    return %c0_i32, %c0_i32_0 : i32, i32
  }
  func.func @transform_12(%arg0: i32) -> (i32, i32) {
    %c0_i32 = arith.constant 0 : i32
    %c0_i32_0 = arith.constant 0 : i32
    %c0_i32_1 = arith.constant 0 : i32
    return %c0_i32, %c0_i32_0 : i32, i32
  }
  func.func @transform_13(%arg0: i32) -> (i32, i32) {
    %c0_i32 = arith.constant 0 : i32
    %c0_i32_0 = arith.constant 0 : i32
    %c0_i32_1 = arith.constant 0 : i32
    return %c0_i32, %c0_i32_0 : i32, i32
  }
  func.func @transform_14(%arg0: i32) -> (i32, i32) {
    %c0_i32 = arith.constant 0 : i32
    %c0_i32_0 = arith.constant 0 : i32
    return %arg0, %c0_i32 : i32, i32
  }
  func.func @transform_15(%arg0: i32) -> (i32, i32) {
    %c0_i32 = arith.constant 0 : i32
    %c0_i32_0 = arith.constant 0 : i32
    return %arg0, %c0_i32 : i32, i32
  }
}

</mosaic_0001>

<llo_original>
// kernel: vae_forward.1
$region0: #{vae_forward.1}
  #allocation0 [shape = 'u32[]', space=smem, size = 0x4, offset = 0x4, fixed_abs, tag = 'smem constant byte address 0x4 - core index']
  #allocation1 [shape = 'u32[72,128]{1,0:T(1,128)}', space=vmem, size = 0x9000, scoped, tag = 'internal scratch']
  %s0 = inlined_call_operand.vmem [shape: f32[8,896], index: 0, kind: input, shape index: {}]
  %s1 = inlined_call_operand.vmem [shape: f32[8,2], index: 1, kind: input, shape index: {}]
  %s2 = inlined_call_operand.hbm [shape: bf16[896,512], index: 2, kind: input, shape index: {}]
  %s3 = inlined_call_operand.vmem [shape: f32[1,512], index: 3, kind: input, shape index: {}]
  %s4 = inlined_call_operand.hbm [shape: bf16[512,512], index: 4, kind: input, shape index: {}]
  %s5 = inlined_call_operand.vmem [shape: f32[1,512], index: 5, kind: input, shape index: {}]
  %s6 = inlined_call_operand.vmem [shape: bf16[512,4], index: 6, kind: input, shape index: {}]
  %s7 = inlined_call_operand.vmem [shape: f32[1,4], index: 7, kind: input, shape index: {}]
  %s8 = inlined_call_operand.vmem [shape: f32[2,512], index: 8, kind: input, shape index: {}]
  %s9 = inlined_call_operand.vmem [shape: f32[1,512], index: 9, kind: input, shape index: {}]
  %s10 = inlined_call_operand.hbm [shape: bf16[512,512], index: 10, kind: input, shape index: {}]
  %s11 = inlined_call_operand.vmem [shape: f32[1,512], index: 11, kind: input, shape index: {}]
  %s12 = inlined_call_operand.hbm [shape: bf16[512,896], index: 12, kind: input, shape index: {}]
  %s13 = inlined_call_operand.vmem [shape: f32[1,896], index: 13, kind: input, shape index: {}]
  %s14 = inlined_call_operand.hbm [shape: f32[8,896], index: 14, kind: output, shape index: {0}]
  %s15 = inlined_call_operand.vmem [shape: f32[8,4], index: 15, kind: output, shape index: {1}]
  %16 = xla_tuple %s14, %s15
  %s17 = sld [smem:[#allocation0]]
  $region90: #{vae_forward.1} parent=0
    _
  %s19 = ssub.s32 1, %s17
  %s20 = scalar_select 0, %s19, %s17
  $region1: #{vae_forward.1} parent=0
    #allocation2 [shape = 'u8[917504]{0}', space=vmem, size = 0xe0000, scoped, tag = 'input window, operand 2, single buffered']
    #allocation3 [shape = 's32[1]{0}', space=sflag, size = 0x4, scoped, tag = 'scoped memory for vae_forward.1']
    #allocation4 [shape = 's32[1]{0}', space=sflag, size = 0x4, scoped, tag = 'scoped memory for vae_forward.1']
    #allocation5 [shape = 'u8[524288]{0}', space=vmem, size = 0x80000, scoped, tag = 'input window, operand 4, single buffered']
    #allocation6 [shape = 's32[1]{0}', space=sflag, size = 0x4, scoped, tag = 'scoped memory for vae_forward.1']
    #allocation7 [shape = 'u8[524288]{0}', space=vmem, size = 0x80000, scoped, tag = 'input window, operand 10, single buffered']
    #allocation8 [shape = 'u8[917504]{0}', space=vmem, size = 0xe0000, scoped, tag = 'input window, operand 12, single buffered']
    #allocation9 [shape = 's32[1]{0}', space=sflag, size = 0x4, scoped, tag = 'scoped memory for vae_forward.1']
    #allocation10 [shape = 'u8[28672]{0}', space=vmem, size = 0x7000, scoped, tag = 'output window, operand 0, single buffered']
    %21 = vsyncpa [#allocation3], 0
    %22 = vsyncpa [#allocation6], 0
    %23 = vsyncpa [#allocation9], 0
    %24 = vsyncpa [#allocation4], 0
    // Predicated region
    $region2: #{vae_forward.1} parent=1 // pred_check
      _
    $region3: #{vae_forward.1} parent=1 // pred_check_branch
      %26 = sbr.rel (0) target = $region5
    $region4: #{vae_forward.1} parent=1 // pred_region
      _
    $region5: #{vae_forward.1} parent=1 // pred_fallthru
      _
    // Predicated region
    $region6: #{vae_forward.1} parent=1 // pred_check
      _
    $region7: #{vae_forward.1} parent=1 // pred_check_branch
      %28 = sbr.rel (0) target = $region9
    $region8: #{vae_forward.1} parent=1 // pred_region
      _
    $region9: #{vae_forward.1} parent=1 // pred_fallthru
      _
    // Predicated region
    $region10: #{vae_forward.1} parent=1 // pred_check
      _
    $region11: #{vae_forward.1} parent=1 // pred_check_branch
      %30 = sbr.rel (0) target = $region13
    $region12: #{vae_forward.1} parent=1 // pred_region
      %32 = vsyncadd [#allocation3], 0
      %s33 = sshll.u32 %s2, 4
      %s34 = int_to_ptr.hbm [resolvable:$true] %s33
      %s35 = sshll.u32 [#allocation2], 4
      %s36 = int_to_ptr.vmem [resolvable:$true] %s35
      %41 = dma.hbm_to_vmem [thread:$0]  %s34, 28672, %s36, [#allocation3], 256, 256, 16
    $region13: #{vae_forward.1} parent=1 // pred_fallthru
      _
    // Predicated region
    $region14: #{vae_forward.1} parent=1 // pred_check
      _
    $region15: #{vae_forward.1} parent=1 // pred_check_branch
      %43 = sbr.rel (0) target = $region17
    $region16: #{vae_forward.1} parent=1 // pred_region
      _
    $region17: #{vae_forward.1} parent=1 // pred_fallthru
      _
    // Predicated region
    $region18: #{vae_forward.1} parent=1 // pred_check
      _
    $region19: #{vae_forward.1} parent=1 // pred_check_branch
      %45 = sbr.rel (0) target = $region21
    $region20: #{vae_forward.1} parent=1 // pred_region
      %47 = vsyncadd [#allocation6], 0
      %s48 = sshll.u32 %s4, 4
      %s49 = int_to_ptr.hbm [resolvable:$true] %s48
      %s50 = sshll.u32 [#allocation5], 4
      %s51 = int_to_ptr.vmem [resolvable:$true] %s50
      %56 = dma.hbm_to_vmem [thread:$0]  %s49, 16384, %s51, [#allocation6], 256, 256, 16
    $region21: #{vae_forward.1} parent=1 // pred_fallthru
      _
    // Predicated region
    $region22: #{vae_forward.1} parent=1 // pred_check
      _
    $region23: #{vae_forward.1} parent=1 // pred_check_branch
      %58 = sbr.rel (0) target = $region25
    $region24: #{vae_forward.1} parent=1 // pred_region
      _
    $region25: #{vae_forward.1} parent=1 // pred_fallthru
      _
    // Predicated region
    $region26: #{vae_forward.1} parent=1 // pred_check
      _
    $region27: #{vae_forward.1} parent=1 // pred_check_branch
      %60 = sbr.rel (0) target = $region29
    $region28: #{vae_forward.1} parent=1 // pred_region
      _
    $region29: #{vae_forward.1} parent=1 // pred_fallthru
      _
    // Predicated region
    $region30: #{vae_forward.1} parent=1 // pred_check
      _
    $region31: #{vae_forward.1} parent=1 // pred_check_branch
      %62 = sbr.rel (0) target = $region33
    $region32: #{vae_forward.1} parent=1 // pred_region
      _
    $region33: #{vae_forward.1} parent=1 // pred_fallthru
      _
    // Predicated region
    $region34: #{vae_forward.1} parent=1 // pred_check
      _
    $region35: #{vae_forward.1} parent=1 // pred_check_branch
      %64 = sbr.rel (0) target = $region37
    $region36: #{vae_forward.1} parent=1 // pred_region
      _
    $region37: #{vae_forward.1} parent=1 // pred_fallthru
      _
    // Predicated region
    $region38: #{vae_forward.1} parent=1 // pred_check
      _
    $region39: #{vae_forward.1} parent=1 // pred_check_branch
      %66 = sbr.rel (0) target = $region41
    $region40: #{vae_forward.1} parent=1 // pred_region
      _
    $region41: #{vae_forward.1} parent=1 // pred_fallthru
      _
    // Predicated region
    $region42: #{vae_forward.1} parent=1 // pred_check
      _
    $region43: #{vae_forward.1} parent=1 // pred_check_branch
      %68 = sbr.rel (0) target = $region45
    $region44: #{vae_forward.1} parent=1 // pred_region
      %70 = vsyncadd [#allocation6], 0
      %s71 = sshll.u32 %s10, 4
      %s72 = int_to_ptr.hbm [resolvable:$true] %s71
      %s73 = sshll.u32 [#allocation7], 4
      %s74 = int_to_ptr.vmem [resolvable:$true] %s73
      %79 = dma.hbm_to_vmem [thread:$0]  %s72, 16384, %s74, [#allocation6], 256, 256, 16
    $region45: #{vae_forward.1} parent=1 // pred_fallthru
      _
    // Predicated region
    $region46: #{vae_forward.1} parent=1 // pred_check
      _
    $region47: #{vae_forward.1} parent=1 // pred_check_branch
      %81 = sbr.rel (0) target = $region49
    $region48: #{vae_forward.1} parent=1 // pred_region
      _
    $region49: #{vae_forward.1} parent=1 // pred_fallthru
      _
    // Predicated region
    $region50: #{vae_forward.1} parent=1 // pred_check
      _
    $region51: #{vae_forward.1} parent=1 // pred_check_branch
      %83 = sbr.rel (0) target = $region53
    $region52: #{vae_forward.1} parent=1 // pred_region
      %85 = vsyncadd [#allocation9], 0
      %s86 = sshll.u32 %s12, 4
      %s87 = int_to_ptr.hbm [resolvable:$true] %s86
      %s88 = sshll.u32 [#allocation8], 4
      %s89 = int_to_ptr.vmem [resolvable:$true] %s88
      %94 = dma.hbm_to_vmem [thread:$0]  %s87, 28672, %s89, [#allocation9], 448, 448, 28
    $region53: #{vae_forward.1} parent=1 // pred_fallthru
      _
    // Predicated region
    $region54: #{vae_forward.1} parent=1 // pred_check
      _
    $region55: #{vae_forward.1} parent=1 // pred_check_branch
      %96 = sbr.rel (0) target = $region57
    $region56: #{vae_forward.1} parent=1 // pred_region
      _
    $region57: #{vae_forward.1} parent=1 // pred_fallthru
      _
    // Predicated region
    $region58: #{vae_forward.1} parent=1 // pred_check
      _
    $region59: #{vae_forward.1} parent=1 // pred_check_branch
      %98 = sbr.rel (0) target = $region61
    $region60: #{vae_forward.1} parent=1 // pred_region
      %100 = dma.done [#allocation3], 28672
    $region61: #{vae_forward.1} parent=1 // pred_fallthru
      _
    // Predicated region
    $region62: #{vae_forward.1} parent=1 // pred_check
      _
    $region63: #{vae_forward.1} parent=1 // pred_check_branch
      %102 = sbr.rel (0) target = $region65
    $region64: #{vae_forward.1} parent=1 // pred_region
      %104 = dma.done [#allocation6], 16384
    $region65: #{vae_forward.1} parent=1 // pred_fallthru
      _
    // Predicated region
    $region66: #{vae_forward.1} parent=1 // pred_check
      _
    $region67: #{vae_forward.1} parent=1 // pred_check_branch
      %106 = sbr.rel (0) target = $region69
    $region68: #{vae_forward.1} parent=1 // pred_region
      %108 = dma.done [#allocation6], 16384
    $region69: #{vae_forward.1} parent=1 // pred_fallthru
      _
    // Predicated region
    $region70: #{vae_forward.1} parent=1 // pred_check
      _
    $region71: #{vae_forward.1} parent=1 // pred_check_branch
      %110 = sbr.rel (0) target = $region73
    $region72: #{vae_forward.1} parent=1 // pred_region
      %112 = dma.done [#allocation9], 28672
    $region73: #{vae_forward.1} parent=1 // pred_fallthru
      _
    %v113 = vld [vmem:[%s0] sm:$0xff]
    %v114 = vld [vmem:[%s0 + $0x8] sm:$0xff]
    %v115 = vld [vmem:[%s0 + $0x10] sm:$0xff]
    %v116 = vld [vmem:[%s0 + $0x18] sm:$0xff]
    %v117 = vld [vmem:[%s0 + $0x20] sm:$0xff]
    %v118 = vld [vmem:[%s0 + $0x28] sm:$0xff]
    %v119 = vld [vmem:[%s0 + $0x30] sm:$0xff]
    %v120 = vpack.c.bf16 %v113, %v113
    %v121 = vpack.c.bf16 %v114, %v114
    %v122 = vpack.c.bf16 %v115, %v115
    %v123 = vpack.c.bf16 %v116, %v116
    %v124 = vpack.c.bf16 %v117, %v117
    %v125 = vpack.c.bf16 %v118, %v118
    %v126 = vpack.c.bf16 %v119, %v119
    %v127 = vld [vmem:[#allocation2] sm:$0xff]
    %v128 = vld [vmem:[#allocation2 + $0x8] sm:$0xff]
    %v129 = vld [vmem:[#allocation2 + $0x10] sm:$0xff]
    %v130 = vld [vmem:[#allocation2 + $0x18] sm:$0xff]
    %v131 = vld [vmem:[#allocation2 + $0x20] sm:$0xff]
    %v132 = vld [vmem:[#allocation2 + $0x28] sm:$0xff]
    %v133 = vld [vmem:[#allocation2 + $0x30] sm:$0xff]
    %v134 = vld [vmem:[#allocation2 + $0x38] sm:$0xff]
    %v135 = vld [vmem:[#allocation2 + $0x40] sm:$0xff]
    %v136 = vld [vmem:[#allocation2 + $0x48] sm:$0xff]
    %v137 = vld [vmem:[#allocation2 + $0x50] sm:$0xff]
    %v138 = vld [vmem:[#allocation2 + $0x58] sm:$0xff]
    %v139 = vld [vmem:[#allocation2 + $0x60] sm:$0xff]
    %v140 = vld [vmem:[#allocation2 + $0x68] sm:$0xff]
    %v141 = vld [vmem:[#allocation2 + $0x70] sm:$0xff]
    %v142 = vld [vmem:[#allocation2 + $0x78] sm:$0xff]
    %v143 = vld [vmem:[#allocation2 + $0x80] sm:$0xff]
    %v144 = vld [vmem:[#allocation2 + $0x88] sm:$0xff]
    %v145 = vld [vmem:[#allocation2 + $0x90] sm:$0xff]
    %v146 = vld [vmem:[#allocation2 + $0x98] sm:$0xff]
    %v147 = vld [vmem:[#allocation2 + $0xa0] sm:$0xff]
    %v148 = vld [vmem:[#allocation2 + $0xa8] sm:$0xff]
    %v149 = vld [vmem:[#allocation2 + $0xb0] sm:$0xff]
    %v150 = vld [vmem:[#allocation2 + $0xb8] sm:$0xff]
    %v151 = vld [vmem:[#allocation2 + $0xc0] sm:$0xff]
    %v152 = vld [vmem:[#allocation2 + $0xc8] sm:$0xff]
    %v153 = vld [vmem:[#allocation2 + $0xd0] sm:$0xff]
    %v154 = vld [vmem:[#allocation2 + $0xd8] sm:$0xff]
    %v155 = vld [vmem:[#allocation2 + $0xe0] sm:$0xff]
    %v156 = vld [vmem:[#allocation2 + $0xe8] sm:$0xff]
    %v157 = vld [vmem:[#allocation2 + $0xf0] sm:$0xff]
    %v158 = vld [vmem:[#allocation2 + $0xf8] sm:$0xff]
    %v159 = vld [vmem:[#allocation2 + $0x100] sm:$0xff]
    %v160 = vld [vmem:[#allocation2 + $0x108] sm:$0xff]
    %v161 = vld [vmem:[#allocation2 + $0x110] sm:$0xff]
    %v162 = vld [vmem:[#allocation2 + $0x118] sm:$0xff]
    %v163 = vld [vmem:[#allocation2 + $0x120] sm:$0xff]
    %v164 = vld [vmem:[#allocation2 + $0x128] sm:$0xff]
    %v165 = vld [vmem:[#allocation2 + $0x130] sm:$0xff]
    %v166 = vld [vmem:[#allocation2 + $0x138] sm:$0xff]
    %v167 = vld [vmem:[#allocation2 + $0x140] sm:$0xff]
    %v168 = vld [vmem:[#allocation2 + $0x148] sm:$0xff]
    %v169 = vld [vmem:[#allocation2 + $0x150] sm:$0xff]
    %v170 = vld [vmem:[#allocation2 + $0x158] sm:$0xff]
    %v171 = vld [vmem:[#allocation2 + $0x160] sm:$0xff]
    %v172 = vld [vmem:[#allocation2 + $0x168] sm:$0xff]
    %v173 = vld [vmem:[#allocation2 + $0x170] sm:$0xff]
    %v174 = vld [vmem:[#allocation2 + $0x178] sm:$0xff]
    %v175 = vld [vmem:[#allocation2 + $0x180] sm:$0xff]
    %v176 = vld [vmem:[#allocation2 + $0x188] sm:$0xff]
    %v177 = vld [vmem:[#allocation2 + $0x190] sm:$0xff]
    %v178 = vld [vmem:[#allocation2 + $0x198] sm:$0xff]
    %v179 = vld [vmem:[#allocation2 + $0x1a0] sm:$0xff]
    %v180 = vld [vmem:[#allocation2 + $0x1a8] sm:$0xff]
    %v181 = vld [vmem:[#allocation2 + $0x1b0] sm:$0xff]
    %v182 = vld [vmem:[#allocation2 + $0x1b8] sm:$0xff]
    %v183 = vld [vmem:[#allocation2 + $0x1c0] sm:$0xff]
    %v184 = vld [vmem:[#allocation2 + $0x1c8] sm:$0xff]
    %v185 = vld [vmem:[#allocation2 + $0x1d0] sm:$0xff]
    %v186 = vld [vmem:[#allocation2 + $0x1d8] sm:$0xff]
    %v187 = vld [vmem:[#allocation2 + $0x1e0] sm:$0xff]
    %v188 = vld [vmem:[#allocation2 + $0x1e8] sm:$0xff]
    %v189 = vld [vmem:[#allocation2 + $0x1f0] sm:$0xff]
    %v190 = vld [vmem:[#allocation2 + $0x1f8] sm:$0xff]
    %v191 = vld [vmem:[#allocation2 + $0x200] sm:$0xff]
    %v192 = vld [vmem:[#allocation2 + $0x208] sm:$0xff]
    %v193 = vld [vmem:[#allocation2 + $0x210] sm:$0xff]
    %v194 = vld [vmem:[#allocation2 + $0x218] sm:$0xff]
    %v195 = vld [vmem:[#allocation2 + $0x220] sm:$0xff]
    %v196 = vld [vmem:[#allocation2 + $0x228] sm:$0xff]
    %v197 = vld [vmem:[#allocation2 + $0x230] sm:$0xff]
    %v198 = vld [vmem:[#allocation2 + $0x238] sm:$0xff]
    %v199 = vld [vmem:[#allocation2 + $0x240] sm:$0xff]
    %v200 = vld [vmem:[#allocation2 + $0x248] sm:$0xff]
    %v201 = vld [vmem:[#allocation2 + $0x250] sm:$0xff]
    %v202 = vld [vmem:[#allocation2 + $0x258] sm:$0xff]
    %v203 = vld [vmem:[#allocation2 + $0x260] sm:$0xff]
    %v204 = vld [vmem:[#allocation2 + $0x268] sm:$0xff]
    %v205 = vld [vmem:[#allocation2 + $0x270] sm:$0xff]
    %v206 = vld [vmem:[#allocation2 + $0x278] sm:$0xff]
    %v207 = vld [vmem:[#allocation2 + $0x280] sm:$0xff]
    %v208 = vld [vmem:[#allocation2 + $0x288] sm:$0xff]
    %v209 = vld [vmem:[#allocation2 + $0x290] sm:$0xff]
    %v210 = vld [vmem:[#allocation2 + $0x298] sm:$0xff]
    %v211 = vld [vmem:[#allocation2 + $0x2a0] sm:$0xff]
    %v212 = vld [vmem:[#allocation2 + $0x2a8] sm:$0xff]
    %v213 = vld [vmem:[#allocation2 + $0x2b0] sm:$0xff]
    %v214 = vld [vmem:[#allocation2 + $0x2b8] sm:$0xff]
    %v215 = vld [vmem:[#allocation2 + $0x2c0] sm:$0xff]
    %v216 = vld [vmem:[#allocation2 + $0x2c8] sm:$0xff]
    %v217 = vld [vmem:[#allocation2 + $0x2d0] sm:$0xff]
    %v218 = vld [vmem:[#allocation2 + $0x2d8] sm:$0xff]
    %v219 = vld [vmem:[#allocation2 + $0x2e0] sm:$0xff]
    %v220 = vld [vmem:[#allocation2 + $0x2e8] sm:$0xff]
    %v221 = vld [vmem:[#allocation2 + $0x2f0] sm:$0xff]
    %v222 = vld [vmem:[#allocation2 + $0x2f8] sm:$0xff]
    %v223 = vld [vmem:[#allocation2 + $0x300] sm:$0xff]
    %v224 = vld [vmem:[#allocation2 + $0x308] sm:$0xff]
    %v225 = vld [vmem:[#allocation2 + $0x310] sm:$0xff]
    %v226 = vld [vmem:[#allocation2 + $0x318] sm:$0xff]
    %v227 = vld [vmem:[#allocation2 + $0x320] sm:$0xff]
    %v228 = vld [vmem:[#allocation2 + $0x328] sm:$0xff]
    %v229 = vld [vmem:[#allocation2 + $0x330] sm:$0xff]
    %v230 = vld [vmem:[#allocation2 + $0x338] sm:$0xff]
    %v231 = vld [vmem:[#allocation2 + $0x340] sm:$0xff]
    %v232 = vld [vmem:[#allocation2 + $0x348] sm:$0xff]
    %v233 = vld [vmem:[#allocation2 + $0x350] sm:$0xff]
    %v234 = vld [vmem:[#allocation2 + $0x358] sm:$0xff]
    %v235 = vld [vmem:[#allocation2 + $0x360] sm:$0xff]
    %v236 = vld [vmem:[#allocation2 + $0x368] sm:$0xff]
    %v237 = vld [vmem:[#allocation2 + $0x370] sm:$0xff]
    %v238 = vld [vmem:[#allocation2 + $0x378] sm:$0xff]
    %v239 = vld [vmem:[#allocation2 + $0x380] sm:$0xff]
    %v240 = vld [vmem:[#allocation2 + $0x388] sm:$0xff]
    %v241 = vld [vmem:[#allocation2 + $0x390] sm:$0xff]
    %v242 = vld [vmem:[#allocation2 + $0x398] sm:$0xff]
    %v243 = vld [vmem:[#allocation2 + $0x3a0] sm:$0xff]
    %v244 = vld [vmem:[#allocation2 + $0x3a8] sm:$0xff]
    %v245 = vld [vmem:[#allocation2 + $0x3b0] sm:$0xff]
    %v246 = vld [vmem:[#allocation2 + $0x3b8] sm:$0xff]
    %v247 = vld [vmem:[#allocation2 + $0x3c0] sm:$0xff]
    %v248 = vld [vmem:[#allocation2 + $0x3c8] sm:$0xff]
    %v249 = vld [vmem:[#allocation2 + $0x3d0] sm:$0xff]
    %v250 = vld [vmem:[#allocation2 + $0x3d8] sm:$0xff]
    %v251 = vld [vmem:[#allocation2 + $0x3e0] sm:$0xff]
    %v252 = vld [vmem:[#allocation2 + $0x3e8] sm:$0xff]
    %v253 = vld [vmem:[#allocation2 + $0x3f0] sm:$0xff]
    %v254 = vld [vmem:[#allocation2 + $0x3f8] sm:$0xff]
    %v255 = vld [vmem:[#allocation2 + $0x400] sm:$0xff]
    %v256 = vld [vmem:[#allocation2 + $0x408] sm:$0xff]
    %v257 = vld [vmem:[#allocation2 + $0x410] sm:$0xff]
    %v258 = vld [vmem:[#allocation2 + $0x418] sm:$0xff]
    %v259 = vld [vmem:[#allocation2 + $0x420] sm:$0xff]
    %v260 = vld [vmem:[#allocation2 + $0x428] sm:$0xff]
    %v261 = vld [vmem:[#allocation2 + $0x430] sm:$0xff]
    %v262 = vld [vmem:[#allocation2 + $0x438] sm:$0xff]
    %v263 = vld [vmem:[#allocation2 + $0x440] sm:$0xff]
    %v264 = vld [vmem:[#allocation2 + $0x448] sm:$0xff]
    %v265 = vld [vmem:[#allocation2 + $0x450] sm:$0xff]
    %v266 = vld [vmem:[#allocation2 + $0x458] sm:$0xff]
    %v267 = vld [vmem:[#allocation2 + $0x460] sm:$0xff]
    %v268 = vld [vmem:[#allocation2 + $0x468] sm:$0xff]
    %v269 = vld [vmem:[#allocation2 + $0x470] sm:$0xff]
    %v270 = vld [vmem:[#allocation2 + $0x478] sm:$0xff]
    %v271 = vld [vmem:[#allocation2 + $0x480] sm:$0xff]
    %v272 = vld [vmem:[#allocation2 + $0x488] sm:$0xff]
    %v273 = vld [vmem:[#allocation2 + $0x490] sm:$0xff]
    %v274 = vld [vmem:[#allocation2 + $0x498] sm:$0xff]
    %v275 = vld [vmem:[#allocation2 + $0x4a0] sm:$0xff]
    %v276 = vld [vmem:[#allocation2 + $0x4a8] sm:$0xff]
    %v277 = vld [vmem:[#allocation2 + $0x4b0] sm:$0xff]
    %v278 = vld [vmem:[#allocation2 + $0x4b8] sm:$0xff]
    %v279 = vld [vmem:[#allocation2 + $0x4c0] sm:$0xff]
    %v280 = vld [vmem:[#allocation2 + $0x4c8] sm:$0xff]
    %v281 = vld [vmem:[#allocation2 + $0x4d0] sm:$0xff]
    %v282 = vld [vmem:[#allocation2 + $0x4d8] sm:$0xff]
    %v283 = vld [vmem:[#allocation2 + $0x4e0] sm:$0xff]
    %v284 = vld [vmem:[#allocation2 + $0x4e8] sm:$0xff]
    %v285 = vld [vmem:[#allocation2 + $0x4f0] sm:$0xff]
    %v286 = vld [vmem:[#allocation2 + $0x4f8] sm:$0xff]
    %v287 = vld [vmem:[#allocation2 + $0x500] sm:$0xff]
    %v288 = vld [vmem:[#allocation2 + $0x508] sm:$0xff]
    %v289 = vld [vmem:[#allocation2 + $0x510] sm:$0xff]
    %v290 = vld [vmem:[#allocation2 + $0x518] sm:$0xff]
    %v291 = vld [vmem:[#allocation2 + $0x520] sm:$0xff]
    %v292 = vld [vmem:[#allocation2 + $0x528] sm:$0xff]
    %v293 = vld [vmem:[#allocation2 + $0x530] sm:$0xff]
    %v294 = vld [vmem:[#allocation2 + $0x538] sm:$0xff]
    %v295 = vld [vmem:[#allocation2 + $0x540] sm:$0xff]
    %v296 = vld [vmem:[#allocation2 + $0x548] sm:$0xff]
    %v297 = vld [vmem:[#allocation2 + $0x550] sm:$0xff]
    %v298 = vld [vmem:[#allocation2 + $0x558] sm:$0xff]
    %v299 = vld [vmem:[#allocation2 + $0x560] sm:$0xff]
    %v300 = vld [vmem:[#allocation2 + $0x568] sm:$0xff]
    %v301 = vld [vmem:[#allocation2 + $0x570] sm:$0xff]
    %v302 = vld [vmem:[#allocation2 + $0x578] sm:$0xff]
    %v303 = vld [vmem:[#allocation2 + $0x580] sm:$0xff]
    %v304 = vld [vmem:[#allocation2 + $0x588] sm:$0xff]
    %v305 = vld [vmem:[#allocation2 + $0x590] sm:$0xff]
    %v306 = vld [vmem:[#allocation2 + $0x598] sm:$0xff]
    %v307 = vld [vmem:[#allocation2 + $0x5a0] sm:$0xff]
    %v308 = vld [vmem:[#allocation2 + $0x5a8] sm:$0xff]
    %v309 = vld [vmem:[#allocation2 + $0x5b0] sm:$0xff]
    %v310 = vld [vmem:[#allocation2 + $0x5b8] sm:$0xff]
    %v311 = vld [vmem:[#allocation2 + $0x5c0] sm:$0xff]
    %v312 = vld [vmem:[#allocation2 + $0x5c8] sm:$0xff]
    %v313 = vld [vmem:[#allocation2 + $0x5d0] sm:$0xff]
    %v314 = vld [vmem:[#allocation2 + $0x5d8] sm:$0xff]
    %v315 = vld [vmem:[#allocation2 + $0x5e0] sm:$0xff]
    %v316 = vld [vmem:[#allocation2 + $0x5e8] sm:$0xff]
    %v317 = vld [vmem:[#allocation2 + $0x5f0] sm:$0xff]
    %v318 = vld [vmem:[#allocation2 + $0x5f8] sm:$0xff]
    %v319 = vld [vmem:[#allocation2 + $0x600] sm:$0xff]
    %v320 = vld [vmem:[#allocation2 + $0x608] sm:$0xff]
    %v321 = vld [vmem:[#allocation2 + $0x610] sm:$0xff]
    %v322 = vld [vmem:[#allocation2 + $0x618] sm:$0xff]
    %v323 = vld [vmem:[#allocation2 + $0x620] sm:$0xff]
    %v324 = vld [vmem:[#allocation2 + $0x628] sm:$0xff]
    %v325 = vld [vmem:[#allocation2 + $0x630] sm:$0xff]
    %v326 = vld [vmem:[#allocation2 + $0x638] sm:$0xff]
    %v327 = vld [vmem:[#allocation2 + $0x640] sm:$0xff]
    %v328 = vld [vmem:[#allocation2 + $0x648] sm:$0xff]
    %v329 = vld [vmem:[#allocation2 + $0x650] sm:$0xff]
    %v330 = vld [vmem:[#allocation2 + $0x658] sm:$0xff]
    %v331 = vld [vmem:[#allocation2 + $0x660] sm:$0xff]
    %v332 = vld [vmem:[#allocation2 + $0x668] sm:$0xff]
    %v333 = vld [vmem:[#allocation2 + $0x670] sm:$0xff]
    %v334 = vld [vmem:[#allocation2 + $0x678] sm:$0xff]
    %v335 = vld [vmem:[#allocation2 + $0x680] sm:$0xff]
    %v336 = vld [vmem:[#allocation2 + $0x688] sm:$0xff]
    %v337 = vld [vmem:[#allocation2 + $0x690] sm:$0xff]
    %v338 = vld [vmem:[#allocation2 + $0x698] sm:$0xff]
    %v339 = vld [vmem:[#allocation2 + $0x6a0] sm:$0xff]
    %v340 = vld [vmem:[#allocation2 + $0x6a8] sm:$0xff]
    %v341 = vld [vmem:[#allocation2 + $0x6b0] sm:$0xff]
    %v342 = vld [vmem:[#allocation2 + $0x6b8] sm:$0xff]
    %v343 = vld [vmem:[#allocation2 + $0x6c0] sm:$0xff]
    %v344 = vld [vmem:[#allocation2 + $0x6c8] sm:$0xff]
    %v345 = vld [vmem:[#allocation2 + $0x6d0] sm:$0xff]
    %v346 = vld [vmem:[#allocation2 + $0x6d8] sm:$0xff]
    %v347 = vld [vmem:[#allocation2 + $0x6e0] sm:$0xff]
    %v348 = vld [vmem:[#allocation2 + $0x6e8] sm:$0xff]
    %v349 = vld [vmem:[#allocation2 + $0x6f0] sm:$0xff]
    %v350 = vld [vmem:[#allocation2 + $0x6f8] sm:$0xff]
    %v351 = vld [vmem:[%s3] sm:$0xf]
    %v353 = vperm.slane %v351, 0
    %v354 = vperm.slane %v351, 1
    %v355 = vperm.slane %v351, 2
    %v356 = vperm.slane %v351, 3
    %v585 = vunpack.c.l.b16 %v127
    %v586 = vunpack.c.h.b16 %v127
    %v587 = vunpack.c.l.b16 %v128
    %v588 = vunpack.c.h.b16 %v128
    %v589 = vunpack.c.l.b16 %v129
    %v590 = vunpack.c.h.b16 %v129
    %v591 = vunpack.c.l.b16 %v130
    %v592 = vunpack.c.h.b16 %v130
    %v593 = vunpack.c.l.b16 %v131
    %v594 = vunpack.c.h.b16 %v131
    %v595 = vunpack.c.l.b16 %v132
    %v596 = vunpack.c.h.b16 %v132
    %v597 = vunpack.c.l.b16 %v133
    %v598 = vunpack.c.h.b16 %v133
    %v599 = vunpack.c.l.b16 %v134
    %v600 = vunpack.c.h.b16 %v134
    %v601 = vunpack.c.l.b16 %v135
    %v602 = vunpack.c.h.b16 %v135
    %v603 = vunpack.c.l.b16 %v136
    %v604 = vunpack.c.h.b16 %v136
    %v605 = vunpack.c.l.b16 %v137
    %v606 = vunpack.c.h.b16 %v137
    %v607 = vunpack.c.l.b16 %v138
    %v608 = vunpack.c.h.b16 %v138
    %v609 = vunpack.c.l.b16 %v139
    %v610 = vunpack.c.h.b16 %v139
    %v611 = vunpack.c.l.b16 %v140
    %v612 = vunpack.c.h.b16 %v140
    %v613 = vunpack.c.l.b16 %v141
    %v614 = vunpack.c.h.b16 %v141
    %v615 = vunpack.c.l.b16 %v142
    %v616 = vunpack.c.h.b16 %v142
    %v617 = vunpack.c.l.b16 %v143
    %v618 = vunpack.c.h.b16 %v143
    %v619 = vunpack.c.l.b16 %v144
    %v620 = vunpack.c.h.b16 %v144
    %v621 = vunpack.c.l.b16 %v145
    %v622 = vunpack.c.h.b16 %v145
    %v623 = vunpack.c.l.b16 %v146
    %v624 = vunpack.c.h.b16 %v146
    %v625 = vunpack.c.l.b16 %v147
    %v626 = vunpack.c.h.b16 %v147
    %v627 = vunpack.c.l.b16 %v148
    %v628 = vunpack.c.h.b16 %v148
    %v629 = vunpack.c.l.b16 %v149
    %v630 = vunpack.c.h.b16 %v149
    %v631 = vunpack.c.l.b16 %v150
    %v632 = vunpack.c.h.b16 %v150
    %v633 = vunpack.c.l.b16 %v151
    %v634 = vunpack.c.h.b16 %v151
    %v635 = vunpack.c.l.b16 %v152
    %v636 = vunpack.c.h.b16 %v152
    %v637 = vunpack.c.l.b16 %v153
    %v638 = vunpack.c.h.b16 %v153
    %v639 = vunpack.c.l.b16 %v154
    %v640 = vunpack.c.h.b16 %v154
    %v641 = vunpack.c.l.b16 %v155
    %v642 = vunpack.c.h.b16 %v155
    %v643 = vunpack.c.l.b16 %v156
    %v644 = vunpack.c.h.b16 %v156
    %v645 = vunpack.c.l.b16 %v157
    %v646 = vunpack.c.h.b16 %v157
    %v647 = vunpack.c.l.b16 %v158
    %v648 = vunpack.c.h.b16 %v158
    %v649 = vunpack.c.l.b16 %v159
    %v650 = vunpack.c.h.b16 %v159
    %v651 = vunpack.c.l.b16 %v160
    %v652 = vunpack.c.h.b16 %v160
    %v653 = vunpack.c.l.b16 %v161
    %v654 = vunpack.c.h.b16 %v161
    %v655 = vunpack.c.l.b16 %v162
    %v656 = vunpack.c.h.b16 %v162
    %v657 = vunpack.c.l.b16 %v163
    %v658 = vunpack.c.h.b16 %v163
    %v659 = vunpack.c.l.b16 %v164
    %v660 = vunpack.c.h.b16 %v164
    %v661 = vunpack.c.l.b16 %v165
    %v662 = vunpack.c.h.b16 %v165
    %v663 = vunpack.c.l.b16 %v166
    %v664 = vunpack.c.h.b16 %v166
    %v665 = vunpack.c.l.b16 %v167
    %v666 = vunpack.c.h.b16 %v167
    %v667 = vunpack.c.l.b16 %v168
    %v668 = vunpack.c.h.b16 %v168
    %v669 = vunpack.c.l.b16 %v169
    %v670 = vunpack.c.h.b16 %v169
    %v671 = vunpack.c.l.b16 %v170
    %v672 = vunpack.c.h.b16 %v170
    %v673 = vunpack.c.l.b16 %v171
    %v674 = vunpack.c.h.b16 %v171
    %v675 = vunpack.c.l.b16 %v172
    %v676 = vunpack.c.h.b16 %v172
    %v677 = vunpack.c.l.b16 %v173
    %v678 = vunpack.c.h.b16 %v173
    %v679 = vunpack.c.l.b16 %v174
    %v680 = vunpack.c.h.b16 %v174
    %v681 = vunpack.c.l.b16 %v175
    %v682 = vunpack.c.h.b16 %v175
    %v683 = vunpack.c.l.b16 %v176
    %v684 = vunpack.c.h.b16 %v176
    %v685 = vunpack.c.l.b16 %v177
    %v686 = vunpack.c.h.b16 %v177
    %v687 = vunpack.c.l.b16 %v178
    %v688 = vunpack.c.h.b16 %v178
    %v689 = vunpack.c.l.b16 %v179
    %v690 = vunpack.c.h.b16 %v179
    %v691 = vunpack.c.l.b16 %v180
    %v692 = vunpack.c.h.b16 %v180
    %v693 = vunpack.c.l.b16 %v181
    %v694 = vunpack.c.h.b16 %v181
    %v695 = vunpack.c.l.b16 %v182
    %v696 = vunpack.c.h.b16 %v182
    %v697 = vunpack.c.l.b16 %v183
    %v698 = vunpack.c.h.b16 %v183
    %v699 = vunpack.c.l.b16 %v184
    %v700 = vunpack.c.h.b16 %v184
    %v701 = vunpack.c.l.b16 %v185
    %v702 = vunpack.c.h.b16 %v185
    %v703 = vunpack.c.l.b16 %v186
    %v704 = vunpack.c.h.b16 %v186
    %v705 = vunpack.c.l.b16 %v187
    %v706 = vunpack.c.h.b16 %v187
    %v707 = vunpack.c.l.b16 %v188
    %v708 = vunpack.c.h.b16 %v188
    %v709 = vunpack.c.l.b16 %v189
    %v710 = vunpack.c.h.b16 %v189
    %v711 = vunpack.c.l.b16 %v190
    %v712 = vunpack.c.h.b16 %v190
    %v713 = vunpack.c.l.b16 %v191
    %v714 = vunpack.c.h.b16 %v191
    %v715 = vunpack.c.l.b16 %v192
    %v716 = vunpack.c.h.b16 %v192
    %v717 = vunpack.c.l.b16 %v193
    %v718 = vunpack.c.h.b16 %v193
    %v719 = vunpack.c.l.b16 %v194
    %v720 = vunpack.c.h.b16 %v194
    %v721 = vunpack.c.l.b16 %v195
    %v722 = vunpack.c.h.b16 %v195
    %v723 = vunpack.c.l.b16 %v196
    %v724 = vunpack.c.h.b16 %v196
    %v725 = vunpack.c.l.b16 %v197
    %v726 = vunpack.c.h.b16 %v197
    %v727 = vunpack.c.l.b16 %v198
    %v728 = vunpack.c.h.b16 %v198
    %v729 = vunpack.c.l.b16 %v199
    %v730 = vunpack.c.h.b16 %v199
    %v731 = vunpack.c.l.b16 %v200
    %v732 = vunpack.c.h.b16 %v200
    %v733 = vunpack.c.l.b16 %v201
    %v734 = vunpack.c.h.b16 %v201
    %v735 = vunpack.c.l.b16 %v202
    %v736 = vunpack.c.h.b16 %v202
    %v737 = vunpack.c.l.b16 %v203
    %v738 = vunpack.c.h.b16 %v203
    %v739 = vunpack.c.l.b16 %v204
    %v740 = vunpack.c.h.b16 %v204
    %v741 = vunpack.c.l.b16 %v205
    %v742 = vunpack.c.h.b16 %v205
    %v743 = vunpack.c.l.b16 %v206
    %v744 = vunpack.c.h.b16 %v206
    %v745 = vunpack.c.l.b16 %v207
    %v746 = vunpack.c.h.b16 %v207
    %v747 = vunpack.c.l.b16 %v208
    %v748 = vunpack.c.h.b16 %v208
    %v749 = vunpack.c.l.b16 %v209
    %v750 = vunpack.c.h.b16 %v209
    %v751 = vunpack.c.l.b16 %v210
    %v752 = vunpack.c.h.b16 %v210
    %v753 = vunpack.c.l.b16 %v211
    %v754 = vunpack.c.h.b16 %v211
    %v755 = vunpack.c.l.b16 %v212
    %v756 = vunpack.c.h.b16 %v212
    %v757 = vunpack.c.l.b16 %v213
    %v758 = vunpack.c.h.b16 %v213
    %v759 = vunpack.c.l.b16 %v214
    %v760 = vunpack.c.h.b16 %v214
    %v761 = vunpack.c.l.b16 %v215
    %v762 = vunpack.c.h.b16 %v215
    %v763 = vunpack.c.l.b16 %v216
    %v764 = vunpack.c.h.b16 %v216
    %v765 = vunpack.c.l.b16 %v217
    %v766 = vunpack.c.h.b16 %v217
    %v767 = vunpack.c.l.b16 %v218
    %v768 = vunpack.c.h.b16 %v218
    %v769 = vunpack.c.l.b16 %v219
    %v770 = vunpack.c.h.b16 %v219
    %v771 = vunpack.c.l.b16 %v220
    %v772 = vunpack.c.h.b16 %v220
    %v773 = vunpack.c.l.b16 %v221
    %v774 = vunpack.c.h.b16 %v221
    %v775 = vunpack.c.l.b16 %v222
    %v776 = vunpack.c.h.b16 %v222
    %v777 = vunpack.c.l.b16 %v223
    %v778 = vunpack.c.h.b16 %v223
    %v779 = vunpack.c.l.b16 %v224
    %v780 = vunpack.c.h.b16 %v224
    %v781 = vunpack.c.l.b16 %v225
    %v782 = vunpack.c.h.b16 %v225
    %v783 = vunpack.c.l.b16 %v226
    %v784 = vunpack.c.h.b16 %v226
    %v785 = vunpack.c.l.b16 %v227
    %v786 = vunpack.c.h.b16 %v227
    %v787 = vunpack.c.l.b16 %v228
    %v788 = vunpack.c.h.b16 %v228
    %v789 = vunpack.c.l.b16 %v229
    %v790 = vunpack.c.h.b16 %v229
    %v791 = vunpack.c.l.b16 %v230
    %v792 = vunpack.c.h.b16 %v230
    %v793 = vunpack.c.l.b16 %v231
    %v794 = vunpack.c.h.b16 %v231
    %v795 = vunpack.c.l.b16 %v232
    %v796 = vunpack.c.h.b16 %v232
    %v797 = vunpack.c.l.b16 %v233
    %v798 = vunpack.c.h.b16 %v233
    %v799 = vunpack.c.l.b16 %v234
    %v800 = vunpack.c.h.b16 %v234
    %v801 = vunpack.c.l.b16 %v235
    %v802 = vunpack.c.h.b16 %v235
    %v803 = vunpack.c.l.b16 %v236
    %v804 = vunpack.c.h.b16 %v236
    %v805 = vunpack.c.l.b16 %v237
    %v806 = vunpack.c.h.b16 %v237
    %v807 = vunpack.c.l.b16 %v238
    %v808 = vunpack.c.h.b16 %v238
    %v809 = vunpack.c.l.b16 %v239
    %v810 = vunpack.c.h.b16 %v239
    %v811 = vunpack.c.l.b16 %v240
    %v812 = vunpack.c.h.b16 %v240
    %v813 = vunpack.c.l.b16 %v241
    %v814 = vunpack.c.h.b16 %v241
    %v815 = vunpack.c.l.b16 %v242
    %v816 = vunpack.c.h.b16 %v242
    %v817 = vunpack.c.l.b16 %v243
    %v818 = vunpack.c.h.b16 %v243
    %v819 = vunpack.c.l.b16 %v244
    %v820 = vunpack.c.h.b16 %v244
    %v821 = vunpack.c.l.b16 %v245
    %v822 = vunpack.c.h.b16 %v245
    %v823 = vunpack.c.l.b16 %v246
    %v824 = vunpack.c.h.b16 %v246
    %v825 = vunpack.c.l.b16 %v247
    %v826 = vunpack.c.h.b16 %v247
    %v827 = vunpack.c.l.b16 %v248
    %v828 = vunpack.c.h.b16 %v248
    %v829 = vunpack.c.l.b16 %v249
    %v830 = vunpack.c.h.b16 %v249
    %v831 = vunpack.c.l.b16 %v250
    %v832 = vunpack.c.h.b16 %v250
    %v833 = vunpack.c.l.b16 %v251
    %v834 = vunpack.c.h.b16 %v251
    %v835 = vunpack.c.l.b16 %v252
    %v836 = vunpack.c.h.b16 %v252
    %v837 = vunpack.c.l.b16 %v253
    %v838 = vunpack.c.h.b16 %v253
    %v839 = vunpack.c.l.b16 %v254
    %v840 = vunpack.c.h.b16 %v254
    %v841 = vunpack.c.l.b16 %v255
    %v842 = vunpack.c.h.b16 %v255
    %v843 = vunpack.c.l.b16 %v256
    %v844 = vunpack.c.h.b16 %v256
    %v845 = vunpack.c.l.b16 %v257
    %v846 = vunpack.c.h.b16 %v257
    %v847 = vunpack.c.l.b16 %v258
    %v848 = vunpack.c.h.b16 %v258
    %v849 = vunpack.c.l.b16 %v259
    %v850 = vunpack.c.h.b16 %v259
    %v851 = vunpack.c.l.b16 %v260
    %v852 = vunpack.c.h.b16 %v260
    %v853 = vunpack.c.l.b16 %v261
    %v854 = vunpack.c.h.b16 %v261
    %v855 = vunpack.c.l.b16 %v262
    %v856 = vunpack.c.h.b16 %v262
    %v857 = vunpack.c.l.b16 %v263
    %v858 = vunpack.c.h.b16 %v263
    %v859 = vunpack.c.l.b16 %v264
    %v860 = vunpack.c.h.b16 %v264
    %v861 = vunpack.c.l.b16 %v265
    %v862 = vunpack.c.h.b16 %v265
    %v863 = vunpack.c.l.b16 %v266
    %v864 = vunpack.c.h.b16 %v266
    %v865 = vunpack.c.l.b16 %v267
    %v866 = vunpack.c.h.b16 %v267
    %v867 = vunpack.c.l.b16 %v268
    %v868 = vunpack.c.h.b16 %v268
    %v869 = vunpack.c.l.b16 %v269
    %v870 = vunpack.c.h.b16 %v269
    %v871 = vunpack.c.l.b16 %v270
    %v872 = vunpack.c.h.b16 %v270
    %v873 = vunpack.c.l.b16 %v271
    %v874 = vunpack.c.h.b16 %v271
    %v875 = vunpack.c.l.b16 %v272
    %v876 = vunpack.c.h.b16 %v272
    %v877 = vunpack.c.l.b16 %v273
    %v878 = vunpack.c.h.b16 %v273
    %v879 = vunpack.c.l.b16 %v274
    %v880 = vunpack.c.h.b16 %v274
    %v881 = vunpack.c.l.b16 %v275
    %v882 = vunpack.c.h.b16 %v275
    %v883 = vunpack.c.l.b16 %v276
    %v884 = vunpack.c.h.b16 %v276
    %v885 = vunpack.c.l.b16 %v277
    %v886 = vunpack.c.h.b16 %v277
    %v887 = vunpack.c.l.b16 %v278
    %v888 = vunpack.c.h.b16 %v278
    %v889 = vunpack.c.l.b16 %v279
    %v890 = vunpack.c.h.b16 %v279
    %v891 = vunpack.c.l.b16 %v280
    %v892 = vunpack.c.h.b16 %v280
    %v893 = vunpack.c.l.b16 %v281
    %v894 = vunpack.c.h.b16 %v281
    %v895 = vunpack.c.l.b16 %v282
    %v896 = vunpack.c.h.b16 %v282
    %v897 = vunpack.c.l.b16 %v283
    %v898 = vunpack.c.h.b16 %v283
    %v899 = vunpack.c.l.b16 %v284
    %v900 = vunpack.c.h.b16 %v284
    %v901 = vunpack.c.l.b16 %v285
    %v902 = vunpack.c.h.b16 %v285
    %v903 = vunpack.c.l.b16 %v286
    %v904 = vunpack.c.h.b16 %v286
    %v905 = vunpack.c.l.b16 %v287
    %v906 = vunpack.c.h.b16 %v287
    %v907 = vunpack.c.l.b16 %v288
    %v908 = vunpack.c.h.b16 %v288
    %v909 = vunpack.c.l.b16 %v289
    %v910 = vunpack.c.h.b16 %v289
    %v911 = vunpack.c.l.b16 %v290
    %v912 = vunpack.c.h.b16 %v290
    %v913 = vunpack.c.l.b16 %v291
    %v914 = vunpack.c.h.b16 %v291
    %v915 = vunpack.c.l.b16 %v292
    %v916 = vunpack.c.h.b16 %v292
    %v917 = vunpack.c.l.b16 %v293
    %v918 = vunpack.c.h.b16 %v293
    %v919 = vunpack.c.l.b16 %v294
    %v920 = vunpack.c.h.b16 %v294
    %v921 = vunpack.c.l.b16 %v295
    %v922 = vunpack.c.h.b16 %v295
    %v923 = vunpack.c.l.b16 %v296
    %v924 = vunpack.c.h.b16 %v296
    %v925 = vunpack.c.l.b16 %v297
    %v926 = vunpack.c.h.b16 %v297
    %v927 = vunpack.c.l.b16 %v298
    %v928 = vunpack.c.h.b16 %v298
    %v929 = vunpack.c.l.b16 %v299
    %v930 = vunpack.c.h.b16 %v299
    %v931 = vunpack.c.l.b16 %v300
    %v932 = vunpack.c.h.b16 %v300
    %v933 = vunpack.c.l.b16 %v301
    %v934 = vunpack.c.h.b16 %v301
    %v935 = vunpack.c.l.b16 %v302
    %v936 = vunpack.c.h.b16 %v302
    %v937 = vunpack.c.l.b16 %v303
    %v938 = vunpack.c.h.b16 %v303
    %v939 = vunpack.c.l.b16 %v304
    %v940 = vunpack.c.h.b16 %v304
    %v941 = vunpack.c.l.b16 %v305
    %v942 = vunpack.c.h.b16 %v305
    %v943 = vunpack.c.l.b16 %v306
    %v944 = vunpack.c.h.b16 %v306
    %v945 = vunpack.c.l.b16 %v307
    %v946 = vunpack.c.h.b16 %v307
    %v947 = vunpack.c.l.b16 %v308
    %v948 = vunpack.c.h.b16 %v308
    %v949 = vunpack.c.l.b16 %v309
    %v950 = vunpack.c.h.b16 %v309
    %v951 = vunpack.c.l.b16 %v310
    %v952 = vunpack.c.h.b16 %v310
    %v953 = vunpack.c.l.b16 %v311
    %v954 = vunpack.c.h.b16 %v311
    %v955 = vunpack.c.l.b16 %v312
    %v956 = vunpack.c.h.b16 %v312
    %v957 = vunpack.c.l.b16 %v313
    %v958 = vunpack.c.h.b16 %v313
    %v959 = vunpack.c.l.b16 %v314
    %v960 = vunpack.c.h.b16 %v314
    %v961 = vunpack.c.l.b16 %v315
    %v962 = vunpack.c.h.b16 %v315
    %v963 = vunpack.c.l.b16 %v316
    %v964 = vunpack.c.h.b16 %v316
    %v965 = vunpack.c.l.b16 %v317
    %v966 = vunpack.c.h.b16 %v317
    %v967 = vunpack.c.l.b16 %v318
    %v968 = vunpack.c.h.b16 %v318
    %v969 = vunpack.c.l.b16 %v319
    %v970 = vunpack.c.h.b16 %v319
    %v971 = vunpack.c.l.b16 %v320
    %v972 = vunpack.c.h.b16 %v320
    %v973 = vunpack.c.l.b16 %v321
    %v974 = vunpack.c.h.b16 %v321
    %v975 = vunpack.c.l.b16 %v322
    %v976 = vunpack.c.h.b16 %v322
    %v977 = vunpack.c.l.b16 %v323
    %v978 = vunpack.c.h.b16 %v323
    %v979 = vunpack.c.l.b16 %v324
    %v980 = vunpack.c.h.b16 %v324
    %v981 = vunpack.c.l.b16 %v325
    %v982 = vunpack.c.h.b16 %v325
    %v983 = vunpack.c.l.b16 %v326
    %v984 = vunpack.c.h.b16 %v326
    %v985 = vunpack.c.l.b16 %v327
    %v986 = vunpack.c.h.b16 %v327
    %v987 = vunpack.c.l.b16 %v328
    %v988 = vunpack.c.h.b16 %v328
    %v989 = vunpack.c.l.b16 %v329
    %v990 = vunpack.c.h.b16 %v329
    %v991 = vunpack.c.l.b16 %v330
    %v992 = vunpack.c.h.b16 %v330
    %v993 = vunpack.c.l.b16 %v331
    %v994 = vunpack.c.h.b16 %v331
    %v995 = vunpack.c.l.b16 %v332
    %v996 = vunpack.c.h.b16 %v332
    %v997 = vunpack.c.l.b16 %v333
    %v998 = vunpack.c.h.b16 %v333
    %v999 = vunpack.c.l.b16 %v334
    %v1000 = vunpack.c.h.b16 %v334
    %v1001 = vunpack.c.l.b16 %v335
    %v1002 = vunpack.c.h.b16 %v335
    %v1003 = vunpack.c.l.b16 %v336
    %v1004 = vunpack.c.h.b16 %v336
    %v1005 = vunpack.c.l.b16 %v337
    %v1006 = vunpack.c.h.b16 %v337
    %v1007 = vunpack.c.l.b16 %v338
    %v1008 = vunpack.c.h.b16 %v338
    %v1009 = vunpack.c.l.b16 %v339
    %v1010 = vunpack.c.h.b16 %v339
    %v1011 = vunpack.c.l.b16 %v340
    %v1012 = vunpack.c.h.b16 %v340
    %v1013 = vunpack.c.l.b16 %v341
    %v1014 = vunpack.c.h.b16 %v341
    %v1015 = vunpack.c.l.b16 %v342
    %v1016 = vunpack.c.h.b16 %v342
    %v1017 = vunpack.c.l.b16 %v343
    %v1018 = vunpack.c.h.b16 %v343
    %v1019 = vunpack.c.l.b16 %v344
    %v1020 = vunpack.c.h.b16 %v344
    %v1021 = vunpack.c.l.b16 %v345
    %v1022 = vunpack.c.h.b16 %v345
    %v1023 = vunpack.c.l.b16 %v346
    %v1024 = vunpack.c.h.b16 %v346
    %v1025 = vunpack.c.l.b16 %v347
    %v1026 = vunpack.c.h.b16 %v347
    %v1027 = vunpack.c.l.b16 %v348
    %v1028 = vunpack.c.h.b16 %v348
    %v1029 = vunpack.c.l.b16 %v349
    %v1030 = vunpack.c.h.b16 %v349
    %v1031 = vunpack.c.l.b16 %v350
    %v1032 = vunpack.c.h.b16 %v350
    %v1033 = vpack.c.b16 %v589, %v585
    %v1034 = vpack.c.b16 %v590, %v586
    %v1035 = vpack.c.b16 %v591, %v587
    %v1036 = vpack.c.b16 %v592, %v588
    %v1037 = vpack.c.b16 %v597, %v593
    %v1038 = vpack.c.b16 %v598, %v594
    %v1039 = vpack.c.b16 %v599, %v595
    %v1040 = vpack.c.b16 %v600, %v596
    %v1041 = vpack.c.b16 %v605, %v601
    %v1042 = vpack.c.b16 %v606, %v602
    %v1043 = vpack.c.b16 %v607, %v603
    %v1044 = vpack.c.b16 %v608, %v604
    %v1045 = vpack.c.b16 %v613, %v609
    %v1046 = vpack.c.b16 %v614, %v610
    %v1047 = vpack.c.b16 %v615, %v611
    %v1048 = vpack.c.b16 %v616, %v612
    %v1049 = vpack.c.b16 %v621, %v617
    %v1050 = vpack.c.b16 %v622, %v618
    %v1051 = vpack.c.b16 %v623, %v619
    %v1052 = vpack.c.b16 %v624, %v620
    %v1053 = vpack.c.b16 %v629, %v625
    %v1054 = vpack.c.b16 %v630, %v626
    %v1055 = vpack.c.b16 %v631, %v627
    %v1056 = vpack.c.b16 %v632, %v628
    %v1057 = vpack.c.b16 %v637, %v633
    %v1058 = vpack.c.b16 %v638, %v634
    %v1059 = vpack.c.b16 %v639, %v635
    %v1060 = vpack.c.b16 %v640, %v636
    %v1061 = vpack.c.b16 %v645, %v641
    %v1062 = vpack.c.b16 %v646, %v642
    %v1063 = vpack.c.b16 %v647, %v643
    %v1064 = vpack.c.b16 %v648, %v644
    %v1065 = vpack.c.b16 %v653, %v649
    %v1066 = vpack.c.b16 %v654, %v650
    %v1067 = vpack.c.b16 %v655, %v651
    %v1068 = vpack.c.b16 %v656, %v652
    %v1069 = vpack.c.b16 %v661, %v657
    %v1070 = vpack.c.b16 %v662, %v658
    %v1071 = vpack.c.b16 %v663, %v659
    %v1072 = vpack.c.b16 %v664, %v660
    %v1073 = vpack.c.b16 %v669, %v665
    %v1074 = vpack.c.b16 %v670, %v666
    %v1075 = vpack.c.b16 %v671, %v667
    %v1076 = vpack.c.b16 %v672, %v668
    %v1077 = vpack.c.b16 %v677, %v673
    %v1078 = vpack.c.b16 %v678, %v674
    %v1079 = vpack.c.b16 %v679, %v675
    %v1080 = vpack.c.b16 %v680, %v676
    %v1081 = vpack.c.b16 %v685, %v681
    %v1082 = vpack.c.b16 %v686, %v682
    %v1083 = vpack.c.b16 %v687, %v683
    %v1084 = vpack.c.b16 %v688, %v684
    %v1085 = vpack.c.b16 %v693, %v689
    %v1086 = vpack.c.b16 %v694, %v690
    %v1087 = vpack.c.b16 %v695, %v691
    %v1088 = vpack.c.b16 %v696, %v692
    %v1089 = vpack.c.b16 %v701, %v697
    %v1090 = vpack.c.b16 %v702, %v698
    %v1091 = vpack.c.b16 %v703, %v699
    %v1092 = vpack.c.b16 %v704, %v700
    %v1093 = vpack.c.b16 %v709, %v705
    %v1094 = vpack.c.b16 %v710, %v706
    %v1095 = vpack.c.b16 %v711, %v707
    %v1096 = vpack.c.b16 %v712, %v708
    %v1097 = vpack.c.b16 %v717, %v713
    %v1098 = vpack.c.b16 %v718, %v714
    %v1099 = vpack.c.b16 %v719, %v715
    %v1100 = vpack.c.b16 %v720, %v716
    %v1101 = vpack.c.b16 %v725, %v721
    %v1102 = vpack.c.b16 %v726, %v722
    %v1103 = vpack.c.b16 %v727, %v723
    %v1104 = vpack.c.b16 %v728, %v724
    %v1105 = vpack.c.b16 %v733, %v729
    %v1106 = vpack.c.b16 %v734, %v730
    %v1107 = vpack.c.b16 %v735, %v731
    %v1108 = vpack.c.b16 %v736, %v732
    %v1109 = vpack.c.b16 %v741, %v737
    %v1110 = vpack.c.b16 %v742, %v738
    %v1111 = vpack.c.b16 %v743, %v739
    %v1112 = vpack.c.b16 %v744, %v740
    %v1113 = vpack.c.b16 %v749, %v745
    %v1114 = vpack.c.b16 %v750, %v746
    %v1115 = vpack.c.b16 %v751, %v747
    %v1116 = vpack.c.b16 %v752, %v748
    %v1117 = vpack.c.b16 %v757, %v753
    %v1118 = vpack.c.b16 %v758, %v754
    %v1119 = vpack.c.b16 %v759, %v755
    %v1120 = vpack.c.b16 %v760, %v756
    %v1121 = vpack.c.b16 %v765, %v761
    %v1122 = vpack.c.b16 %v766, %v762
    %v1123 = vpack.c.b16 %v767, %v763
    %v1124 = vpack.c.b16 %v768, %v764
    %v1125 = vpack.c.b16 %v773, %v769
    %v1126 = vpack.c.b16 %v774, %v770
    %v1127 = vpack.c.b16 %v775, %v771
    %v1128 = vpack.c.b16 %v776, %v772
    %v1129 = vpack.c.b16 %v781, %v777
    %v1130 = vpack.c.b16 %v782, %v778
    %v1131 = vpack.c.b16 %v783, %v779
    %v1132 = vpack.c.b16 %v784, %v780
    %v1133 = vpack.c.b16 %v789, %v785
    %v1134 = vpack.c.b16 %v790, %v786
    %v1135 = vpack.c.b16 %v791, %v787
    %v1136 = vpack.c.b16 %v792, %v788
    %v1137 = vpack.c.b16 %v797, %v793
    %v1138 = vpack.c.b16 %v798, %v794
    %v1139 = vpack.c.b16 %v799, %v795
    %v1140 = vpack.c.b16 %v800, %v796
    %v1141 = vpack.c.b16 %v805, %v801
    %v1142 = vpack.c.b16 %v806, %v802
    %v1143 = vpack.c.b16 %v807, %v803
    %v1144 = vpack.c.b16 %v808, %v804
    %v1145 = vpack.c.b16 %v813, %v809
    %v1146 = vpack.c.b16 %v814, %v810
    %v1147 = vpack.c.b16 %v815, %v811
    %v1148 = vpack.c.b16 %v816, %v812
    %v1149 = vpack.c.b16 %v821, %v817
    %v1150 = vpack.c.b16 %v822, %v818
    %v1151 = vpack.c.b16 %v823, %v819
    %v1152 = vpack.c.b16 %v824, %v820
    %v1153 = vpack.c.b16 %v829, %v825
    %v1154 = vpack.c.b16 %v830, %v826
    %v1155 = vpack.c.b16 %v831, %v827
    %v1156 = vpack.c.b16 %v832, %v828
    %v1157 = vpack.c.b16 %v837, %v833
    %v1158 = vpack.c.b16 %v838, %v834
    %v1159 = vpack.c.b16 %v839, %v835
    %v1160 = vpack.c.b16 %v840, %v836
    %v1161 = vpack.c.b16 %v845, %v841
    %v1162 = vpack.c.b16 %v846, %v842
    %v1163 = vpack.c.b16 %v847, %v843
    %v1164 = vpack.c.b16 %v848, %v844
    %v1165 = vpack.c.b16 %v853, %v849
    %v1166 = vpack.c.b16 %v854, %v850
    %v1167 = vpack.c.b16 %v855, %v851
    %v1168 = vpack.c.b16 %v856, %v852
    %v1169 = vpack.c.b16 %v861, %v857
    %v1170 = vpack.c.b16 %v862, %v858
    %v1171 = vpack.c.b16 %v863, %v859
    %v1172 = vpack.c.b16 %v864, %v860
    %v1173 = vpack.c.b16 %v869, %v865
    %v1174 = vpack.c.b16 %v870, %v866
    %v1175 = vpack.c.b16 %v871, %v867
    %v1176 = vpack.c.b16 %v872, %v868
    %v1177 = vpack.c.b16 %v877, %v873
    %v1178 = vpack.c.b16 %v878, %v874
    %v1179 = vpack.c.b16 %v879, %v875
    %v1180 = vpack.c.b16 %v880, %v876
    %v1181 = vpack.c.b16 %v885, %v881
    %v1182 = vpack.c.b16 %v886, %v882
    %v1183 = vpack.c.b16 %v887, %v883
    %v1184 = vpack.c.b16 %v888, %v884
    %v1185 = vpack.c.b16 %v893, %v889
    %v1186 = vpack.c.b16 %v894, %v890
    %v1187 = vpack.c.b16 %v895, %v891
    %v1188 = vpack.c.b16 %v896, %v892
    %v1189 = vpack.c.b16 %v901, %v897
    %v1190 = vpack.c.b16 %v902, %v898
    %v1191 = vpack.c.b16 %v903, %v899
    %v1192 = vpack.c.b16 %v904, %v900
    %v1193 = vpack.c.b16 %v909, %v905
    %v1194 = vpack.c.b16 %v910, %v906
    %v1195 = vpack.c.b16 %v911, %v907
    %v1196 = vpack.c.b16 %v912, %v908
    %v1197 = vpack.c.b16 %v917, %v913
    %v1198 = vpack.c.b16 %v918, %v914
    %v1199 = vpack.c.b16 %v919, %v915
    %v1200 = vpack.c.b16 %v920, %v916
    %v1201 = vpack.c.b16 %v925, %v921
    %v1202 = vpack.c.b16 %v926, %v922
    %v1203 = vpack.c.b16 %v927, %v923
    %v1204 = vpack.c.b16 %v928, %v924
    %v1205 = vpack.c.b16 %v933, %v929
    %v1206 = vpack.c.b16 %v934, %v930
    %v1207 = vpack.c.b16 %v935, %v931
    %v1208 = vpack.c.b16 %v936, %v932
    %v1209 = vpack.c.b16 %v941, %v937
    %v1210 = vpack.c.b16 %v942, %v938
    %v1211 = vpack.c.b16 %v943, %v939
    %v1212 = vpack.c.b16 %v944, %v940
    %v1213 = vpack.c.b16 %v949, %v945
    %v1214 = vpack.c.b16 %v950, %v946
    %v1215 = vpack.c.b16 %v951, %v947
    %v1216 = vpack.c.b16 %v952, %v948
    %v1217 = vpack.c.b16 %v957, %v953
    %v1218 = vpack.c.b16 %v958, %v954
    %v1219 = vpack.c.b16 %v959, %v955
    %v1220 = vpack.c.b16 %v960, %v956
    %v1221 = vpack.c.b16 %v965, %v961
    %v1222 = vpack.c.b16 %v966, %v962
    %v1223 = vpack.c.b16 %v967, %v963
    %v1224 = vpack.c.b16 %v968, %v964
    %v1225 = vpack.c.b16 %v973, %v969
    %v1226 = vpack.c.b16 %v974, %v970
    %v1227 = vpack.c.b16 %v975, %v971
    %v1228 = vpack.c.b16 %v976, %v972
    %v1229 = vpack.c.b16 %v981, %v977
    %v1230 = vpack.c.b16 %v982, %v978
    %v1231 = vpack.c.b16 %v983, %v979
    %v1232 = vpack.c.b16 %v984, %v980
    %v1233 = vpack.c.b16 %v989, %v985
    %v1234 = vpack.c.b16 %v990, %v986
    %v1235 = vpack.c.b16 %v991, %v987
    %v1236 = vpack.c.b16 %v992, %v988
    %v1237 = vpack.c.b16 %v997, %v993
    %v1238 = vpack.c.b16 %v998, %v994
    %v1239 = vpack.c.b16 %v999, %v995
    %v1240 = vpack.c.b16 %v1000, %v996
    %v1241 = vpack.c.b16 %v1005, %v1001
    %v1242 = vpack.c.b16 %v1006, %v1002
    %v1243 = vpack.c.b16 %v1007, %v1003
    %v1244 = vpack.c.b16 %v1008, %v1004
    %v1245 = vpack.c.b16 %v1013, %v1009
    %v1246 = vpack.c.b16 %v1014, %v1010
    %v1247 = vpack.c.b16 %v1015, %v1011
    %v1248 = vpack.c.b16 %v1016, %v1012
    %v1249 = vpack.c.b16 %v1021, %v1017
    %v1250 = vpack.c.b16 %v1022, %v1018
    %v1251 = vpack.c.b16 %v1023, %v1019
    %v1252 = vpack.c.b16 %v1024, %v1020
    %v1253 = vpack.c.b16 %v1029, %v1025
    %v1254 = vpack.c.b16 %v1030, %v1026
    %v1255 = vpack.c.b16 %v1031, %v1027
    %v1256 = vpack.c.b16 %v1032, %v1028
    %1481 = vmatpush.bf16.msra.mxu0 %v1061
    %1482 = vmatpush.bf16.msra.mxu0 %v1057
    %1483 = vmatpush.bf16.msra.mxu0 %v1053
    %1484 = vmatpush.bf16.msra.mxu0 %v1049
    %1485 = vmatpush.bf16.msra.mxu0 %v1045
    %1486 = vmatpush.bf16.msra.mxu0 %v1041
    %1487 = vmatpush.bf16.msra.mxu0 %v1037
    %1488 = vmatpush.bf16.msra.mxu0 %v1033
    %1489 = vmatmul.bf16.gmra.mxu0 %v120
    %v1490 = vpop.f32.mrf.mxu0
    %v1491 = vadd.f32 %v353, %v1490
    %v1492 = vpop.f32.mrf.mxu0
    %1493 = vdwg.mxu0
    %1494 = vmatpush.bf16.msra.mxu0 %v1093
    %1495 = vmatpush.bf16.msra.mxu0 %v1089
    %1496 = vmatpush.bf16.msra.mxu0 %v1085
    %1497 = vmatpush.bf16.msra.mxu0 %v1081
    %1498 = vmatpush.bf16.msra.mxu0 %v1077
    %1499 = vmatpush.bf16.msra.mxu0 %v1073
    %1500 = vmatpush.bf16.msra.mxu0 %v1069
    %1501 = vmatpush.bf16.msra.mxu0 %v1065
    %1502 = vmatmul.bf16.gmra.mxu0 %v121
    %v1503 = vpop.f32.mrf.mxu0
    %v1504 = vadd.f32 %v1491, %v1503
    %v1505 = vpop.f32.mrf.mxu0
    %1506 = vdwg.mxu0
    %1507 = vmatpush.bf16.msra.mxu0 %v1125
    %1508 = vmatpush.bf16.msra.mxu0 %v1121
    %1509 = vmatpush.bf16.msra.mxu0 %v1117
    %1510 = vmatpush.bf16.msra.mxu0 %v1113
    %1511 = vmatpush.bf16.msra.mxu0 %v1109
    %1512 = vmatpush.bf16.msra.mxu0 %v1105
    %1513 = vmatpush.bf16.msra.mxu0 %v1101
    %1514 = vmatpush.bf16.msra.mxu0 %v1097
    %1515 = vmatmul.bf16.gmra.mxu0 %v122
    %v1516 = vpop.f32.mrf.mxu0
    %v1517 = vadd.f32 %v1504, %v1516
    %v1518 = vpop.f32.mrf.mxu0
    %1519 = vdwg.mxu0
    %1520 = vmatpush.bf16.msra.mxu0 %v1157
    %1521 = vmatpush.bf16.msra.mxu0 %v1153
    %1522 = vmatpush.bf16.msra.mxu0 %v1149
    %1523 = vmatpush.bf16.msra.mxu0 %v1145
    %1524 = vmatpush.bf16.msra.mxu0 %v1141
    %1525 = vmatpush.bf16.msra.mxu0 %v1137
    %1526 = vmatpush.bf16.msra.mxu0 %v1133
    %1527 = vmatpush.bf16.msra.mxu0 %v1129
    %1528 = vmatmul.bf16.gmra.mxu0 %v123
    %v1529 = vpop.f32.mrf.mxu0
    %v1530 = vadd.f32 %v1517, %v1529
    %v1531 = vpop.f32.mrf.mxu0
    %1532 = vdwg.mxu0
    %1533 = vmatpush.bf16.msra.mxu0 %v1189
    %1534 = vmatpush.bf16.msra.mxu0 %v1185
    %1535 = vmatpush.bf16.msra.mxu0 %v1181
    %1536 = vmatpush.bf16.msra.mxu0 %v1177
    %1537 = vmatpush.bf16.msra.mxu0 %v1173
    %1538 = vmatpush.bf16.msra.mxu0 %v1169
    %1539 = vmatpush.bf16.msra.mxu0 %v1165
    %1540 = vmatpush.bf16.msra.mxu0 %v1161
    %1541 = vmatmul.bf16.gmra.mxu0 %v124
    %v1542 = vpop.f32.mrf.mxu0
    %v1543 = vadd.f32 %v1530, %v1542
    %v1544 = vpop.f32.mrf.mxu0
    %1545 = vdwg.mxu0
    %1546 = vmatpush.bf16.msra.mxu0 %v1221
    %1547 = vmatpush.bf16.msra.mxu0 %v1217
    %1548 = vmatpush.bf16.msra.mxu0 %v1213
    %1549 = vmatpush.bf16.msra.mxu0 %v1209
    %1550 = vmatpush.bf16.msra.mxu0 %v1205
    %1551 = vmatpush.bf16.msra.mxu0 %v1201
    %1552 = vmatpush.bf16.msra.mxu0 %v1197
    %1553 = vmatpush.bf16.msra.mxu0 %v1193
    %1554 = vmatmul.bf16.gmra.mxu0 %v125
    %v1555 = vpop.f32.mrf.mxu0
    %v1556 = vadd.f32 %v1543, %v1555
    %v1557 = vpop.f32.mrf.mxu0
    %1558 = vdwg.mxu0
    %1559 = vmatpush.bf16.msra.mxu0 %v1253
    %1560 = vmatpush.bf16.msra.mxu0 %v1249
    %1561 = vmatpush.bf16.msra.mxu0 %v1245
    %1562 = vmatpush.bf16.msra.mxu0 %v1241
    %1563 = vmatpush.bf16.msra.mxu0 %v1237
    %1564 = vmatpush.bf16.msra.mxu0 %v1233
    %1565 = vmatpush.bf16.msra.mxu0 %v1229
    %1566 = vmatpush.bf16.msra.mxu0 %v1225
    %1567 = vmatmul.bf16.gmra.mxu0 %v126
    %v1568 = vpop.f32.mrf.mxu0
    %v1569 = vadd.f32 %v1556, %v1568
    %v1570 = vpop.f32.mrf.mxu0
    %1571 = vdwg.mxu0
    %1572 = vmatpush.bf16.msra.mxu0 %v1062
    %1573 = vmatpush.bf16.msra.mxu0 %v1058
    %1574 = vmatpush.bf16.msra.mxu0 %v1054
    %1575 = vmatpush.bf16.msra.mxu0 %v1050
    %1576 = vmatpush.bf16.msra.mxu0 %v1046
    %1577 = vmatpush.bf16.msra.mxu0 %v1042
    %1578 = vmatpush.bf16.msra.mxu0 %v1038
    %1579 = vmatpush.bf16.msra.mxu0 %v1034
    %1580 = vmatmul.bf16.gmra.mxu0 %v120
    %v1581 = vpop.f32.mrf.mxu0
    %v1582 = vadd.f32 %v354, %v1581
    %v1583 = vpop.f32.mrf.mxu0
    %1584 = vdwg.mxu0
    %1585 = vmatpush.bf16.msra.mxu0 %v1094
    %1586 = vmatpush.bf16.msra.mxu0 %v1090
    %1587 = vmatpush.bf16.msra.mxu0 %v1086
    %1588 = vmatpush.bf16.msra.mxu0 %v1082
    %1589 = vmatpush.bf16.msra.mxu0 %v1078
    %1590 = vmatpush.bf16.msra.mxu0 %v1074
    %1591 = vmatpush.bf16.msra.mxu0 %v1070
    %1592 = vmatpush.bf16.msra.mxu0 %v1066
    %1593 = vmatmul.bf16.gmra.mxu0 %v121
    %v1594 = vpop.f32.mrf.mxu0
    %v1595 = vadd.f32 %v1582, %v1594
    %v1596 = vpop.f32.mrf.mxu0
    %1597 = vdwg.mxu0
    %1598 = vmatpush.bf16.msra.mxu0 %v1126
    %1599 = vmatpush.bf16.msra.mxu0 %v1122
    %1600 = vmatpush.bf16.msra.mxu0 %v1118
    %1601 = vmatpush.bf16.msra.mxu0 %v1114
    %1602 = vmatpush.bf16.msra.mxu0 %v1110
    %1603 = vmatpush.bf16.msra.mxu0 %v1106
    %1604 = vmatpush.bf16.msra.mxu0 %v1102
    %1605 = vmatpush.bf16.msra.mxu0 %v1098
    %1606 = vmatmul.bf16.gmra.mxu0 %v122
    %v1607 = vpop.f32.mrf.mxu0
    %v1608 = vadd.f32 %v1595, %v1607
    %v1609 = vpop.f32.mrf.mxu0
    %1610 = vdwg.mxu0
    %1611 = vmatpush.bf16.msra.mxu0 %v1158
    %1612 = vmatpush.bf16.msra.mxu0 %v1154
    %1613 = vmatpush.bf16.msra.mxu0 %v1150
    %1614 = vmatpush.bf16.msra.mxu0 %v1146
    %1615 = vmatpush.bf16.msra.mxu0 %v1142
    %1616 = vmatpush.bf16.msra.mxu0 %v1138
    %1617 = vmatpush.bf16.msra.mxu0 %v1134
    %1618 = vmatpush.bf16.msra.mxu0 %v1130
    %1619 = vmatmul.bf16.gmra.mxu0 %v123
    %v1620 = vpop.f32.mrf.mxu0
    %v1621 = vadd.f32 %v1608, %v1620
    %v1622 = vpop.f32.mrf.mxu0
    %1623 = vdwg.mxu0
    %1624 = vmatpush.bf16.msra.mxu0 %v1190
    %1625 = vmatpush.bf16.msra.mxu0 %v1186
    %1626 = vmatpush.bf16.msra.mxu0 %v1182
    %1627 = vmatpush.bf16.msra.mxu0 %v1178
    %1628 = vmatpush.bf16.msra.mxu0 %v1174
    %1629 = vmatpush.bf16.msra.mxu0 %v1170
    %1630 = vmatpush.bf16.msra.mxu0 %v1166
    %1631 = vmatpush.bf16.msra.mxu0 %v1162
    %1632 = vmatmul.bf16.gmra.mxu0 %v124
    %v1633 = vpop.f32.mrf.mxu0
    %v1634 = vadd.f32 %v1621, %v1633
    %v1635 = vpop.f32.mrf.mxu0
    %1636 = vdwg.mxu0
    %1637 = vmatpush.bf16.msra.mxu0 %v1222
    %1638 = vmatpush.bf16.msra.mxu0 %v1218
    %1639 = vmatpush.bf16.msra.mxu0 %v1214
    %1640 = vmatpush.bf16.msra.mxu0 %v1210
    %1641 = vmatpush.bf16.msra.mxu0 %v1206
    %1642 = vmatpush.bf16.msra.mxu0 %v1202
    %1643 = vmatpush.bf16.msra.mxu0 %v1198
    %1644 = vmatpush.bf16.msra.mxu0 %v1194
    %1645 = vmatmul.bf16.gmra.mxu0 %v125
    %v1646 = vpop.f32.mrf.mxu0
    %v1647 = vadd.f32 %v1634, %v1646
    %v1648 = vpop.f32.mrf.mxu0
    %1649 = vdwg.mxu0
    %1650 = vmatpush.bf16.msra.mxu0 %v1254
    %1651 = vmatpush.bf16.msra.mxu0 %v1250
    %1652 = vmatpush.bf16.msra.mxu0 %v1246
    %1653 = vmatpush.bf16.msra.mxu0 %v1242
    %1654 = vmatpush.bf16.msra.mxu0 %v1238
    %1655 = vmatpush.bf16.msra.mxu0 %v1234
    %1656 = vmatpush.bf16.msra.mxu0 %v1230
    %1657 = vmatpush.bf16.msra.mxu0 %v1226
    %1658 = vmatmul.bf16.gmra.mxu0 %v126
    %v1659 = vpop.f32.mrf.mxu0
    %v1660 = vadd.f32 %v1647, %v1659
    %v1661 = vpop.f32.mrf.mxu0
    %1662 = vdwg.mxu0
    %1663 = vmatpush.bf16.msra.mxu0 %v1063
    %1664 = vmatpush.bf16.msra.mxu0 %v1059
    %1665 = vmatpush.bf16.msra.mxu0 %v1055
    %1666 = vmatpush.bf16.msra.mxu0 %v1051
    %1667 = vmatpush.bf16.msra.mxu0 %v1047
    %1668 = vmatpush.bf16.msra.mxu0 %v1043
    %1669 = vmatpush.bf16.msra.mxu0 %v1039
    %1670 = vmatpush.bf16.msra.mxu0 %v1035
    %1671 = vmatmul.bf16.gmra.mxu0 %v120
    %v1672 = vpop.f32.mrf.mxu0
    %v1673 = vadd.f32 %v355, %v1672
    %v1674 = vpop.f32.mrf.mxu0
    %1675 = vdwg.mxu0
    %1676 = vmatpush.bf16.msra.mxu0 %v1095
    %1677 = vmatpush.bf16.msra.mxu0 %v1091
    %1678 = vmatpush.bf16.msra.mxu0 %v1087
    %1679 = vmatpush.bf16.msra.mxu0 %v1083
    %1680 = vmatpush.bf16.msra.mxu0 %v1079
    %1681 = vmatpush.bf16.msra.mxu0 %v1075
    %1682 = vmatpush.bf16.msra.mxu0 %v1071
    %1683 = vmatpush.bf16.msra.mxu0 %v1067
    %1684 = vmatmul.bf16.gmra.mxu0 %v121
    %v1685 = vpop.f32.mrf.mxu0
    %v1686 = vadd.f32 %v1673, %v1685
    %v1687 = vpop.f32.mrf.mxu0
    %1688 = vdwg.mxu0
    %1689 = vmatpush.bf16.msra.mxu0 %v1127
    %1690 = vmatpush.bf16.msra.mxu0 %v1123
    %1691 = vmatpush.bf16.msra.mxu0 %v1119
    %1692 = vmatpush.bf16.msra.mxu0 %v1115
    %1693 = vmatpush.bf16.msra.mxu0 %v1111
    %1694 = vmatpush.bf16.msra.mxu0 %v1107
    %1695 = vmatpush.bf16.msra.mxu0 %v1103
    %1696 = vmatpush.bf16.msra.mxu0 %v1099
    %1697 = vmatmul.bf16.gmra.mxu0 %v122
    %v1698 = vpop.f32.mrf.mxu0
    %v1699 = vadd.f32 %v1686, %v1698
    %v1700 = vpop.f32.mrf.mxu0
    %1701 = vdwg.mxu0
    %1702 = vmatpush.bf16.msra.mxu0 %v1159
    %1703 = vmatpush.bf16.msra.mxu0 %v1155
    %1704 = vmatpush.bf16.msra.mxu0 %v1151
    %1705 = vmatpush.bf16.msra.mxu0 %v1147
    %1706 = vmatpush.bf16.msra.mxu0 %v1143
    %1707 = vmatpush.bf16.msra.mxu0 %v1139
    %1708 = vmatpush.bf16.msra.mxu0 %v1135
    %1709 = vmatpush.bf16.msra.mxu0 %v1131
    %1710 = vmatmul.bf16.gmra.mxu0 %v123
    %v1711 = vpop.f32.mrf.mxu0
    %v1712 = vadd.f32 %v1699, %v1711
    %v1713 = vpop.f32.mrf.mxu0
    %1714 = vdwg.mxu0
    %1715 = vmatpush.bf16.msra.mxu0 %v1191
    %1716 = vmatpush.bf16.msra.mxu0 %v1187
    %1717 = vmatpush.bf16.msra.mxu0 %v1183
    %1718 = vmatpush.bf16.msra.mxu0 %v1179
    %1719 = vmatpush.bf16.msra.mxu0 %v1175
    %1720 = vmatpush.bf16.msra.mxu0 %v1171
    %1721 = vmatpush.bf16.msra.mxu0 %v1167
    %1722 = vmatpush.bf16.msra.mxu0 %v1163
    %1723 = vmatmul.bf16.gmra.mxu0 %v124
    %v1724 = vpop.f32.mrf.mxu0
    %v1725 = vadd.f32 %v1712, %v1724
    %v1726 = vpop.f32.mrf.mxu0
    %1727 = vdwg.mxu0
    %1728 = vmatpush.bf16.msra.mxu0 %v1223
    %1729 = vmatpush.bf16.msra.mxu0 %v1219
    %1730 = vmatpush.bf16.msra.mxu0 %v1215
    %1731 = vmatpush.bf16.msra.mxu0 %v1211
    %1732 = vmatpush.bf16.msra.mxu0 %v1207
    %1733 = vmatpush.bf16.msra.mxu0 %v1203
    %1734 = vmatpush.bf16.msra.mxu0 %v1199
    %1735 = vmatpush.bf16.msra.mxu0 %v1195
    %1736 = vmatmul.bf16.gmra.mxu0 %v125
    %v1737 = vpop.f32.mrf.mxu0
    %v1738 = vadd.f32 %v1725, %v1737
    %v1739 = vpop.f32.mrf.mxu0
    %1740 = vdwg.mxu0
    %1741 = vmatpush.bf16.msra.mxu0 %v1255
    %1742 = vmatpush.bf16.msra.mxu0 %v1251
    %1743 = vmatpush.bf16.msra.mxu0 %v1247
    %1744 = vmatpush.bf16.msra.mxu0 %v1243
    %1745 = vmatpush.bf16.msra.mxu0 %v1239
    %1746 = vmatpush.bf16.msra.mxu0 %v1235
    %1747 = vmatpush.bf16.msra.mxu0 %v1231
    %1748 = vmatpush.bf16.msra.mxu0 %v1227
    %1749 = vmatmul.bf16.gmra.mxu0 %v126
    %v1750 = vpop.f32.mrf.mxu0
    %v1751 = vadd.f32 %v1738, %v1750
    %v1752 = vpop.f32.mrf.mxu0
    %1753 = vdwg.mxu0
    %1754 = vmatpush.bf16.msra.mxu0 %v1064
    %1755 = vmatpush.bf16.msra.mxu0 %v1060
    %1756 = vmatpush.bf16.msra.mxu0 %v1056
    %1757 = vmatpush.bf16.msra.mxu0 %v1052
    %1758 = vmatpush.bf16.msra.mxu0 %v1048
    %1759 = vmatpush.bf16.msra.mxu0 %v1044
    %1760 = vmatpush.bf16.msra.mxu0 %v1040
    %1761 = vmatpush.bf16.msra.mxu0 %v1036
    %1762 = vmatmul.bf16.gmra.mxu0 %v120
    %v1763 = vpop.f32.mrf.mxu0
    %v1764 = vadd.f32 %v356, %v1763
    %v1765 = vpop.f32.mrf.mxu0
    %1766 = vdwg.mxu0
    %1767 = vmatpush.bf16.msra.mxu0 %v1096
    %1768 = vmatpush.bf16.msra.mxu0 %v1092
    %1769 = vmatpush.bf16.msra.mxu0 %v1088
    %1770 = vmatpush.bf16.msra.mxu0 %v1084
    %1771 = vmatpush.bf16.msra.mxu0 %v1080
    %1772 = vmatpush.bf16.msra.mxu0 %v1076
    %1773 = vmatpush.bf16.msra.mxu0 %v1072
    %1774 = vmatpush.bf16.msra.mxu0 %v1068
    %1775 = vmatmul.bf16.gmra.mxu0 %v121
    %v1776 = vpop.f32.mrf.mxu0
    %v1777 = vadd.f32 %v1764, %v1776
    %v1778 = vpop.f32.mrf.mxu0
    %1779 = vdwg.mxu0
    %1780 = vmatpush.bf16.msra.mxu0 %v1128
    %1781 = vmatpush.bf16.msra.mxu0 %v1124
    %1782 = vmatpush.bf16.msra.mxu0 %v1120
    %1783 = vmatpush.bf16.msra.mxu0 %v1116
    %1784 = vmatpush.bf16.msra.mxu0 %v1112
    %1785 = vmatpush.bf16.msra.mxu0 %v1108
    %1786 = vmatpush.bf16.msra.mxu0 %v1104
    %1787 = vmatpush.bf16.msra.mxu0 %v1100
    %1788 = vmatmul.bf16.gmra.mxu0 %v122
    %v1789 = vpop.f32.mrf.mxu0
    %v1790 = vadd.f32 %v1777, %v1789
    %v1791 = vpop.f32.mrf.mxu0
    %1792 = vdwg.mxu0
    %1793 = vmatpush.bf16.msra.mxu0 %v1160
    %1794 = vmatpush.bf16.msra.mxu0 %v1156
    %1795 = vmatpush.bf16.msra.mxu0 %v1152
    %1796 = vmatpush.bf16.msra.mxu0 %v1148
    %1797 = vmatpush.bf16.msra.mxu0 %v1144
    %1798 = vmatpush.bf16.msra.mxu0 %v1140
    %1799 = vmatpush.bf16.msra.mxu0 %v1136
    %1800 = vmatpush.bf16.msra.mxu0 %v1132
    %1801 = vmatmul.bf16.gmra.mxu0 %v123
    %v1802 = vpop.f32.mrf.mxu0
    %v1803 = vadd.f32 %v1790, %v1802
    %v1804 = vpop.f32.mrf.mxu0
    %1805 = vdwg.mxu0
    %1806 = vmatpush.bf16.msra.mxu0 %v1192
    %1807 = vmatpush.bf16.msra.mxu0 %v1188
    %1808 = vmatpush.bf16.msra.mxu0 %v1184
    %1809 = vmatpush.bf16.msra.mxu0 %v1180
    %1810 = vmatpush.bf16.msra.mxu0 %v1176
    %1811 = vmatpush.bf16.msra.mxu0 %v1172
    %1812 = vmatpush.bf16.msra.mxu0 %v1168
    %1813 = vmatpush.bf16.msra.mxu0 %v1164
    %1814 = vmatmul.bf16.gmra.mxu0 %v124
    %v1815 = vpop.f32.mrf.mxu0
    %v1816 = vadd.f32 %v1803, %v1815
    %v1817 = vpop.f32.mrf.mxu0
    %1818 = vdwg.mxu0
    %1819 = vmatpush.bf16.msra.mxu0 %v1224
    %1820 = vmatpush.bf16.msra.mxu0 %v1220
    %1821 = vmatpush.bf16.msra.mxu0 %v1216
    %1822 = vmatpush.bf16.msra.mxu0 %v1212
    %1823 = vmatpush.bf16.msra.mxu0 %v1208
    %1824 = vmatpush.bf16.msra.mxu0 %v1204
    %1825 = vmatpush.bf16.msra.mxu0 %v1200
    %1826 = vmatpush.bf16.msra.mxu0 %v1196
    %1827 = vmatmul.bf16.gmra.mxu0 %v125
    %v1828 = vpop.f32.mrf.mxu0
    %v1829 = vadd.f32 %v1816, %v1828
    %v1830 = vpop.f32.mrf.mxu0
    %1831 = vdwg.mxu0
    %1832 = vmatpush.bf16.msra.mxu0 %v1256
    %1833 = vmatpush.bf16.msra.mxu0 %v1252
    %1834 = vmatpush.bf16.msra.mxu0 %v1248
    %1835 = vmatpush.bf16.msra.mxu0 %v1244
    %1836 = vmatpush.bf16.msra.mxu0 %v1240
    %1837 = vmatpush.bf16.msra.mxu0 %v1236
    %1838 = vmatpush.bf16.msra.mxu0 %v1232
    %1839 = vmatpush.bf16.msra.mxu0 %v1228
    %1840 = vmatmul.bf16.gmra.mxu0 %v126
    %v1841 = vpop.f32.mrf.mxu0
    %v1842 = vadd.f32 %v1829, %v1841
    %v1843 = vpop.f32.mrf.mxu0
    %1844 = vdwg.mxu0
    %v1845 = vmax.f32 %v1569, 0.0
    %v1846 = vmax.f32 %v1660, 0.0
    %v1847 = vmax.f32 %v1751, 0.0
    %v1848 = vmax.f32 %v1842, 0.0
    %v1849 = vpack.c.bf16 %v1845, %v1845
    %v1850 = vpack.c.bf16 %v1846, %v1846
    %v1851 = vpack.c.bf16 %v1847, %v1847
    %v1852 = vpack.c.bf16 %v1848, %v1848
    %v1853 = vld [vmem:[#allocation5] sm:$0xff]
    %v1854 = vld [vmem:[#allocation5 + $0x8] sm:$0xff]
    %v1855 = vld [vmem:[#allocation5 + $0x10] sm:$0xff]
    %v1856 = vld [vmem:[#allocation5 + $0x18] sm:$0xff]
    %v1857 = vld [vmem:[#allocation5 + $0x20] sm:$0xff]
    %v1858 = vld [vmem:[#allocation5 + $0x28] sm:$0xff]
    %v1859 = vld [vmem:[#allocation5 + $0x30] sm:$0xff]
    %v1860 = vld [vmem:[#allocation5 + $0x38] sm:$0xff]
    %v1861 = vld [vmem:[#allocation5 + $0x40] sm:$0xff]
    %v1862 = vld [vmem:[#allocation5 + $0x48] sm:$0xff]
    %v1863 = vld [vmem:[#allocation5 + $0x50] sm:$0xff]
    %v1864 = vld [vmem:[#allocation5 + $0x58] sm:$0xff]
    %v1865 = vld [vmem:[#allocation5 + $0x60] sm:$0xff]
    %v1866 = vld [vmem:[#allocation5 + $0x68] sm:$0xff]
    %v1867 = vld [vmem:[#allocation5 + $0x70] sm:$0xff]
    %v1868 = vld [vmem:[#allocation5 + $0x78] sm:$0xff]
    %v1869 = vld [vmem:[#allocation5 + $0x80] sm:$0xff]
    %v1870 = vld [vmem:[#allocation5 + $0x88] sm:$0xff]
    %v1871 = vld [vmem:[#allocation5 + $0x90] sm:$0xff]
    %v1872 = vld [vmem:[#allocation5 + $0x98] sm:$0xff]
    %v1873 = vld [vmem:[#allocation5 + $0xa0] sm:$0xff]
    %v1874 = vld [vmem:[#allocation5 + $0xa8] sm:$0xff]
    %v1875 = vld [vmem:[#allocation5 + $0xb0] sm:$0xff]
    %v1876 = vld [vmem:[#allocation5 + $0xb8] sm:$0xff]
    %v1877 = vld [vmem:[#allocation5 + $0xc0] sm:$0xff]
    %v1878 = vld [vmem:[#allocation5 + $0xc8] sm:$0xff]
    %v1879 = vld [vmem:[#allocation5 + $0xd0] sm:$0xff]
    %v1880 = vld [vmem:[#allocation5 + $0xd8] sm:$0xff]
    %v1881 = vld [vmem:[#allocation5 + $0xe0] sm:$0xff]
    %v1882 = vld [vmem:[#allocation5 + $0xe8] sm:$0xff]
    %v1883 = vld [vmem:[#allocation5 + $0xf0] sm:$0xff]
    %v1884 = vld [vmem:[#allocation5 + $0xf8] sm:$0xff]
    %v1885 = vld [vmem:[#allocation5 + $0x100] sm:$0xff]
    %v1886 = vld [vmem:[#allocation5 + $0x108] sm:$0xff]
    %v1887 = vld [vmem:[#allocation5 + $0x110] sm:$0xff]
    %v1888 = vld [vmem:[#allocation5 + $0x118] sm:$0xff]
    %v1889 = vld [vmem:[#allocation5 + $0x120] sm:$0xff]
    %v1890 = vld [vmem:[#allocation5 + $0x128] sm:$0xff]
    %v1891 = vld [vmem:[#allocation5 + $0x130] sm:$0xff]
    %v1892 = vld [vmem:[#allocation5 + $0x138] sm:$0xff]
    %v1893 = vld [vmem:[#allocation5 + $0x140] sm:$0xff]
    %v1894 = vld [vmem:[#allocation5 + $0x148] sm:$0xff]
    %v1895 = vld [vmem:[#allocation5 + $0x150] sm:$0xff]
    %v1896 = vld [vmem:[#allocation5 + $0x158] sm:$0xff]
    %v1897 = vld [vmem:[#allocation5 + $0x160] sm:$0xff]
    %v1898 = vld [vmem:[#allocation5 + $0x168] sm:$0xff]
    %v1899 = vld [vmem:[#allocation5 + $0x170] sm:$0xff]
    %v1900 = vld [vmem:[#allocation5 + $0x178] sm:$0xff]
    %v1901 = vld [vmem:[#allocation5 + $0x180] sm:$0xff]
    %v1902 = vld [vmem:[#allocation5 + $0x188] sm:$0xff]
    %v1903 = vld [vmem:[#allocation5 + $0x190] sm:$0xff]
    %v1904 = vld [vmem:[#allocation5 + $0x198] sm:$0xff]
    %v1905 = vld [vmem:[#allocation5 + $0x1a0] sm:$0xff]
    %v1906 = vld [vmem:[#allocation5 + $0x1a8] sm:$0xff]
    %v1907 = vld [vmem:[#allocation5 + $0x1b0] sm:$0xff]
    %v1908 = vld [vmem:[#allocation5 + $0x1b8] sm:$0xff]
    %v1909 = vld [vmem:[#allocation5 + $0x1c0] sm:$0xff]
    %v1910 = vld [vmem:[#allocation5 + $0x1c8] sm:$0xff]
    %v1911 = vld [vmem:[#allocation5 + $0x1d0] sm:$0xff]
    %v1912 = vld [vmem:[#allocation5 + $0x1d8] sm:$0xff]
    %v1913 = vld [vmem:[#allocation5 + $0x1e0] sm:$0xff]
    %v1914 = vld [vmem:[#allocation5 + $0x1e8] sm:$0xff]
    %v1915 = vld [vmem:[#allocation5 + $0x1f0] sm:$0xff]
    %v1916 = vld [vmem:[#allocation5 + $0x1f8] sm:$0xff]
    %v1917 = vld [vmem:[#allocation5 + $0x200] sm:$0xff]
    %v1918 = vld [vmem:[#allocation5 + $0x208] sm:$0xff]
    %v1919 = vld [vmem:[#allocation5 + $0x210] sm:$0xff]
    %v1920 = vld [vmem:[#allocation5 + $0x218] sm:$0xff]
    %v1921 = vld [vmem:[#allocation5 + $0x220] sm:$0xff]
    %v1922 = vld [vmem:[#allocation5 + $0x228] sm:$0xff]
    %v1923 = vld [vmem:[#allocation5 + $0x230] sm:$0xff]
    %v1924 = vld [vmem:[#allocation5 + $0x238] sm:$0xff]
    %v1925 = vld [vmem:[#allocation5 + $0x240] sm:$0xff]
    %v1926 = vld [vmem:[#allocation5 + $0x248] sm:$0xff]
    %v1927 = vld [vmem:[#allocation5 + $0x250] sm:$0xff]
    %v1928 = vld [vmem:[#allocation5 + $0x258] sm:$0xff]
    %v1929 = vld [vmem:[#allocation5 + $0x260] sm:$0xff]
    %v1930 = vld [vmem:[#allocation5 + $0x268] sm:$0xff]
    %v1931 = vld [vmem:[#allocation5 + $0x270] sm:$0xff]
    %v1932 = vld [vmem:[#allocation5 + $0x278] sm:$0xff]
    %v1933 = vld [vmem:[#allocation5 + $0x280] sm:$0xff]
    %v1934 = vld [vmem:[#allocation5 + $0x288] sm:$0xff]
    %v1935 = vld [vmem:[#allocation5 + $0x290] sm:$0xff]
    %v1936 = vld [vmem:[#allocation5 + $0x298] sm:$0xff]
    %v1937 = vld [vmem:[#allocation5 + $0x2a0] sm:$0xff]
    %v1938 = vld [vmem:[#allocation5 + $0x2a8] sm:$0xff]
    %v1939 = vld [vmem:[#allocation5 + $0x2b0] sm:$0xff]
    %v1940 = vld [vmem:[#allocation5 + $0x2b8] sm:$0xff]
    %v1941 = vld [vmem:[#allocation5 + $0x2c0] sm:$0xff]
    %v1942 = vld [vmem:[#allocation5 + $0x2c8] sm:$0xff]
    %v1943 = vld [vmem:[#allocation5 + $0x2d0] sm:$0xff]
    %v1944 = vld [vmem:[#allocation5 + $0x2d8] sm:$0xff]
    %v1945 = vld [vmem:[#allocation5 + $0x2e0] sm:$0xff]
    %v1946 = vld [vmem:[#allocation5 + $0x2e8] sm:$0xff]
    %v1947 = vld [vmem:[#allocation5 + $0x2f0] sm:$0xff]
    %v1948 = vld [vmem:[#allocation5 + $0x2f8] sm:$0xff]
    %v1949 = vld [vmem:[#allocation5 + $0x300] sm:$0xff]
    %v1950 = vld [vmem:[#allocation5 + $0x308] sm:$0xff]
    %v1951 = vld [vmem:[#allocation5 + $0x310] sm:$0xff]
    %v1952 = vld [vmem:[#allocation5 + $0x318] sm:$0xff]
    %v1953 = vld [vmem:[#allocation5 + $0x320] sm:$0xff]
    %v1954 = vld [vmem:[#allocation5 + $0x328] sm:$0xff]
    %v1955 = vld [vmem:[#allocation5 + $0x330] sm:$0xff]
    %v1956 = vld [vmem:[#allocation5 + $0x338] sm:$0xff]
    %v1957 = vld [vmem:[#allocation5 + $0x340] sm:$0xff]
    %v1958 = vld [vmem:[#allocation5 + $0x348] sm:$0xff]
    %v1959 = vld [vmem:[#allocation5 + $0x350] sm:$0xff]
    %v1960 = vld [vmem:[#allocation5 + $0x358] sm:$0xff]
    %v1961 = vld [vmem:[#allocation5 + $0x360] sm:$0xff]
    %v1962 = vld [vmem:[#allocation5 + $0x368] sm:$0xff]
    %v1963 = vld [vmem:[#allocation5 + $0x370] sm:$0xff]
    %v1964 = vld [vmem:[#allocation5 + $0x378] sm:$0xff]
    %v1965 = vld [vmem:[#allocation5 + $0x380] sm:$0xff]
    %v1966 = vld [vmem:[#allocation5 + $0x388] sm:$0xff]
    %v1967 = vld [vmem:[#allocation5 + $0x390] sm:$0xff]
    %v1968 = vld [vmem:[#allocation5 + $0x398] sm:$0xff]
    %v1969 = vld [vmem:[#allocation5 + $0x3a0] sm:$0xff]
    %v1970 = vld [vmem:[#allocation5 + $0x3a8] sm:$0xff]
    %v1971 = vld [vmem:[#allocation5 + $0x3b0] sm:$0xff]
    %v1972 = vld [vmem:[#allocation5 + $0x3b8] sm:$0xff]
    %v1973 = vld [vmem:[#allocation5 + $0x3c0] sm:$0xff]
    %v1974 = vld [vmem:[#allocation5 + $0x3c8] sm:$0xff]
    %v1975 = vld [vmem:[#allocation5 + $0x3d0] sm:$0xff]
    %v1976 = vld [vmem:[#allocation5 + $0x3d8] sm:$0xff]
    %v1977 = vld [vmem:[#allocation5 + $0x3e0] sm:$0xff]
    %v1978 = vld [vmem:[#allocation5 + $0x3e8] sm:$0xff]
    %v1979 = vld [vmem:[#allocation5 + $0x3f0] sm:$0xff]
    %v1980 = vld [vmem:[#allocation5 + $0x3f8] sm:$0xff]
    %v1981 = vld [vmem:[%s5] sm:$0xf]
    %v1983 = vperm.slane %v1981, 0
    %v1984 = vperm.slane %v1981, 1
    %v1985 = vperm.slane %v1981, 2
    %v1986 = vperm.slane %v1981, 3
    %v2119 = vunpack.c.l.b16 %v1853
    %v2120 = vunpack.c.h.b16 %v1853
    %v2121 = vunpack.c.l.b16 %v1854
    %v2122 = vunpack.c.h.b16 %v1854
    %v2123 = vunpack.c.l.b16 %v1855
    %v2124 = vunpack.c.h.b16 %v1855
    %v2125 = vunpack.c.l.b16 %v1856
    %v2126 = vunpack.c.h.b16 %v1856
    %v2127 = vunpack.c.l.b16 %v1857
    %v2128 = vunpack.c.h.b16 %v1857
    %v2129 = vunpack.c.l.b16 %v1858
    %v2130 = vunpack.c.h.b16 %v1858
    %v2131 = vunpack.c.l.b16 %v1859
    %v2132 = vunpack.c.h.b16 %v1859
    %v2133 = vunpack.c.l.b16 %v1860
    %v2134 = vunpack.c.h.b16 %v1860
    %v2135 = vunpack.c.l.b16 %v1861
    %v2136 = vunpack.c.h.b16 %v1861
    %v2137 = vunpack.c.l.b16 %v1862
    %v2138 = vunpack.c.h.b16 %v1862
    %v2139 = vunpack.c.l.b16 %v1863
    %v2140 = vunpack.c.h.b16 %v1863
    %v2141 = vunpack.c.l.b16 %v1864
    %v2142 = vunpack.c.h.b16 %v1864
    %v2143 = vunpack.c.l.b16 %v1865
    %v2144 = vunpack.c.h.b16 %v1865
    %v2145 = vunpack.c.l.b16 %v1866
    %v2146 = vunpack.c.h.b16 %v1866
    %v2147 = vunpack.c.l.b16 %v1867
    %v2148 = vunpack.c.h.b16 %v1867
    %v2149 = vunpack.c.l.b16 %v1868
    %v2150 = vunpack.c.h.b16 %v1868
    %v2151 = vunpack.c.l.b16 %v1869
    %v2152 = vunpack.c.h.b16 %v1869
    %v2153 = vunpack.c.l.b16 %v1870
    %v2154 = vunpack.c.h.b16 %v1870
    %v2155 = vunpack.c.l.b16 %v1871
    %v2156 = vunpack.c.h.b16 %v1871
    %v2157 = vunpack.c.l.b16 %v1872
    %v2158 = vunpack.c.h.b16 %v1872
    %v2159 = vunpack.c.l.b16 %v1873
    %v2160 = vunpack.c.h.b16 %v1873
    %v2161 = vunpack.c.l.b16 %v1874
    %v2162 = vunpack.c.h.b16 %v1874
    %v2163 = vunpack.c.l.b16 %v1875
    %v2164 = vunpack.c.h.b16 %v1875
    %v2165 = vunpack.c.l.b16 %v1876
    %v2166 = vunpack.c.h.b16 %v1876
    %v2167 = vunpack.c.l.b16 %v1877
    %v2168 = vunpack.c.h.b16 %v1877
    %v2169 = vunpack.c.l.b16 %v1878
    %v2170 = vunpack.c.h.b16 %v1878
    %v2171 = vunpack.c.l.b16 %v1879
    %v2172 = vunpack.c.h.b16 %v1879
    %v2173 = vunpack.c.l.b16 %v1880
    %v2174 = vunpack.c.h.b16 %v1880
    %v2175 = vunpack.c.l.b16 %v1881
    %v2176 = vunpack.c.h.b16 %v1881
    %v2177 = vunpack.c.l.b16 %v1882
    %v2178 = vunpack.c.h.b16 %v1882
    %v2179 = vunpack.c.l.b16 %v1883
    %v2180 = vunpack.c.h.b16 %v1883
    %v2181 = vunpack.c.l.b16 %v1884
    %v2182 = vunpack.c.h.b16 %v1884
    %v2183 = vunpack.c.l.b16 %v1885
    %v2184 = vunpack.c.h.b16 %v1885
    %v2185 = vunpack.c.l.b16 %v1886
    %v2186 = vunpack.c.h.b16 %v1886
    %v2187 = vunpack.c.l.b16 %v1887
    %v2188 = vunpack.c.h.b16 %v1887
    %v2189 = vunpack.c.l.b16 %v1888
    %v2190 = vunpack.c.h.b16 %v1888
    %v2191 = vunpack.c.l.b16 %v1889
    %v2192 = vunpack.c.h.b16 %v1889
    %v2193 = vunpack.c.l.b16 %v1890
    %v2194 = vunpack.c.h.b16 %v1890
    %v2195 = vunpack.c.l.b16 %v1891
    %v2196 = vunpack.c.h.b16 %v1891
    %v2197 = vunpack.c.l.b16 %v1892
    %v2198 = vunpack.c.h.b16 %v1892
    %v2199 = vunpack.c.l.b16 %v1893
    %v2200 = vunpack.c.h.b16 %v1893
    %v2201 = vunpack.c.l.b16 %v1894
    %v2202 = vunpack.c.h.b16 %v1894
    %v2203 = vunpack.c.l.b16 %v1895
    %v2204 = vunpack.c.h.b16 %v1895
    %v2205 = vunpack.c.l.b16 %v1896
    %v2206 = vunpack.c.h.b16 %v1896
    %v2207 = vunpack.c.l.b16 %v1897
    %v2208 = vunpack.c.h.b16 %v1897
    %v2209 = vunpack.c.l.b16 %v1898
    %v2210 = vunpack.c.h.b16 %v1898
    %v2211 = vunpack.c.l.b16 %v1899
    %v2212 = vunpack.c.h.b16 %v1899
    %v2213 = vunpack.c.l.b16 %v1900
    %v2214 = vunpack.c.h.b16 %v1900
    %v2215 = vunpack.c.l.b16 %v1901
    %v2216 = vunpack.c.h.b16 %v1901
    %v2217 = vunpack.c.l.b16 %v1902
    %v2218 = vunpack.c.h.b16 %v1902
    %v2219 = vunpack.c.l.b16 %v1903
    %v2220 = vunpack.c.h.b16 %v1903
    %v2221 = vunpack.c.l.b16 %v1904
    %v2222 = vunpack.c.h.b16 %v1904
    %v2223 = vunpack.c.l.b16 %v1905
    %v2224 = vunpack.c.h.b16 %v1905
    %v2225 = vunpack.c.l.b16 %v1906
    %v2226 = vunpack.c.h.b16 %v1906
    %v2227 = vunpack.c.l.b16 %v1907
    %v2228 = vunpack.c.h.b16 %v1907
    %v2229 = vunpack.c.l.b16 %v1908
    %v2230 = vunpack.c.h.b16 %v1908
    %v2231 = vunpack.c.l.b16 %v1909
    %v2232 = vunpack.c.h.b16 %v1909
    %v2233 = vunpack.c.l.b16 %v1910
    %v2234 = vunpack.c.h.b16 %v1910
    %v2235 = vunpack.c.l.b16 %v1911
    %v2236 = vunpack.c.h.b16 %v1911
    %v2237 = vunpack.c.l.b16 %v1912
    %v2238 = vunpack.c.h.b16 %v1912
    %v2239 = vunpack.c.l.b16 %v1913
    %v2240 = vunpack.c.h.b16 %v1913
    %v2241 = vunpack.c.l.b16 %v1914
    %v2242 = vunpack.c.h.b16 %v1914
    %v2243 = vunpack.c.l.b16 %v1915
    %v2244 = vunpack.c.h.b16 %v1915
    %v2245 = vunpack.c.l.b16 %v1916
    %v2246 = vunpack.c.h.b16 %v1916
    %v2247 = vunpack.c.l.b16 %v1917
    %v2248 = vunpack.c.h.b16 %v1917
    %v2249 = vunpack.c.l.b16 %v1918
    %v2250 = vunpack.c.h.b16 %v1918
    %v2251 = vunpack.c.l.b16 %v1919
    %v2252 = vunpack.c.h.b16 %v1919
    %v2253 = vunpack.c.l.b16 %v1920
    %v2254 = vunpack.c.h.b16 %v1920
    %v2255 = vunpack.c.l.b16 %v1921
    %v2256 = vunpack.c.h.b16 %v1921
    %v2257 = vunpack.c.l.b16 %v1922
    %v2258 = vunpack.c.h.b16 %v1922
    %v2259 = vunpack.c.l.b16 %v1923
    %v2260 = vunpack.c.h.b16 %v1923
    %v2261 = vunpack.c.l.b16 %v1924
    %v2262 = vunpack.c.h.b16 %v1924
    %v2263 = vunpack.c.l.b16 %v1925
    %v2264 = vunpack.c.h.b16 %v1925
    %v2265 = vunpack.c.l.b16 %v1926
    %v2266 = vunpack.c.h.b16 %v1926
    %v2267 = vunpack.c.l.b16 %v1927
    %v2268 = vunpack.c.h.b16 %v1927
    %v2269 = vunpack.c.l.b16 %v1928
    %v2270 = vunpack.c.h.b16 %v1928
    %v2271 = vunpack.c.l.b16 %v1929
    %v2272 = vunpack.c.h.b16 %v1929
    %v2273 = vunpack.c.l.b16 %v1930
    %v2274 = vunpack.c.h.b16 %v1930
    %v2275 = vunpack.c.l.b16 %v1931
    %v2276 = vunpack.c.h.b16 %v1931
    %v2277 = vunpack.c.l.b16 %v1932
    %v2278 = vunpack.c.h.b16 %v1932
    %v2279 = vunpack.c.l.b16 %v1933
    %v2280 = vunpack.c.h.b16 %v1933
    %v2281 = vunpack.c.l.b16 %v1934
    %v2282 = vunpack.c.h.b16 %v1934
    %v2283 = vunpack.c.l.b16 %v1935
    %v2284 = vunpack.c.h.b16 %v1935
    %v2285 = vunpack.c.l.b16 %v1936
    %v2286 = vunpack.c.h.b16 %v1936
    %v2287 = vunpack.c.l.b16 %v1937
    %v2288 = vunpack.c.h.b16 %v1937
    %v2289 = vunpack.c.l.b16 %v1938
    %v2290 = vunpack.c.h.b16 %v1938
    %v2291 = vunpack.c.l.b16 %v1939
    %v2292 = vunpack.c.h.b16 %v1939
    %v2293 = vunpack.c.l.b16 %v1940
    %v2294 = vunpack.c.h.b16 %v1940
    %v2295 = vunpack.c.l.b16 %v1941
    %v2296 = vunpack.c.h.b16 %v1941
    %v2297 = vunpack.c.l.b16 %v1942
    %v2298 = vunpack.c.h.b16 %v1942
    %v2299 = vunpack.c.l.b16 %v1943
    %v2300 = vunpack.c.h.b16 %v1943
    %v2301 = vunpack.c.l.b16 %v1944
    %v2302 = vunpack.c.h.b16 %v1944
    %v2303 = vunpack.c.l.b16 %v1945
    %v2304 = vunpack.c.h.b16 %v1945
    %v2305 = vunpack.c.l.b16 %v1946
    %v2306 = vunpack.c.h.b16 %v1946
    %v2307 = vunpack.c.l.b16 %v1947
    %v2308 = vunpack.c.h.b16 %v1947
    %v2309 = vunpack.c.l.b16 %v1948
    %v2310 = vunpack.c.h.b16 %v1948
    %v2311 = vunpack.c.l.b16 %v1949
    %v2312 = vunpack.c.h.b16 %v1949
    %v2313 = vunpack.c.l.b16 %v1950
    %v2314 = vunpack.c.h.b16 %v1950
    %v2315 = vunpack.c.l.b16 %v1951
    %v2316 = vunpack.c.h.b16 %v1951
    %v2317 = vunpack.c.l.b16 %v1952
    %v2318 = vunpack.c.h.b16 %v1952
    %v2319 = vunpack.c.l.b16 %v1953
    %v2320 = vunpack.c.h.b16 %v1953
    %v2321 = vunpack.c.l.b16 %v1954
    %v2322 = vunpack.c.h.b16 %v1954
    %v2323 = vunpack.c.l.b16 %v1955
    %v2324 = vunpack.c.h.b16 %v1955
    %v2325 = vunpack.c.l.b16 %v1956
    %v2326 = vunpack.c.h.b16 %v1956
    %v2327 = vunpack.c.l.b16 %v1957
    %v2328 = vunpack.c.h.b16 %v1957
    %v2329 = vunpack.c.l.b16 %v1958
    %v2330 = vunpack.c.h.b16 %v1958
    %v2331 = vunpack.c.l.b16 %v1959
    %v2332 = vunpack.c.h.b16 %v1959
    %v2333 = vunpack.c.l.b16 %v1960
    %v2334 = vunpack.c.h.b16 %v1960
    %v2335 = vunpack.c.l.b16 %v1961
    %v2336 = vunpack.c.h.b16 %v1961
    %v2337 = vunpack.c.l.b16 %v1962
    %v2338 = vunpack.c.h.b16 %v1962
    %v2339 = vunpack.c.l.b16 %v1963
    %v2340 = vunpack.c.h.b16 %v1963
    %v2341 = vunpack.c.l.b16 %v1964
    %v2342 = vunpack.c.h.b16 %v1964
    %v2343 = vunpack.c.l.b16 %v1965
    %v2344 = vunpack.c.h.b16 %v1965
    %v2345 = vunpack.c.l.b16 %v1966
    %v2346 = vunpack.c.h.b16 %v1966
    %v2347 = vunpack.c.l.b16 %v1967
    %v2348 = vunpack.c.h.b16 %v1967
    %v2349 = vunpack.c.l.b16 %v1968
    %v2350 = vunpack.c.h.b16 %v1968
    %v2351 = vunpack.c.l.b16 %v1969
    %v2352 = vunpack.c.h.b16 %v1969
    %v2353 = vunpack.c.l.b16 %v1970
    %v2354 = vunpack.c.h.b16 %v1970
    %v2355 = vunpack.c.l.b16 %v1971
    %v2356 = vunpack.c.h.b16 %v1971
    %v2357 = vunpack.c.l.b16 %v1972
    %v2358 = vunpack.c.h.b16 %v1972
    %v2359 = vunpack.c.l.b16 %v1973
    %v2360 = vunpack.c.h.b16 %v1973
    %v2361 = vunpack.c.l.b16 %v1974
    %v2362 = vunpack.c.h.b16 %v1974
    %v2363 = vunpack.c.l.b16 %v1975
    %v2364 = vunpack.c.h.b16 %v1975
    %v2365 = vunpack.c.l.b16 %v1976
    %v2366 = vunpack.c.h.b16 %v1976
    %v2367 = vunpack.c.l.b16 %v1977
    %v2368 = vunpack.c.h.b16 %v1977
    %v2369 = vunpack.c.l.b16 %v1978
    %v2370 = vunpack.c.h.b16 %v1978
    %v2371 = vunpack.c.l.b16 %v1979
    %v2372 = vunpack.c.h.b16 %v1979
    %v2373 = vunpack.c.l.b16 %v1980
    %v2374 = vunpack.c.h.b16 %v1980
    %v2375 = vpack.c.b16 %v2123, %v2119
    %v2376 = vpack.c.b16 %v2124, %v2120
    %v2377 = vpack.c.b16 %v2125, %v2121
    %v2378 = vpack.c.b16 %v2126, %v2122
    %v2379 = vpack.c.b16 %v2131, %v2127
    %v2380 = vpack.c.b16 %v2132, %v2128
    %v2381 = vpack.c.b16 %v2133, %v2129
    %v2382 = vpack.c.b16 %v2134, %v2130
    %v2383 = vpack.c.b16 %v2139, %v2135
    %v2384 = vpack.c.b16 %v2140, %v2136
    %v2385 = vpack.c.b16 %v2141, %v2137
    %v2386 = vpack.c.b16 %v2142, %v2138
    %v2387 = vpack.c.b16 %v2147, %v2143
    %v2388 = vpack.c.b16 %v2148, %v2144
    %v2389 = vpack.c.b16 %v2149, %v2145
    %v2390 = vpack.c.b16 %v2150, %v2146
    %v2391 = vpack.c.b16 %v2155, %v2151
    %v2392 = vpack.c.b16 %v2156, %v2152
    %v2393 = vpack.c.b16 %v2157, %v2153
    %v2394 = vpack.c.b16 %v2158, %v2154
    %v2395 = vpack.c.b16 %v2163, %v2159
    %v2396 = vpack.c.b16 %v2164, %v2160
    %v2397 = vpack.c.b16 %v2165, %v2161
    %v2398 = vpack.c.b16 %v2166, %v2162
    %v2399 = vpack.c.b16 %v2171, %v2167
    %v2400 = vpack.c.b16 %v2172, %v2168
    %v2401 = vpack.c.b16 %v2173, %v2169
    %v2402 = vpack.c.b16 %v2174, %v2170
    %v2403 = vpack.c.b16 %v2179, %v2175
    %v2404 = vpack.c.b16 %v2180, %v2176
    %v2405 = vpack.c.b16 %v2181, %v2177
    %v2406 = vpack.c.b16 %v2182, %v2178
    %v2407 = vpack.c.b16 %v2187, %v2183
    %v2408 = vpack.c.b16 %v2188, %v2184
    %v2409 = vpack.c.b16 %v2189, %v2185
    %v2410 = vpack.c.b16 %v2190, %v2186
    %v2411 = vpack.c.b16 %v2195, %v2191
    %v2412 = vpack.c.b16 %v2196, %v2192
    %v2413 = vpack.c.b16 %v2197, %v2193
    %v2414 = vpack.c.b16 %v2198, %v2194
    %v2415 = vpack.c.b16 %v2203, %v2199
    %v2416 = vpack.c.b16 %v2204, %v2200
    %v2417 = vpack.c.b16 %v2205, %v2201
    %v2418 = vpack.c.b16 %v2206, %v2202
    %v2419 = vpack.c.b16 %v2211, %v2207
    %v2420 = vpack.c.b16 %v2212, %v2208
    %v2421 = vpack.c.b16 %v2213, %v2209
    %v2422 = vpack.c.b16 %v2214, %v2210
    %v2423 = vpack.c.b16 %v2219, %v2215
    %v2424 = vpack.c.b16 %v2220, %v2216
    %v2425 = vpack.c.b16 %v2221, %v2217
    %v2426 = vpack.c.b16 %v2222, %v2218
    %v2427 = vpack.c.b16 %v2227, %v2223
    %v2428 = vpack.c.b16 %v2228, %v2224
    %v2429 = vpack.c.b16 %v2229, %v2225
    %v2430 = vpack.c.b16 %v2230, %v2226
    %v2431 = vpack.c.b16 %v2235, %v2231
    %v2432 = vpack.c.b16 %v2236, %v2232
    %v2433 = vpack.c.b16 %v2237, %v2233
    %v2434 = vpack.c.b16 %v2238, %v2234
    %v2435 = vpack.c.b16 %v2243, %v2239
    %v2436 = vpack.c.b16 %v2244, %v2240
    %v2437 = vpack.c.b16 %v2245, %v2241
    %v2438 = vpack.c.b16 %v2246, %v2242
    %v2439 = vpack.c.b16 %v2251, %v2247
    %v2440 = vpack.c.b16 %v2252, %v2248
    %v2441 = vpack.c.b16 %v2253, %v2249
    %v2442 = vpack.c.b16 %v2254, %v2250
    %v2443 = vpack.c.b16 %v2259, %v2255
    %v2444 = vpack.c.b16 %v2260, %v2256
    %v2445 = vpack.c.b16 %v2261, %v2257
    %v2446 = vpack.c.b16 %v2262, %v2258
    %v2447 = vpack.c.b16 %v2267, %v2263
    %v2448 = vpack.c.b16 %v2268, %v2264
    %v2449 = vpack.c.b16 %v2269, %v2265
    %v2450 = vpack.c.b16 %v2270, %v2266
    %v2451 = vpack.c.b16 %v2275, %v2271
    %v2452 = vpack.c.b16 %v2276, %v2272
    %v2453 = vpack.c.b16 %v2277, %v2273
    %v2454 = vpack.c.b16 %v2278, %v2274
    %v2455 = vpack.c.b16 %v2283, %v2279
    %v2456 = vpack.c.b16 %v2284, %v2280
    %v2457 = vpack.c.b16 %v2285, %v2281
    %v2458 = vpack.c.b16 %v2286, %v2282
    %v2459 = vpack.c.b16 %v2291, %v2287
    %v2460 = vpack.c.b16 %v2292, %v2288
    %v2461 = vpack.c.b16 %v2293, %v2289
    %v2462 = vpack.c.b16 %v2294, %v2290
    %v2463 = vpack.c.b16 %v2299, %v2295
    %v2464 = vpack.c.b16 %v2300, %v2296
    %v2465 = vpack.c.b16 %v2301, %v2297
    %v2466 = vpack.c.b16 %v2302, %v2298
    %v2467 = vpack.c.b16 %v2307, %v2303
    %v2468 = vpack.c.b16 %v2308, %v2304
    %v2469 = vpack.c.b16 %v2309, %v2305
    %v2470 = vpack.c.b16 %v2310, %v2306
    %v2471 = vpack.c.b16 %v2315, %v2311
    %v2472 = vpack.c.b16 %v2316, %v2312
    %v2473 = vpack.c.b16 %v2317, %v2313
    %v2474 = vpack.c.b16 %v2318, %v2314
    %v2475 = vpack.c.b16 %v2323, %v2319
    %v2476 = vpack.c.b16 %v2324, %v2320
    %v2477 = vpack.c.b16 %v2325, %v2321
    %v2478 = vpack.c.b16 %v2326, %v2322
    %v2479 = vpack.c.b16 %v2331, %v2327
    %v2480 = vpack.c.b16 %v2332, %v2328
    %v2481 = vpack.c.b16 %v2333, %v2329
    %v2482 = vpack.c.b16 %v2334, %v2330
    %v2483 = vpack.c.b16 %v2339, %v2335
    %v2484 = vpack.c.b16 %v2340, %v2336
    %v2485 = vpack.c.b16 %v2341, %v2337
    %v2486 = vpack.c.b16 %v2342, %v2338
    %v2487 = vpack.c.b16 %v2347, %v2343
    %v2488 = vpack.c.b16 %v2348, %v2344
    %v2489 = vpack.c.b16 %v2349, %v2345
    %v2490 = vpack.c.b16 %v2350, %v2346
    %v2491 = vpack.c.b16 %v2355, %v2351
    %v2492 = vpack.c.b16 %v2356, %v2352
    %v2493 = vpack.c.b16 %v2357, %v2353
    %v2494 = vpack.c.b16 %v2358, %v2354
    %v2495 = vpack.c.b16 %v2363, %v2359
    %v2496 = vpack.c.b16 %v2364, %v2360
    %v2497 = vpack.c.b16 %v2365, %v2361
    %v2498 = vpack.c.b16 %v2366, %v2362
    %v2499 = vpack.c.b16 %v2371, %v2367
    %v2500 = vpack.c.b16 %v2372, %v2368
    %v2501 = vpack.c.b16 %v2373, %v2369
    %v2502 = vpack.c.b16 %v2374, %v2370
    %2631 = vmatpush.bf16.msra.mxu0 %v2403
    %2632 = vmatpush.bf16.msra.mxu0 %v2399
    %2633 = vmatpush.bf16.msra.mxu0 %v2395
    %2634 = vmatpush.bf16.msra.mxu0 %v2391
    %2635 = vmatpush.bf16.msra.mxu0 %v2387
    %2636 = vmatpush.bf16.msra.mxu0 %v2383
    %2637 = vmatpush.bf16.msra.mxu0 %v2379
    %2638 = vmatpush.bf16.msra.mxu0 %v2375
    %2639 = vmatmul.bf16.gmra.mxu0 %v1849
    %v2640 = vpop.f32.mrf.mxu0
    %v2641 = vadd.f32 %v1983, %v2640
    %v2642 = vpop.f32.mrf.mxu0
    %2643 = vdwg.mxu0
    %2644 = vmatpush.bf16.msra.mxu0 %v2435
    %2645 = vmatpush.bf16.msra.mxu0 %v2431
    %2646 = vmatpush.bf16.msra.mxu0 %v2427
    %2647 = vmatpush.bf16.msra.mxu0 %v2423
    %2648 = vmatpush.bf16.msra.mxu0 %v2419
    %2649 = vmatpush.bf16.msra.mxu0 %v2415
    %2650 = vmatpush.bf16.msra.mxu0 %v2411
    %2651 = vmatpush.bf16.msra.mxu0 %v2407
    %2652 = vmatmul.bf16.gmra.mxu0 %v1850
    %v2653 = vpop.f32.mrf.mxu0
    %v2654 = vadd.f32 %v2641, %v2653
    %v2655 = vpop.f32.mrf.mxu0
    %2656 = vdwg.mxu0
    %2657 = vmatpush.bf16.msra.mxu0 %v2467
    %2658 = vmatpush.bf16.msra.mxu0 %v2463
    %2659 = vmatpush.bf16.msra.mxu0 %v2459
    %2660 = vmatpush.bf16.msra.mxu0 %v2455
    %2661 = vmatpush.bf16.msra.mxu0 %v2451
    %2662 = vmatpush.bf16.msra.mxu0 %v2447
    %2663 = vmatpush.bf16.msra.mxu0 %v2443
    %2664 = vmatpush.bf16.msra.mxu0 %v2439
    %2665 = vmatmul.bf16.gmra.mxu0 %v1851
    %v2666 = vpop.f32.mrf.mxu0
    %v2667 = vadd.f32 %v2654, %v2666
    %v2668 = vpop.f32.mrf.mxu0
    %2669 = vdwg.mxu0
    %2670 = vmatpush.bf16.msra.mxu0 %v2499
    %2671 = vmatpush.bf16.msra.mxu0 %v2495
    %2672 = vmatpush.bf16.msra.mxu0 %v2491
    %2673 = vmatpush.bf16.msra.mxu0 %v2487
    %2674 = vmatpush.bf16.msra.mxu0 %v2483
    %2675 = vmatpush.bf16.msra.mxu0 %v2479
    %2676 = vmatpush.bf16.msra.mxu0 %v2475
    %2677 = vmatpush.bf16.msra.mxu0 %v2471
    %2678 = vmatmul.bf16.gmra.mxu0 %v1852
    %v2679 = vpop.f32.mrf.mxu0
    %v2680 = vadd.f32 %v2667, %v2679
    %v2681 = vpop.f32.mrf.mxu0
    %2682 = vdwg.mxu0
    %2683 = vmatpush.bf16.msra.mxu0 %v2404
    %2684 = vmatpush.bf16.msra.mxu0 %v2400
    %2685 = vmatpush.bf16.msra.mxu0 %v2396
    %2686 = vmatpush.bf16.msra.mxu0 %v2392
    %2687 = vmatpush.bf16.msra.mxu0 %v2388
    %2688 = vmatpush.bf16.msra.mxu0 %v2384
    %2689 = vmatpush.bf16.msra.mxu0 %v2380
    %2690 = vmatpush.bf16.msra.mxu0 %v2376
    %2691 = vmatmul.bf16.gmra.mxu0 %v1849
    %v2692 = vpop.f32.mrf.mxu0
    %v2693 = vadd.f32 %v1984, %v2692
    %v2694 = vpop.f32.mrf.mxu0
    %2695 = vdwg.mxu0
    %2696 = vmatpush.bf16.msra.mxu0 %v2436
    %2697 = vmatpush.bf16.msra.mxu0 %v2432
    %2698 = vmatpush.bf16.msra.mxu0 %v2428
    %2699 = vmatpush.bf16.msra.mxu0 %v2424
    %2700 = vmatpush.bf16.msra.mxu0 %v2420
    %2701 = vmatpush.bf16.msra.mxu0 %v2416
    %2702 = vmatpush.bf16.msra.mxu0 %v2412
    %2703 = vmatpush.bf16.msra.mxu0 %v2408
    %2704 = vmatmul.bf16.gmra.mxu0 %v1850
    %v2705 = vpop.f32.mrf.mxu0
    %v2706 = vadd.f32 %v2693, %v2705
    %v2707 = vpop.f32.mrf.mxu0
    %2708 = vdwg.mxu0
    %2709 = vmatpush.bf16.msra.mxu0 %v2468
    %2710 = vmatpush.bf16.msra.mxu0 %v2464
    %2711 = vmatpush.bf16.msra.mxu0 %v2460
    %2712 = vmatpush.bf16.msra.mxu0 %v2456
    %2713 = vmatpush.bf16.msra.mxu0 %v2452
    %2714 = vmatpush.bf16.msra.mxu0 %v2448
    %2715 = vmatpush.bf16.msra.mxu0 %v2444
    %2716 = vmatpush.bf16.msra.mxu0 %v2440
    %2717 = vmatmul.bf16.gmra.mxu0 %v1851
    %v2718 = vpop.f32.mrf.mxu0
    %v2719 = vadd.f32 %v2706, %v2718
    %v2720 = vpop.f32.mrf.mxu0
    %2721 = vdwg.mxu0
    %2722 = vmatpush.bf16.msra.mxu0 %v2500
    %2723 = vmatpush.bf16.msra.mxu0 %v2496
    %2724 = vmatpush.bf16.msra.mxu0 %v2492
    %2725 = vmatpush.bf16.msra.mxu0 %v2488
    %2726 = vmatpush.bf16.msra.mxu0 %v2484
    %2727 = vmatpush.bf16.msra.mxu0 %v2480
    %2728 = vmatpush.bf16.msra.mxu0 %v2476
    %2729 = vmatpush.bf16.msra.mxu0 %v2472
    %2730 = vmatmul.bf16.gmra.mxu0 %v1852
    %v2731 = vpop.f32.mrf.mxu0
    %v2732 = vadd.f32 %v2719, %v2731
    %v2733 = vpop.f32.mrf.mxu0
    %2734 = vdwg.mxu0
    %2735 = vmatpush.bf16.msra.mxu0 %v2405
    %2736 = vmatpush.bf16.msra.mxu0 %v2401
    %2737 = vmatpush.bf16.msra.mxu0 %v2397
    %2738 = vmatpush.bf16.msra.mxu0 %v2393
    %2739 = vmatpush.bf16.msra.mxu0 %v2389
    %2740 = vmatpush.bf16.msra.mxu0 %v2385
    %2741 = vmatpush.bf16.msra.mxu0 %v2381
    %2742 = vmatpush.bf16.msra.mxu0 %v2377
    %2743 = vmatmul.bf16.gmra.mxu0 %v1849
    %v2744 = vpop.f32.mrf.mxu0
    %v2745 = vadd.f32 %v1985, %v2744
    %v2746 = vpop.f32.mrf.mxu0
    %2747 = vdwg.mxu0
    %2748 = vmatpush.bf16.msra.mxu0 %v2437
    %2749 = vmatpush.bf16.msra.mxu0 %v2433
    %2750 = vmatpush.bf16.msra.mxu0 %v2429
    %2751 = vmatpush.bf16.msra.mxu0 %v2425
    %2752 = vmatpush.bf16.msra.mxu0 %v2421
    %2753 = vmatpush.bf16.msra.mxu0 %v2417
    %2754 = vmatpush.bf16.msra.mxu0 %v2413
    %2755 = vmatpush.bf16.msra.mxu0 %v2409
    %2756 = vmatmul.bf16.gmra.mxu0 %v1850
    %v2757 = vpop.f32.mrf.mxu0
    %v2758 = vadd.f32 %v2745, %v2757
    %v2759 = vpop.f32.mrf.mxu0
    %2760 = vdwg.mxu0
    %2761 = vmatpush.bf16.msra.mxu0 %v2469
    %2762 = vmatpush.bf16.msra.mxu0 %v2465
    %2763 = vmatpush.bf16.msra.mxu0 %v2461
    %2764 = vmatpush.bf16.msra.mxu0 %v2457
    %2765 = vmatpush.bf16.msra.mxu0 %v2453
    %2766 = vmatpush.bf16.msra.mxu0 %v2449
    %2767 = vmatpush.bf16.msra.mxu0 %v2445
    %2768 = vmatpush.bf16.msra.mxu0 %v2441
    %2769 = vmatmul.bf16.gmra.mxu0 %v1851
    %v2770 = vpop.f32.mrf.mxu0
    %v2771 = vadd.f32 %v2758, %v2770
    %v2772 = vpop.f32.mrf.mxu0
    %2773 = vdwg.mxu0
    %2774 = vmatpush.bf16.msra.mxu0 %v2501
    %2775 = vmatpush.bf16.msra.mxu0 %v2497
    %2776 = vmatpush.bf16.msra.mxu0 %v2493
    %2777 = vmatpush.bf16.msra.mxu0 %v2489
    %2778 = vmatpush.bf16.msra.mxu0 %v2485
    %2779 = vmatpush.bf16.msra.mxu0 %v2481
    %2780 = vmatpush.bf16.msra.mxu0 %v2477
    %2781 = vmatpush.bf16.msra.mxu0 %v2473
    %2782 = vmatmul.bf16.gmra.mxu0 %v1852
    %v2783 = vpop.f32.mrf.mxu0
    %v2784 = vadd.f32 %v2771, %v2783
    %v2785 = vpop.f32.mrf.mxu0
    %2786 = vdwg.mxu0
    %2787 = vmatpush.bf16.msra.mxu0 %v2406
    %2788 = vmatpush.bf16.msra.mxu0 %v2402
    %2789 = vmatpush.bf16.msra.mxu0 %v2398
    %2790 = vmatpush.bf16.msra.mxu0 %v2394
    %2791 = vmatpush.bf16.msra.mxu0 %v2390
    %2792 = vmatpush.bf16.msra.mxu0 %v2386
    %2793 = vmatpush.bf16.msra.mxu0 %v2382
    %2794 = vmatpush.bf16.msra.mxu0 %v2378
    %2795 = vmatmul.bf16.gmra.mxu0 %v1849
    %v2796 = vpop.f32.mrf.mxu0
    %v2797 = vadd.f32 %v1986, %v2796
    %v2798 = vpop.f32.mrf.mxu0
    %2799 = vdwg.mxu0
    %2800 = vmatpush.bf16.msra.mxu0 %v2438
    %2801 = vmatpush.bf16.msra.mxu0 %v2434
    %2802 = vmatpush.bf16.msra.mxu0 %v2430
    %2803 = vmatpush.bf16.msra.mxu0 %v2426
    %2804 = vmatpush.bf16.msra.mxu0 %v2422
    %2805 = vmatpush.bf16.msra.mxu0 %v2418
    %2806 = vmatpush.bf16.msra.mxu0 %v2414
    %2807 = vmatpush.bf16.msra.mxu0 %v2410
    %2808 = vmatmul.bf16.gmra.mxu0 %v1850
    %v2809 = vpop.f32.mrf.mxu0
    %v2810 = vadd.f32 %v2797, %v2809
    %v2811 = vpop.f32.mrf.mxu0
    %2812 = vdwg.mxu0
    %2813 = vmatpush.bf16.msra.mxu0 %v2470
    %2814 = vmatpush.bf16.msra.mxu0 %v2466
    %2815 = vmatpush.bf16.msra.mxu0 %v2462
    %2816 = vmatpush.bf16.msra.mxu0 %v2458
    %2817 = vmatpush.bf16.msra.mxu0 %v2454
    %2818 = vmatpush.bf16.msra.mxu0 %v2450
    %2819 = vmatpush.bf16.msra.mxu0 %v2446
    %2820 = vmatpush.bf16.msra.mxu0 %v2442
    %2821 = vmatmul.bf16.gmra.mxu0 %v1851
    %v2822 = vpop.f32.mrf.mxu0
    %v2823 = vadd.f32 %v2810, %v2822
    %v2824 = vpop.f32.mrf.mxu0
    %2825 = vdwg.mxu0
    %2826 = vmatpush.bf16.msra.mxu0 %v2502
    %2827 = vmatpush.bf16.msra.mxu0 %v2498
    %2828 = vmatpush.bf16.msra.mxu0 %v2494
    %2829 = vmatpush.bf16.msra.mxu0 %v2490
    %2830 = vmatpush.bf16.msra.mxu0 %v2486
    %2831 = vmatpush.bf16.msra.mxu0 %v2482
    %2832 = vmatpush.bf16.msra.mxu0 %v2478
    %2833 = vmatpush.bf16.msra.mxu0 %v2474
    %2834 = vmatmul.bf16.gmra.mxu0 %v1852
    %v2835 = vpop.f32.mrf.mxu0
    %v2836 = vadd.f32 %v2823, %v2835
    %v2837 = vpop.f32.mrf.mxu0
    %2838 = vdwg.mxu0
    %v2839 = vmax.f32 %v2680, 0.0
    %v2840 = vmax.f32 %v2732, 0.0
    %v2841 = vmax.f32 %v2784, 0.0
    %v2842 = vmax.f32 %v2836, 0.0
    %v2843 = vpack.c.bf16 %v2839, %v2839
    %v2844 = vpack.c.bf16 %v2840, %v2840
    %v2845 = vpack.c.bf16 %v2841, %v2841
    %v2846 = vpack.c.bf16 %v2842, %v2842
    %v2847 = vld [vmem:[%s6] sm:$0xf]
    %v2848 = vld [vmem:[%s6 + $0x4] sm:$0xf]
    %v2849 = vld [vmem:[%s6 + $0x8] sm:$0xf]
    %v2850 = vld [vmem:[%s6 + $0xc] sm:$0xf]
    %v2851 = vld [vmem:[%s6 + $0x10] sm:$0xf]
    %v2852 = vld [vmem:[%s6 + $0x14] sm:$0xf]
    %v2853 = vld [vmem:[%s6 + $0x18] sm:$0xf]
    %v2854 = vld [vmem:[%s6 + $0x1c] sm:$0xf]
    %v2855 = vld [vmem:[%s6 + $0x20] sm:$0xf]
    %v2856 = vld [vmem:[%s6 + $0x24] sm:$0xf]
    %v2857 = vld [vmem:[%s6 + $0x28] sm:$0xf]
    %v2858 = vld [vmem:[%s6 + $0x2c] sm:$0xf]
    %v2859 = vld [vmem:[%s6 + $0x30] sm:$0xf]
    %v2860 = vld [vmem:[%s6 + $0x34] sm:$0xf]
    %v2861 = vld [vmem:[%s6 + $0x38] sm:$0xf]
    %v2862 = vld [vmem:[%s6 + $0x3c] sm:$0xf]
    %v2863 = vld [vmem:[%s6 + $0x40] sm:$0xf]
    %v2864 = vld [vmem:[%s6 + $0x44] sm:$0xf]
    %v2865 = vld [vmem:[%s6 + $0x48] sm:$0xf]
    %v2866 = vld [vmem:[%s6 + $0x4c] sm:$0xf]
    %v2867 = vld [vmem:[%s6 + $0x50] sm:$0xf]
    %v2868 = vld [vmem:[%s6 + $0x54] sm:$0xf]
    %v2869 = vld [vmem:[%s6 + $0x58] sm:$0xf]
    %v2870 = vld [vmem:[%s6 + $0x5c] sm:$0xf]
    %v2871 = vld [vmem:[%s6 + $0x60] sm:$0xf]
    %v2872 = vld [vmem:[%s6 + $0x64] sm:$0xf]
    %v2873 = vld [vmem:[%s6 + $0x68] sm:$0xf]
    %v2874 = vld [vmem:[%s6 + $0x6c] sm:$0xf]
    %v2875 = vld [vmem:[%s6 + $0x70] sm:$0xf]
    %v2876 = vld [vmem:[%s6 + $0x74] sm:$0xf]
    %v2877 = vld [vmem:[%s6 + $0x78] sm:$0xf]
    %v2878 = vld [vmem:[%s6 + $0x7c] sm:$0xf]
    %v2879 = vld [vmem:[%s6 + $0x80] sm:$0xf]
    %v2880 = vld [vmem:[%s6 + $0x84] sm:$0xf]
    %v2881 = vld [vmem:[%s6 + $0x88] sm:$0xf]
    %v2882 = vld [vmem:[%s6 + $0x8c] sm:$0xf]
    %v2883 = vld [vmem:[%s6 + $0x90] sm:$0xf]
    %v2884 = vld [vmem:[%s6 + $0x94] sm:$0xf]
    %v2885 = vld [vmem:[%s6 + $0x98] sm:$0xf]
    %v2886 = vld [vmem:[%s6 + $0x9c] sm:$0xf]
    %v2887 = vld [vmem:[%s6 + $0xa0] sm:$0xf]
    %v2888 = vld [vmem:[%s6 + $0xa4] sm:$0xf]
    %v2889 = vld [vmem:[%s6 + $0xa8] sm:$0xf]
    %v2890 = vld [vmem:[%s6 + $0xac] sm:$0xf]
    %v2891 = vld [vmem:[%s6 + $0xb0] sm:$0xf]
    %v2892 = vld [vmem:[%s6 + $0xb4] sm:$0xf]
    %v2893 = vld [vmem:[%s6 + $0xb8] sm:$0xf]
    %v2894 = vld [vmem:[%s6 + $0xbc] sm:$0xf]
    %v2895 = vld [vmem:[%s6 + $0xc0] sm:$0xf]
    %v2896 = vld [vmem:[%s6 + $0xc4] sm:$0xf]
    %v2897 = vld [vmem:[%s6 + $0xc8] sm:$0xf]
    %v2898 = vld [vmem:[%s6 + $0xcc] sm:$0xf]
    %v2899 = vld [vmem:[%s6 + $0xd0] sm:$0xf]
    %v2900 = vld [vmem:[%s6 + $0xd4] sm:$0xf]
    %v2901 = vld [vmem:[%s6 + $0xd8] sm:$0xf]
    %v2902 = vld [vmem:[%s6 + $0xdc] sm:$0xf]
    %v2903 = vld [vmem:[%s6 + $0xe0] sm:$0xf]
    %v2904 = vld [vmem:[%s6 + $0xe4] sm:$0xf]
    %v2905 = vld [vmem:[%s6 + $0xe8] sm:$0xf]
    %v2906 = vld [vmem:[%s6 + $0xec] sm:$0xf]
    %v2907 = vld [vmem:[%s6 + $0xf0] sm:$0xf]
    %v2908 = vld [vmem:[%s6 + $0xf4] sm:$0xf]
    %v2909 = vld [vmem:[%s6 + $0xf8] sm:$0xf]
    %v2910 = vld [vmem:[%s6 + $0xfc] sm:$0xf]
    %v2911 = vld [vmem:[%s7] sm:$0x1]
    %v2913 = vperm.slane %v2911, 0
    %v2979 = vunpack.c.l.b16 %v2847
    %v2980 = vunpack.c.l.b16 %v2848
    %v2981 = vunpack.c.l.b16 %v2849
    %v2982 = vunpack.c.l.b16 %v2850
    %v2983 = vunpack.c.l.b16 %v2851
    %v2984 = vunpack.c.l.b16 %v2852
    %v2985 = vunpack.c.l.b16 %v2853
    %v2986 = vunpack.c.l.b16 %v2854
    %v2987 = vunpack.c.l.b16 %v2855
    %v2988 = vunpack.c.l.b16 %v2856
    %v2989 = vunpack.c.l.b16 %v2857
    %v2990 = vunpack.c.l.b16 %v2858
    %v2991 = vunpack.c.l.b16 %v2859
    %v2992 = vunpack.c.l.b16 %v2860
    %v2993 = vunpack.c.l.b16 %v2861
    %v2994 = vunpack.c.l.b16 %v2862
    %v2995 = vunpack.c.l.b16 %v2863
    %v2996 = vunpack.c.l.b16 %v2864
    %v2997 = vunpack.c.l.b16 %v2865
    %v2998 = vunpack.c.l.b16 %v2866
    %v2999 = vunpack.c.l.b16 %v2867
    %v3000 = vunpack.c.l.b16 %v2868
    %v3001 = vunpack.c.l.b16 %v2869
    %v3002 = vunpack.c.l.b16 %v2870
    %v3003 = vunpack.c.l.b16 %v2871
    %v3004 = vunpack.c.l.b16 %v2872
    %v3005 = vunpack.c.l.b16 %v2873
    %v3006 = vunpack.c.l.b16 %v2874
    %v3007 = vunpack.c.l.b16 %v2875
    %v3008 = vunpack.c.l.b16 %v2876
    %v3009 = vunpack.c.l.b16 %v2877
    %v3010 = vunpack.c.l.b16 %v2878
    %v3011 = vunpack.c.l.b16 %v2879
    %v3012 = vunpack.c.l.b16 %v2880
    %v3013 = vunpack.c.l.b16 %v2881
    %v3014 = vunpack.c.l.b16 %v2882
    %v3015 = vunpack.c.l.b16 %v2883
    %v3016 = vunpack.c.l.b16 %v2884
    %v3017 = vunpack.c.l.b16 %v2885
    %v3018 = vunpack.c.l.b16 %v2886
    %v3019 = vunpack.c.l.b16 %v2887
    %v3020 = vunpack.c.l.b16 %v2888
    %v3021 = vunpack.c.l.b16 %v2889
    %v3022 = vunpack.c.l.b16 %v2890
    %v3023 = vunpack.c.l.b16 %v2891
    %v3024 = vunpack.c.l.b16 %v2892
    %v3025 = vunpack.c.l.b16 %v2893
    %v3026 = vunpack.c.l.b16 %v2894
    %v3027 = vunpack.c.l.b16 %v2895
    %v3028 = vunpack.c.l.b16 %v2896
    %v3029 = vunpack.c.l.b16 %v2897
    %v3030 = vunpack.c.l.b16 %v2898
    %v3031 = vunpack.c.l.b16 %v2899
    %v3032 = vunpack.c.l.b16 %v2900
    %v3033 = vunpack.c.l.b16 %v2901
    %v3034 = vunpack.c.l.b16 %v2902
    %v3035 = vunpack.c.l.b16 %v2903
    %v3036 = vunpack.c.l.b16 %v2904
    %v3037 = vunpack.c.l.b16 %v2905
    %v3038 = vunpack.c.l.b16 %v2906
    %v3039 = vunpack.c.l.b16 %v2907
    %v3040 = vunpack.c.l.b16 %v2908
    %v3041 = vunpack.c.l.b16 %v2909
    %v3042 = vunpack.c.l.b16 %v2910
    %v3043 = vpack.c.b16 %v2980, %v2979
    %v3044 = vpack.c.b16 %v2982, %v2981
    %v3045 = vpack.c.b16 %v2984, %v2983
    %v3046 = vpack.c.b16 %v2986, %v2985
    %v3047 = vpack.c.b16 %v2988, %v2987
    %v3048 = vpack.c.b16 %v2990, %v2989
    %v3049 = vpack.c.b16 %v2992, %v2991
    %v3050 = vpack.c.b16 %v2994, %v2993
    %v3051 = vpack.c.b16 %v2996, %v2995
    %v3052 = vpack.c.b16 %v2998, %v2997
    %v3053 = vpack.c.b16 %v3000, %v2999
    %v3054 = vpack.c.b16 %v3002, %v3001
    %v3055 = vpack.c.b16 %v3004, %v3003
    %v3056 = vpack.c.b16 %v3006, %v3005
    %v3057 = vpack.c.b16 %v3008, %v3007
    %v3058 = vpack.c.b16 %v3010, %v3009
    %v3059 = vpack.c.b16 %v3012, %v3011
    %v3060 = vpack.c.b16 %v3014, %v3013
    %v3061 = vpack.c.b16 %v3016, %v3015
    %v3062 = vpack.c.b16 %v3018, %v3017
    %v3063 = vpack.c.b16 %v3020, %v3019
    %v3064 = vpack.c.b16 %v3022, %v3021
    %v3065 = vpack.c.b16 %v3024, %v3023
    %v3066 = vpack.c.b16 %v3026, %v3025
    %v3067 = vpack.c.b16 %v3028, %v3027
    %v3068 = vpack.c.b16 %v3030, %v3029
    %v3069 = vpack.c.b16 %v3032, %v3031
    %v3070 = vpack.c.b16 %v3034, %v3033
    %v3071 = vpack.c.b16 %v3036, %v3035
    %v3072 = vpack.c.b16 %v3038, %v3037
    %v3073 = vpack.c.b16 %v3040, %v3039
    %v3074 = vpack.c.b16 %v3042, %v3041
    %3107 = vmatpush.bf16.msra.mxu0 %v3050
    %3108 = vmatpush.bf16.msra.mxu0 %v3049
    %3109 = vmatpush.bf16.msra.mxu0 %v3048
    %3110 = vmatpush.bf16.msra.mxu0 %v3047
    %3111 = vmatpush.bf16.msra.mxu0 %v3046
    %3112 = vmatpush.bf16.msra.mxu0 %v3045
    %3113 = vmatpush.bf16.msra.mxu0 %v3044
    %3114 = vmatpush.bf16.msra.mxu0 %v3043
    %3115 = vmatmul.bf16.gmra.mxu0 %v2843
    %v3116 = vpop.f32.mrf.mxu0
    %v3117 = vadd.f32 %v2913, %v3116
    %v3118 = vpop.f32.mrf.mxu0
    %3119 = vdwg.mxu0
    %3120 = vmatpush.bf16.msra.mxu0 %v3058
    %3121 = vmatpush.bf16.msra.mxu0 %v3057
    %3122 = vmatpush.bf16.msra.mxu0 %v3056
    %3123 = vmatpush.bf16.msra.mxu0 %v3055
    %3124 = vmatpush.bf16.msra.mxu0 %v3054
    %3125 = vmatpush.bf16.msra.mxu0 %v3053
    %3126 = vmatpush.bf16.msra.mxu0 %v3052
    %3127 = vmatpush.bf16.msra.mxu0 %v3051
    %3128 = vmatmul.bf16.gmra.mxu0 %v2844
    %v3129 = vpop.f32.mrf.mxu0
    %v3130 = vadd.f32 %v3117, %v3129
    %v3131 = vpop.f32.mrf.mxu0
    %3132 = vdwg.mxu0
    %3133 = vmatpush.bf16.msra.mxu0 %v3066
    %3134 = vmatpush.bf16.msra.mxu0 %v3065
    %3135 = vmatpush.bf16.msra.mxu0 %v3064
    %3136 = vmatpush.bf16.msra.mxu0 %v3063
    %3137 = vmatpush.bf16.msra.mxu0 %v3062
    %3138 = vmatpush.bf16.msra.mxu0 %v3061
    %3139 = vmatpush.bf16.msra.mxu0 %v3060
    %3140 = vmatpush.bf16.msra.mxu0 %v3059
    %3141 = vmatmul.bf16.gmra.mxu0 %v2845
    %v3142 = vpop.f32.mrf.mxu0
    %v3143 = vadd.f32 %v3130, %v3142
    %v3144 = vpop.f32.mrf.mxu0
    %3145 = vdwg.mxu0
    %3146 = vmatpush.bf16.msra.mxu0 %v3074
    %3147 = vmatpush.bf16.msra.mxu0 %v3073
    %3148 = vmatpush.bf16.msra.mxu0 %v3072
    %3149 = vmatpush.bf16.msra.mxu0 %v3071
    %3150 = vmatpush.bf16.msra.mxu0 %v3070
    %3151 = vmatpush.bf16.msra.mxu0 %v3069
    %3152 = vmatpush.bf16.msra.mxu0 %v3068
    %3153 = vmatpush.bf16.msra.mxu0 %v3067
    %3154 = vmatmul.bf16.gmra.mxu0 %v2846
    %v3155 = vpop.f32.mrf.mxu0
    %v3156 = vadd.f32 %v3143, %v3155
    %v3157 = vpop.f32.mrf.mxu0
    %3158 = vdwg.mxu0
    %v3159 = vld [vmem:[%s1] sm:$0xff]
    %v3160 = vmul.f32 %v3156, 0.5
    %v3161 = vmul.f32 %v3160, 1.442695
    %v3162 = vpow.pop %v3161
    %3164 = vrot.lane.b32.xlu0 %v3162, 126
    %v3165 = vpop.permute.xlu0 %3164
    %v3167 = vmul.f32 %v3159, %v3165
    %v3168 = vadd.f32 %v3156, %v3167
    %v3169 = vld [vmem:[%s9] sm:$0xf]
    %v3170 = vld [vmem:[%s8] ss:$2 sm:$0xf]
    %3172 = vset.pattern.permute.xlu0 0
    %3173 = vperm.xlu0 %3172, %v3168
    %v3174 = vpop.permute.xlu0 %3173
    %v3177 = vperm.slane %v3170, 0
    %v3178 = vperm.slane %v3170, 1
    %v3179 = vperm.slane %v3170, 2
    %v3180 = vperm.slane %v3170, 3
    %v3185 = vmul.f32 %v3174, %v3177
    %v3186 = vmul.f32 %v3174, %v3178
    %v3187 = vmul.f32 %v3174, %v3179
    %v3188 = vmul.f32 %v3174, %v3180
    %v3190 = vperm.slane %v3169, 0
    %v3191 = vperm.slane %v3169, 1
    %v3192 = vperm.slane %v3169, 2
    %v3193 = vperm.slane %v3169, 3
    %v3198 = vadd.f32 %v3190, %v3185
    %v3199 = vadd.f32 %v3191, %v3186
    %v3200 = vadd.f32 %v3192, %v3187
    %v3201 = vadd.f32 %v3193, %v3188
    %s3202 = scalar_lea.vmem %s8, 1
    %v3203 = vld [vmem:[%s3202] ss:$2 sm:$0xf]
    %3204 = vset.pattern.permute.xlu0 1
    %3205 = vperm.xlu0 %3204, %v3168
    %v3206 = vpop.permute.xlu0 %3205
    %v3209 = vperm.slane %v3203, 0
    %v3210 = vperm.slane %v3203, 1
    %v3211 = vperm.slane %v3203, 2
    %v3212 = vperm.slane %v3203, 3
    %v3217 = vmul.f32 %v3206, %v3209
    %v3218 = vmul.f32 %v3206, %v3210
    %v3219 = vmul.f32 %v3206, %v3211
    %v3220 = vmul.f32 %v3206, %v3212
    %v3221 = vadd.f32 %v3198, %v3217
    %v3222 = vadd.f32 %v3199, %v3218
    %v3223 = vadd.f32 %v3200, %v3219
    %v3224 = vadd.f32 %v3201, %v3220
    %v3225 = vmax.f32 %v3221, 0.0
    %v3226 = vmax.f32 %v3222, 0.0
    %v3227 = vmax.f32 %v3223, 0.0
    %v3228 = vmax.f32 %v3224, 0.0
    %v3229 = vpack.c.bf16 %v3225, %v3225
    %v3230 = vpack.c.bf16 %v3226, %v3226
    %v3231 = vpack.c.bf16 %v3227, %v3227
    %v3232 = vpack.c.bf16 %v3228, %v3228
    %v3233 = vld [vmem:[#allocation7] sm:$0xff]
    %v3234 = vld [vmem:[#allocation7 + $0x8] sm:$0xff]
    %v3235 = vld [vmem:[#allocation7 + $0x10] sm:$0xff]
    %v3236 = vld [vmem:[#allocation7 + $0x18] sm:$0xff]
    %v3237 = vld [vmem:[#allocation7 + $0x20] sm:$0xff]
    %v3238 = vld [vmem:[#allocation7 + $0x28] sm:$0xff]
    %v3239 = vld [vmem:[#allocation7 + $0x30] sm:$0xff]
    %v3240 = vld [vmem:[#allocation7 + $0x38] sm:$0xff]
    %v3241 = vld [vmem:[#allocation7 + $0x40] sm:$0xff]
    %v3242 = vld [vmem:[#allocation7 + $0x48] sm:$0xff]
    %v3243 = vld [vmem:[#allocation7 + $0x50] sm:$0xff]
    %v3244 = vld [vmem:[#allocation7 + $0x58] sm:$0xff]
    %v3245 = vld [vmem:[#allocation7 + $0x60] sm:$0xff]
    %v3246 = vld [vmem:[#allocation7 + $0x68] sm:$0xff]
    %v3247 = vld [vmem:[#allocation7 + $0x70] sm:$0xff]
    %v3248 = vld [vmem:[#allocation7 + $0x78] sm:$0xff]
    %v3249 = vld [vmem:[#allocation7 + $0x80] sm:$0xff]
    %v3250 = vld [vmem:[#allocation7 + $0x88] sm:$0xff]
    %v3251 = vld [vmem:[#allocation7 + $0x90] sm:$0xff]
    %v3252 = vld [vmem:[#allocation7 + $0x98] sm:$0xff]
    %v3253 = vld [vmem:[#allocation7 + $0xa0] sm:$0xff]
    %v3254 = vld [vmem:[#allocation7 + $0xa8] sm:$0xff]
    %v3255 = vld [vmem:[#allocation7 + $0xb0] sm:$0xff]
    %v3256 = vld [vmem:[#allocation7 + $0xb8] sm:$0xff]
    %v3257 = vld [vmem:[#allocation7 + $0xc0] sm:$0xff]
    %v3258 = vld [vmem:[#allocation7 + $0xc8] sm:$0xff]
    %v3259 = vld [vmem:[#allocation7 + $0xd0] sm:$0xff]
    %v3260 = vld [vmem:[#allocation7 + $0xd8] sm:$0xff]
    %v3261 = vld [vmem:[#allocation7 + $0xe0] sm:$0xff]
    %v3262 = vld [vmem:[#allocation7 + $0xe8] sm:$0xff]
    %v3263 = vld [vmem:[#allocation7 + $0xf0] sm:$0xff]
    %v3264 = vld [vmem:[#allocation7 + $0xf8] sm:$0xff]
    %v3265 = vld [vmem:[#allocation7 + $0x100] sm:$0xff]
    %v3266 = vld [vmem:[#allocation7 + $0x108] sm:$0xff]
    %v3267 = vld [vmem:[#allocation7 + $0x110] sm:$0xff]
    %v3268 = vld [vmem:[#allocation7 + $0x118] sm:$0xff]
    %v3269 = vld [vmem:[#allocation7 + $0x120] sm:$0xff]
    %v3270 = vld [vmem:[#allocation7 + $0x128] sm:$0xff]
    %v3271 = vld [vmem:[#allocation7 + $0x130] sm:$0xff]
    %v3272 = vld [vmem:[#allocation7 + $0x138] sm:$0xff]
    %v3273 = vld [vmem:[#allocation7 + $0x140] sm:$0xff]
    %v3274 = vld [vmem:[#allocation7 + $0x148] sm:$0xff]
    %v3275 = vld [vmem:[#allocation7 + $0x150] sm:$0xff]
    %v3276 = vld [vmem:[#allocation7 + $0x158] sm:$0xff]
    %v3277 = vld [vmem:[#allocation7 + $0x160] sm:$0xff]
    %v3278 = vld [vmem:[#allocation7 + $0x168] sm:$0xff]
    %v3279 = vld [vmem:[#allocation7 + $0x170] sm:$0xff]
    %v3280 = vld [vmem:[#allocation7 + $0x178] sm:$0xff]
    %v3281 = vld [vmem:[#allocation7 + $0x180] sm:$0xff]
    %v3282 = vld [vmem:[#allocation7 + $0x188] sm:$0xff]
    %v3283 = vld [vmem:[#allocation7 + $0x190] sm:$0xff]
    %v3284 = vld [vmem:[#allocation7 + $0x198] sm:$0xff]
    %v3285 = vld [vmem:[#allocation7 + $0x1a0] sm:$0xff]
    %v3286 = vld [vmem:[#allocation7 + $0x1a8] sm:$0xff]
    %v3287 = vld [vmem:[#allocation7 + $0x1b0] sm:$0xff]
    %v3288 = vld [vmem:[#allocation7 + $0x1b8] sm:$0xff]
    %v3289 = vld [vmem:[#allocation7 + $0x1c0] sm:$0xff]
    %v3290 = vld [vmem:[#allocation7 + $0x1c8] sm:$0xff]
    %v3291 = vld [vmem:[#allocation7 + $0x1d0] sm:$0xff]
    %v3292 = vld [vmem:[#allocation7 + $0x1d8] sm:$0xff]
    %v3293 = vld [vmem:[#allocation7 + $0x1e0] sm:$0xff]
    %v3294 = vld [vmem:[#allocation7 + $0x1e8] sm:$0xff]
    %v3295 = vld [vmem:[#allocation7 + $0x1f0] sm:$0xff]
    %v3296 = vld [vmem:[#allocation7 + $0x1f8] sm:$0xff]
    %v3297 = vld [vmem:[#allocation7 + $0x200] sm:$0xff]
    %v3298 = vld [vmem:[#allocation7 + $0x208] sm:$0xff]
    %v3299 = vld [vmem:[#allocation7 + $0x210] sm:$0xff]
    %v3300 = vld [vmem:[#allocation7 + $0x218] sm:$0xff]
    %v3301 = vld [vmem:[#allocation7 + $0x220] sm:$0xff]
    %v3302 = vld [vmem:[#allocation7 + $0x228] sm:$0xff]
    %v3303 = vld [vmem:[#allocation7 + $0x230] sm:$0xff]
    %v3304 = vld [vmem:[#allocation7 + $0x238] sm:$0xff]
    %v3305 = vld [vmem:[#allocation7 + $0x240] sm:$0xff]
    %v3306 = vld [vmem:[#allocation7 + $0x248] sm:$0xff]
    %v3307 = vld [vmem:[#allocation7 + $0x250] sm:$0xff]
    %v3308 = vld [vmem:[#allocation7 + $0x258] sm:$0xff]
    %v3309 = vld [vmem:[#allocation7 + $0x260] sm:$0xff]
    %v3310 = vld [vmem:[#allocation7 + $0x268] sm:$0xff]
    %v3311 = vld [vmem:[#allocation7 + $0x270] sm:$0xff]
    %v3312 = vld [vmem:[#allocation7 + $0x278] sm:$0xff]
    %v3313 = vld [vmem:[#allocation7 + $0x280] sm:$0xff]
    %v3314 = vld [vmem:[#allocation7 + $0x288] sm:$0xff]
    %v3315 = vld [vmem:[#allocation7 + $0x290] sm:$0xff]
    %v3316 = vld [vmem:[#allocation7 + $0x298] sm:$0xff]
    %v3317 = vld [vmem:[#allocation7 + $0x2a0] sm:$0xff]
    %v3318 = vld [vmem:[#allocation7 + $0x2a8] sm:$0xff]
    %v3319 = vld [vmem:[#allocation7 + $0x2b0] sm:$0xff]
    %v3320 = vld [vmem:[#allocation7 + $0x2b8] sm:$0xff]
    %v3321 = vld [vmem:[#allocation7 + $0x2c0] sm:$0xff]
    %v3322 = vld [vmem:[#allocation7 + $0x2c8] sm:$0xff]
    %v3323 = vld [vmem:[#allocation7 + $0x2d0] sm:$0xff]
    %v3324 = vld [vmem:[#allocation7 + $0x2d8] sm:$0xff]
    %v3325 = vld [vmem:[#allocation7 + $0x2e0] sm:$0xff]
    %v3326 = vld [vmem:[#allocation7 + $0x2e8] sm:$0xff]
    %v3327 = vld [vmem:[#allocation7 + $0x2f0] sm:$0xff]
    %v3328 = vld [vmem:[#allocation7 + $0x2f8] sm:$0xff]
    %v3329 = vld [vmem:[#allocation7 + $0x300] sm:$0xff]
    %v3330 = vld [vmem:[#allocation7 + $0x308] sm:$0xff]
    %v3331 = vld [vmem:[#allocation7 + $0x310] sm:$0xff]
    %v3332 = vld [vmem:[#allocation7 + $0x318] sm:$0xff]
    %v3333 = vld [vmem:[#allocation7 + $0x320] sm:$0xff]
    %v3334 = vld [vmem:[#allocation7 + $0x328] sm:$0xff]
    %v3335 = vld [vmem:[#allocation7 + $0x330] sm:$0xff]
    %v3336 = vld [vmem:[#allocation7 + $0x338] sm:$0xff]
    %v3337 = vld [vmem:[#allocation7 + $0x340] sm:$0xff]
    %v3338 = vld [vmem:[#allocation7 + $0x348] sm:$0xff]
    %v3339 = vld [vmem:[#allocation7 + $0x350] sm:$0xff]
    %v3340 = vld [vmem:[#allocation7 + $0x358] sm:$0xff]
    %v3341 = vld [vmem:[#allocation7 + $0x360] sm:$0xff]
    %v3342 = vld [vmem:[#allocation7 + $0x368] sm:$0xff]
    %v3343 = vld [vmem:[#allocation7 + $0x370] sm:$0xff]
    %v3344 = vld [vmem:[#allocation7 + $0x378] sm:$0xff]
    %v3345 = vld [vmem:[#allocation7 + $0x380] sm:$0xff]
    %v3346 = vld [vmem:[#allocation7 + $0x388] sm:$0xff]
    %v3347 = vld [vmem:[#allocation7 + $0x390] sm:$0xff]
    %v3348 = vld [vmem:[#allocation7 + $0x398] sm:$0xff]
    %v3349 = vld [vmem:[#allocation7 + $0x3a0] sm:$0xff]
    %v3350 = vld [vmem:[#allocation7 + $0x3a8] sm:$0xff]
    %v3351 = vld [vmem:[#allocation7 + $0x3b0] sm:$0xff]
    %v3352 = vld [vmem:[#allocation7 + $0x3b8] sm:$0xff]
    %v3353 = vld [vmem:[#allocation7 + $0x3c0] sm:$0xff]
    %v3354 = vld [vmem:[#allocation7 + $0x3c8] sm:$0xff]
    %v3355 = vld [vmem:[#allocation7 + $0x3d0] sm:$0xff]
    %v3356 = vld [vmem:[#allocation7 + $0x3d8] sm:$0xff]
    %v3357 = vld [vmem:[#allocation7 + $0x3e0] sm:$0xff]
    %v3358 = vld [vmem:[#allocation7 + $0x3e8] sm:$0xff]
    %v3359 = vld [vmem:[#allocation7 + $0x3f0] sm:$0xff]
    %v3360 = vld [vmem:[#allocation7 + $0x3f8] sm:$0xff]
    %v3361 = vld [vmem:[%s11] sm:$0xf]
    %v3363 = vperm.slane %v3361, 0
    %v3364 = vperm.slane %v3361, 1
    %v3365 = vperm.slane %v3361, 2
    %v3366 = vperm.slane %v3361, 3
    %v3499 = vunpack.c.l.b16 %v3233
    %v3500 = vunpack.c.h.b16 %v3233
    %v3501 = vunpack.c.l.b16 %v3234
    %v3502 = vunpack.c.h.b16 %v3234
    %v3503 = vunpack.c.l.b16 %v3235
    %v3504 = vunpack.c.h.b16 %v3235
    %v3505 = vunpack.c.l.b16 %v3236
    %v3506 = vunpack.c.h.b16 %v3236
    %v3507 = vunpack.c.l.b16 %v3237
    %v3508 = vunpack.c.h.b16 %v3237
    %v3509 = vunpack.c.l.b16 %v3238
    %v3510 = vunpack.c.h.b16 %v3238
    %v3511 = vunpack.c.l.b16 %v3239
    %v3512 = vunpack.c.h.b16 %v3239
    %v3513 = vunpack.c.l.b16 %v3240
    %v3514 = vunpack.c.h.b16 %v3240
    %v3515 = vunpack.c.l.b16 %v3241
    %v3516 = vunpack.c.h.b16 %v3241
    %v3517 = vunpack.c.l.b16 %v3242
    %v3518 = vunpack.c.h.b16 %v3242
    %v3519 = vunpack.c.l.b16 %v3243
    %v3520 = vunpack.c.h.b16 %v3243
    %v3521 = vunpack.c.l.b16 %v3244
    %v3522 = vunpack.c.h.b16 %v3244
    %v3523 = vunpack.c.l.b16 %v3245
    %v3524 = vunpack.c.h.b16 %v3245
    %v3525 = vunpack.c.l.b16 %v3246
    %v3526 = vunpack.c.h.b16 %v3246
    %v3527 = vunpack.c.l.b16 %v3247
    %v3528 = vunpack.c.h.b16 %v3247
    %v3529 = vunpack.c.l.b16 %v3248
    %v3530 = vunpack.c.h.b16 %v3248
    %v3531 = vunpack.c.l.b16 %v3249
    %v3532 = vunpack.c.h.b16 %v3249
    %v3533 = vunpack.c.l.b16 %v3250
    %v3534 = vunpack.c.h.b16 %v3250
    %v3535 = vunpack.c.l.b16 %v3251
    %v3536 = vunpack.c.h.b16 %v3251
    %v3537 = vunpack.c.l.b16 %v3252
    %v3538 = vunpack.c.h.b16 %v3252
    %v3539 = vunpack.c.l.b16 %v3253
    %v3540 = vunpack.c.h.b16 %v3253
    %v3541 = vunpack.c.l.b16 %v3254
    %v3542 = vunpack.c.h.b16 %v3254
    %v3543 = vunpack.c.l.b16 %v3255
    %v3544 = vunpack.c.h.b16 %v3255
    %v3545 = vunpack.c.l.b16 %v3256
    %v3546 = vunpack.c.h.b16 %v3256
    %v3547 = vunpack.c.l.b16 %v3257
    %v3548 = vunpack.c.h.b16 %v3257
    %v3549 = vunpack.c.l.b16 %v3258
    %v3550 = vunpack.c.h.b16 %v3258
    %v3551 = vunpack.c.l.b16 %v3259
    %v3552 = vunpack.c.h.b16 %v3259
    %v3553 = vunpack.c.l.b16 %v3260
    %v3554 = vunpack.c.h.b16 %v3260
    %v3555 = vunpack.c.l.b16 %v3261
    %v3556 = vunpack.c.h.b16 %v3261
    %v3557 = vunpack.c.l.b16 %v3262
    %v3558 = vunpack.c.h.b16 %v3262
    %v3559 = vunpack.c.l.b16 %v3263
    %v3560 = vunpack.c.h.b16 %v3263
    %v3561 = vunpack.c.l.b16 %v3264
    %v3562 = vunpack.c.h.b16 %v3264
    %v3563 = vunpack.c.l.b16 %v3265
    %v3564 = vunpack.c.h.b16 %v3265
    %v3565 = vunpack.c.l.b16 %v3266
    %v3566 = vunpack.c.h.b16 %v3266
    %v3567 = vunpack.c.l.b16 %v3267
    %v3568 = vunpack.c.h.b16 %v3267
    %v3569 = vunpack.c.l.b16 %v3268
    %v3570 = vunpack.c.h.b16 %v3268
    %v3571 = vunpack.c.l.b16 %v3269
    %v3572 = vunpack.c.h.b16 %v3269
    %v3573 = vunpack.c.l.b16 %v3270
    %v3574 = vunpack.c.h.b16 %v3270
    %v3575 = vunpack.c.l.b16 %v3271
    %v3576 = vunpack.c.h.b16 %v3271
    %v3577 = vunpack.c.l.b16 %v3272
    %v3578 = vunpack.c.h.b16 %v3272
    %v3579 = vunpack.c.l.b16 %v3273
    %v3580 = vunpack.c.h.b16 %v3273
    %v3581 = vunpack.c.l.b16 %v3274
    %v3582 = vunpack.c.h.b16 %v3274
    %v3583 = vunpack.c.l.b16 %v3275
    %v3584 = vunpack.c.h.b16 %v3275
    %v3585 = vunpack.c.l.b16 %v3276
    %v3586 = vunpack.c.h.b16 %v3276
    %v3587 = vunpack.c.l.b16 %v3277
    %v3588 = vunpack.c.h.b16 %v3277
    %v3589 = vunpack.c.l.b16 %v3278
    %v3590 = vunpack.c.h.b16 %v3278
    %v3591 = vunpack.c.l.b16 %v3279
    %v3592 = vunpack.c.h.b16 %v3279
    %v3593 = vunpack.c.l.b16 %v3280
    %v3594 = vunpack.c.h.b16 %v3280
    %v3595 = vunpack.c.l.b16 %v3281
    %v3596 = vunpack.c.h.b16 %v3281
    %v3597 = vunpack.c.l.b16 %v3282
    %v3598 = vunpack.c.h.b16 %v3282
    %v3599 = vunpack.c.l.b16 %v3283
    %v3600 = vunpack.c.h.b16 %v3283
    %v3601 = vunpack.c.l.b16 %v3284
    %v3602 = vunpack.c.h.b16 %v3284
    %v3603 = vunpack.c.l.b16 %v3285
    %v3604 = vunpack.c.h.b16 %v3285
    %v3605 = vunpack.c.l.b16 %v3286
    %v3606 = vunpack.c.h.b16 %v3286
    %v3607 = vunpack.c.l.b16 %v3287
    %v3608 = vunpack.c.h.b16 %v3287
    %v3609 = vunpack.c.l.b16 %v3288
    %v3610 = vunpack.c.h.b16 %v3288
    %v3611 = vunpack.c.l.b16 %v3289
    %v3612 = vunpack.c.h.b16 %v3289
    %v3613 = vunpack.c.l.b16 %v3290
    %v3614 = vunpack.c.h.b16 %v3290
    %v3615 = vunpack.c.l.b16 %v3291
    %v3616 = vunpack.c.h.b16 %v3291
    %v3617 = vunpack.c.l.b16 %v3292
    %v3618 = vunpack.c.h.b16 %v3292
    %v3619 = vunpack.c.l.b16 %v3293
    %v3620 = vunpack.c.h.b16 %v3293
    %v3621 = vunpack.c.l.b16 %v3294
    %v3622 = vunpack.c.h.b16 %v3294
    %v3623 = vunpack.c.l.b16 %v3295
    %v3624 = vunpack.c.h.b16 %v3295
    %v3625 = vunpack.c.l.b16 %v3296
    %v3626 = vunpack.c.h.b16 %v3296
    %v3627 = vunpack.c.l.b16 %v3297
    %v3628 = vunpack.c.h.b16 %v3297
    %v3629 = vunpack.c.l.b16 %v3298
    %v3630 = vunpack.c.h.b16 %v3298
    %v3631 = vunpack.c.l.b16 %v3299
    %v3632 = vunpack.c.h.b16 %v3299
    %v3633 = vunpack.c.l.b16 %v3300
    %v3634 = vunpack.c.h.b16 %v3300
    %v3635 = vunpack.c.l.b16 %v3301
    %v3636 = vunpack.c.h.b16 %v3301
    %v3637 = vunpack.c.l.b16 %v3302
    %v3638 = vunpack.c.h.b16 %v3302
    %v3639 = vunpack.c.l.b16 %v3303
    %v3640 = vunpack.c.h.b16 %v3303
    %v3641 = vunpack.c.l.b16 %v3304
    %v3642 = vunpack.c.h.b16 %v3304
    %v3643 = vunpack.c.l.b16 %v3305
    %v3644 = vunpack.c.h.b16 %v3305
    %v3645 = vunpack.c.l.b16 %v3306
    %v3646 = vunpack.c.h.b16 %v3306
    %v3647 = vunpack.c.l.b16 %v3307
    %v3648 = vunpack.c.h.b16 %v3307
    %v3649 = vunpack.c.l.b16 %v3308
    %v3650 = vunpack.c.h.b16 %v3308
    %v3651 = vunpack.c.l.b16 %v3309
    %v3652 = vunpack.c.h.b16 %v3309
    %v3653 = vunpack.c.l.b16 %v3310
    %v3654 = vunpack.c.h.b16 %v3310
    %v3655 = vunpack.c.l.b16 %v3311
    %v3656 = vunpack.c.h.b16 %v3311
    %v3657 = vunpack.c.l.b16 %v3312
    %v3658 = vunpack.c.h.b16 %v3312
    %v3659 = vunpack.c.l.b16 %v3313
    %v3660 = vunpack.c.h.b16 %v3313
    %v3661 = vunpack.c.l.b16 %v3314
    %v3662 = vunpack.c.h.b16 %v3314
    %v3663 = vunpack.c.l.b16 %v3315
    %v3664 = vunpack.c.h.b16 %v3315
    %v3665 = vunpack.c.l.b16 %v3316
    %v3666 = vunpack.c.h.b16 %v3316
    %v3667 = vunpack.c.l.b16 %v3317
    %v3668 = vunpack.c.h.b16 %v3317
    %v3669 = vunpack.c.l.b16 %v3318
    %v3670 = vunpack.c.h.b16 %v3318
    %v3671 = vunpack.c.l.b16 %v3319
    %v3672 = vunpack.c.h.b16 %v3319
    %v3673 = vunpack.c.l.b16 %v3320
    %v3674 = vunpack.c.h.b16 %v3320
    %v3675 = vunpack.c.l.b16 %v3321
    %v3676 = vunpack.c.h.b16 %v3321
    %v3677 = vunpack.c.l.b16 %v3322
    %v3678 = vunpack.c.h.b16 %v3322
    %v3679 = vunpack.c.l.b16 %v3323
    %v3680 = vunpack.c.h.b16 %v3323
    %v3681 = vunpack.c.l.b16 %v3324
    %v3682 = vunpack.c.h.b16 %v3324
    %v3683 = vunpack.c.l.b16 %v3325
    %v3684 = vunpack.c.h.b16 %v3325
    %v3685 = vunpack.c.l.b16 %v3326
    %v3686 = vunpack.c.h.b16 %v3326
    %v3687 = vunpack.c.l.b16 %v3327
    %v3688 = vunpack.c.h.b16 %v3327
    %v3689 = vunpack.c.l.b16 %v3328
    %v3690 = vunpack.c.h.b16 %v3328
    %v3691 = vunpack.c.l.b16 %v3329
    %v3692 = vunpack.c.h.b16 %v3329
    %v3693 = vunpack.c.l.b16 %v3330
    %v3694 = vunpack.c.h.b16 %v3330
    %v3695 = vunpack.c.l.b16 %v3331
    %v3696 = vunpack.c.h.b16 %v3331
    %v3697 = vunpack.c.l.b16 %v3332
    %v3698 = vunpack.c.h.b16 %v3332
    %v3699 = vunpack.c.l.b16 %v3333
    %v3700 = vunpack.c.h.b16 %v3333
    %v3701 = vunpack.c.l.b16 %v3334
    %v3702 = vunpack.c.h.b16 %v3334
    %v3703 = vunpack.c.l.b16 %v3335
    %v3704 = vunpack.c.h.b16 %v3335
    %v3705 = vunpack.c.l.b16 %v3336
    %v3706 = vunpack.c.h.b16 %v3336
    %v3707 = vunpack.c.l.b16 %v3337
    %v3708 = vunpack.c.h.b16 %v3337
    %v3709 = vunpack.c.l.b16 %v3338
    %v3710 = vunpack.c.h.b16 %v3338
    %v3711 = vunpack.c.l.b16 %v3339
    %v3712 = vunpack.c.h.b16 %v3339
    %v3713 = vunpack.c.l.b16 %v3340
    %v3714 = vunpack.c.h.b16 %v3340
    %v3715 = vunpack.c.l.b16 %v3341
    %v3716 = vunpack.c.h.b16 %v3341
    %v3717 = vunpack.c.l.b16 %v3342
    %v3718 = vunpack.c.h.b16 %v3342
    %v3719 = vunpack.c.l.b16 %v3343
    %v3720 = vunpack.c.h.b16 %v3343
    %v3721 = vunpack.c.l.b16 %v3344
    %v3722 = vunpack.c.h.b16 %v3344
    %v3723 = vunpack.c.l.b16 %v3345
    %v3724 = vunpack.c.h.b16 %v3345
    %v3725 = vunpack.c.l.b16 %v3346
    %v3726 = vunpack.c.h.b16 %v3346
    %v3727 = vunpack.c.l.b16 %v3347
    %v3728 = vunpack.c.h.b16 %v3347
    %v3729 = vunpack.c.l.b16 %v3348
    %v3730 = vunpack.c.h.b16 %v3348
    %v3731 = vunpack.c.l.b16 %v3349
    %v3732 = vunpack.c.h.b16 %v3349
    %v3733 = vunpack.c.l.b16 %v3350
    %v3734 = vunpack.c.h.b16 %v3350
    %v3735 = vunpack.c.l.b16 %v3351
    %v3736 = vunpack.c.h.b16 %v3351
    %v3737 = vunpack.c.l.b16 %v3352
    %v3738 = vunpack.c.h.b16 %v3352
    %v3739 = vunpack.c.l.b16 %v3353
    %v3740 = vunpack.c.h.b16 %v3353
    %v3741 = vunpack.c.l.b16 %v3354
    %v3742 = vunpack.c.h.b16 %v3354
    %v3743 = vunpack.c.l.b16 %v3355
    %v3744 = vunpack.c.h.b16 %v3355
    %v3745 = vunpack.c.l.b16 %v3356
    %v3746 = vunpack.c.h.b16 %v3356
    %v3747 = vunpack.c.l.b16 %v3357
    %v3748 = vunpack.c.h.b16 %v3357
    %v3749 = vunpack.c.l.b16 %v3358
    %v3750 = vunpack.c.h.b16 %v3358
    %v3751 = vunpack.c.l.b16 %v3359
    %v3752 = vunpack.c.h.b16 %v3359
    %v3753 = vunpack.c.l.b16 %v3360
    %v3754 = vunpack.c.h.b16 %v3360
    %v3755 = vpack.c.b16 %v3503, %v3499
    %v3756 = vpack.c.b16 %v3504, %v3500
    %v3757 = vpack.c.b16 %v3505, %v3501
    %v3758 = vpack.c.b16 %v3506, %v3502
    %v3759 = vpack.c.b16 %v3511, %v3507
    %v3760 = vpack.c.b16 %v3512, %v3508
    %v3761 = vpack.c.b16 %v3513, %v3509
    %v3762 = vpack.c.b16 %v3514, %v3510
    %v3763 = vpack.c.b16 %v3519, %v3515
    %v3764 = vpack.c.b16 %v3520, %v3516
    %v3765 = vpack.c.b16 %v3521, %v3517
    %v3766 = vpack.c.b16 %v3522, %v3518
    %v3767 = vpack.c.b16 %v3527, %v3523
    %v3768 = vpack.c.b16 %v3528, %v3524
    %v3769 = vpack.c.b16 %v3529, %v3525
    %v3770 = vpack.c.b16 %v3530, %v3526
    %v3771 = vpack.c.b16 %v3535, %v3531
    %v3772 = vpack.c.b16 %v3536, %v3532
    %v3773 = vpack.c.b16 %v3537, %v3533
    %v3774 = vpack.c.b16 %v3538, %v3534
    %v3775 = vpack.c.b16 %v3543, %v3539
    %v3776 = vpack.c.b16 %v3544, %v3540
    %v3777 = vpack.c.b16 %v3545, %v3541
    %v3778 = vpack.c.b16 %v3546, %v3542
    %v3779 = vpack.c.b16 %v3551, %v3547
    %v3780 = vpack.c.b16 %v3552, %v3548
    %v3781 = vpack.c.b16 %v3553, %v3549
    %v3782 = vpack.c.b16 %v3554, %v3550
    %v3783 = vpack.c.b16 %v3559, %v3555
    %v3784 = vpack.c.b16 %v3560, %v3556
    %v3785 = vpack.c.b16 %v3561, %v3557
    %v3786 = vpack.c.b16 %v3562, %v3558
    %v3787 = vpack.c.b16 %v3567, %v3563
    %v3788 = vpack.c.b16 %v3568, %v3564
    %v3789 = vpack.c.b16 %v3569, %v3565
    %v3790 = vpack.c.b16 %v3570, %v3566
    %v3791 = vpack.c.b16 %v3575, %v3571
    %v3792 = vpack.c.b16 %v3576, %v3572
    %v3793 = vpack.c.b16 %v3577, %v3573
    %v3794 = vpack.c.b16 %v3578, %v3574
    %v3795 = vpack.c.b16 %v3583, %v3579
    %v3796 = vpack.c.b16 %v3584, %v3580
    %v3797 = vpack.c.b16 %v3585, %v3581
    %v3798 = vpack.c.b16 %v3586, %v3582
    %v3799 = vpack.c.b16 %v3591, %v3587
    %v3800 = vpack.c.b16 %v3592, %v3588
    %v3801 = vpack.c.b16 %v3593, %v3589
    %v3802 = vpack.c.b16 %v3594, %v3590
    %v3803 = vpack.c.b16 %v3599, %v3595
    %v3804 = vpack.c.b16 %v3600, %v3596
    %v3805 = vpack.c.b16 %v3601, %v3597
    %v3806 = vpack.c.b16 %v3602, %v3598
    %v3807 = vpack.c.b16 %v3607, %v3603
    %v3808 = vpack.c.b16 %v3608, %v3604
    %v3809 = vpack.c.b16 %v3609, %v3605
    %v3810 = vpack.c.b16 %v3610, %v3606
    %v3811 = vpack.c.b16 %v3615, %v3611
    %v3812 = vpack.c.b16 %v3616, %v3612
    %v3813 = vpack.c.b16 %v3617, %v3613
    %v3814 = vpack.c.b16 %v3618, %v3614
    %v3815 = vpack.c.b16 %v3623, %v3619
    %v3816 = vpack.c.b16 %v3624, %v3620
    %v3817 = vpack.c.b16 %v3625, %v3621
    %v3818 = vpack.c.b16 %v3626, %v3622
    %v3819 = vpack.c.b16 %v3631, %v3627
    %v3820 = vpack.c.b16 %v3632, %v3628
    %v3821 = vpack.c.b16 %v3633, %v3629
    %v3822 = vpack.c.b16 %v3634, %v3630
    %v3823 = vpack.c.b16 %v3639, %v3635
    %v3824 = vpack.c.b16 %v3640, %v3636
    %v3825 = vpack.c.b16 %v3641, %v3637
    %v3826 = vpack.c.b16 %v3642, %v3638
    %v3827 = vpack.c.b16 %v3647, %v3643
    %v3828 = vpack.c.b16 %v3648, %v3644
    %v3829 = vpack.c.b16 %v3649, %v3645
    %v3830 = vpack.c.b16 %v3650, %v3646
    %v3831 = vpack.c.b16 %v3655, %v3651
    %v3832 = vpack.c.b16 %v3656, %v3652
    %v3833 = vpack.c.b16 %v3657, %v3653
    %v3834 = vpack.c.b16 %v3658, %v3654
    %v3835 = vpack.c.b16 %v3663, %v3659
    %v3836 = vpack.c.b16 %v3664, %v3660
    %v3837 = vpack.c.b16 %v3665, %v3661
    %v3838 = vpack.c.b16 %v3666, %v3662
    %v3839 = vpack.c.b16 %v3671, %v3667
    %v3840 = vpack.c.b16 %v3672, %v3668
    %v3841 = vpack.c.b16 %v3673, %v3669
    %v3842 = vpack.c.b16 %v3674, %v3670
    %v3843 = vpack.c.b16 %v3679, %v3675
    %v3844 = vpack.c.b16 %v3680, %v3676
    %v3845 = vpack.c.b16 %v3681, %v3677
    %v3846 = vpack.c.b16 %v3682, %v3678
    %v3847 = vpack.c.b16 %v3687, %v3683
    %v3848 = vpack.c.b16 %v3688, %v3684
    %v3849 = vpack.c.b16 %v3689, %v3685
    %v3850 = vpack.c.b16 %v3690, %v3686
    %v3851 = vpack.c.b16 %v3695, %v3691
    %v3852 = vpack.c.b16 %v3696, %v3692
    %v3853 = vpack.c.b16 %v3697, %v3693
    %v3854 = vpack.c.b16 %v3698, %v3694
    %v3855 = vpack.c.b16 %v3703, %v3699
    %v3856 = vpack.c.b16 %v3704, %v3700
    %v3857 = vpack.c.b16 %v3705, %v3701
    %v3858 = vpack.c.b16 %v3706, %v3702
    %v3859 = vpack.c.b16 %v3711, %v3707
    %v3860 = vpack.c.b16 %v3712, %v3708
    %v3861 = vpack.c.b16 %v3713, %v3709
    %v3862 = vpack.c.b16 %v3714, %v3710
    %v3863 = vpack.c.b16 %v3719, %v3715
    %v3864 = vpack.c.b16 %v3720, %v3716
    %v3865 = vpack.c.b16 %v3721, %v3717
    %v3866 = vpack.c.b16 %v3722, %v3718
    %v3867 = vpack.c.b16 %v3727, %v3723
    %v3868 = vpack.c.b16 %v3728, %v3724
    %v3869 = vpack.c.b16 %v3729, %v3725
    %v3870 = vpack.c.b16 %v3730, %v3726
    %v3871 = vpack.c.b16 %v3735, %v3731
    %v3872 = vpack.c.b16 %v3736, %v3732
    %v3873 = vpack.c.b16 %v3737, %v3733
    %v3874 = vpack.c.b16 %v3738, %v3734
    %v3875 = vpack.c.b16 %v3743, %v3739
    %v3876 = vpack.c.b16 %v3744, %v3740
    %v3877 = vpack.c.b16 %v3745, %v3741
    %v3878 = vpack.c.b16 %v3746, %v3742
    %v3879 = vpack.c.b16 %v3751, %v3747
    %v3880 = vpack.c.b16 %v3752, %v3748
    %v3881 = vpack.c.b16 %v3753, %v3749
    %v3882 = vpack.c.b16 %v3754, %v3750
    %4011 = vmatpush.bf16.msra.mxu0 %v3783
    %4012 = vmatpush.bf16.msra.mxu0 %v3779
    %4013 = vmatpush.bf16.msra.mxu0 %v3775
    %4014 = vmatpush.bf16.msra.mxu0 %v3771
    %4015 = vmatpush.bf16.msra.mxu0 %v3767
    %4016 = vmatpush.bf16.msra.mxu0 %v3763
    %4017 = vmatpush.bf16.msra.mxu0 %v3759
    %4018 = vmatpush.bf16.msra.mxu0 %v3755
    %4019 = vmatmul.bf16.gmra.mxu0 %v3229
    %v4020 = vpop.f32.mrf.mxu0
    %v4021 = vadd.f32 %v3363, %v4020
    %v4022 = vpop.f32.mrf.mxu0
    %4023 = vdwg.mxu0
    %4024 = vmatpush.bf16.msra.mxu0 %v3815
    %4025 = vmatpush.bf16.msra.mxu0 %v3811
    %4026 = vmatpush.bf16.msra.mxu0 %v3807
    %4027 = vmatpush.bf16.msra.mxu0 %v3803
    %4028 = vmatpush.bf16.msra.mxu0 %v3799
    %4029 = vmatpush.bf16.msra.mxu0 %v3795
    %4030 = vmatpush.bf16.msra.mxu0 %v3791
    %4031 = vmatpush.bf16.msra.mxu0 %v3787
    %4032 = vmatmul.bf16.gmra.mxu0 %v3230
    %v4033 = vpop.f32.mrf.mxu0
    %v4034 = vadd.f32 %v4021, %v4033
    %v4035 = vpop.f32.mrf.mxu0
    %4036 = vdwg.mxu0
    %4037 = vmatpush.bf16.msra.mxu0 %v3847
    %4038 = vmatpush.bf16.msra.mxu0 %v3843
    %4039 = vmatpush.bf16.msra.mxu0 %v3839
    %4040 = vmatpush.bf16.msra.mxu0 %v3835
    %4041 = vmatpush.bf16.msra.mxu0 %v3831
    %4042 = vmatpush.bf16.msra.mxu0 %v3827
    %4043 = vmatpush.bf16.msra.mxu0 %v3823
    %4044 = vmatpush.bf16.msra.mxu0 %v3819
    %4045 = vmatmul.bf16.gmra.mxu0 %v3231
    %v4046 = vpop.f32.mrf.mxu0
    %v4047 = vadd.f32 %v4034, %v4046
    %v4048 = vpop.f32.mrf.mxu0
    %4049 = vdwg.mxu0
    %4050 = vmatpush.bf16.msra.mxu0 %v3879
    %4051 = vmatpush.bf16.msra.mxu0 %v3875
    %4052 = vmatpush.bf16.msra.mxu0 %v3871
    %4053 = vmatpush.bf16.msra.mxu0 %v3867
    %4054 = vmatpush.bf16.msra.mxu0 %v3863
    %4055 = vmatpush.bf16.msra.mxu0 %v3859
    %4056 = vmatpush.bf16.msra.mxu0 %v3855
    %4057 = vmatpush.bf16.msra.mxu0 %v3851
    %4058 = vmatmul.bf16.gmra.mxu0 %v3232
    %v4059 = vpop.f32.mrf.mxu0
    %v4060 = vadd.f32 %v4047, %v4059
    %v4061 = vpop.f32.mrf.mxu0
    %4062 = vdwg.mxu0
    %4063 = vmatpush.bf16.msra.mxu0 %v3784
    %4064 = vmatpush.bf16.msra.mxu0 %v3780
    %4065 = vmatpush.bf16.msra.mxu0 %v3776
    %4066 = vmatpush.bf16.msra.mxu0 %v3772
    %4067 = vmatpush.bf16.msra.mxu0 %v3768
    %4068 = vmatpush.bf16.msra.mxu0 %v3764
    %4069 = vmatpush.bf16.msra.mxu0 %v3760
    %4070 = vmatpush.bf16.msra.mxu0 %v3756
    %4071 = vmatmul.bf16.gmra.mxu0 %v3229
    %v4072 = vpop.f32.mrf.mxu0
    %v4073 = vadd.f32 %v3364, %v4072
    %v4074 = vpop.f32.mrf.mxu0
    %4075 = vdwg.mxu0
    %4076 = vmatpush.bf16.msra.mxu0 %v3816
    %4077 = vmatpush.bf16.msra.mxu0 %v3812
    %4078 = vmatpush.bf16.msra.mxu0 %v3808
    %4079 = vmatpush.bf16.msra.mxu0 %v3804
    %4080 = vmatpush.bf16.msra.mxu0 %v3800
    %4081 = vmatpush.bf16.msra.mxu0 %v3796
    %4082 = vmatpush.bf16.msra.mxu0 %v3792
    %4083 = vmatpush.bf16.msra.mxu0 %v3788
    %4084 = vmatmul.bf16.gmra.mxu0 %v3230
    %v4085 = vpop.f32.mrf.mxu0
    %v4086 = vadd.f32 %v4073, %v4085
    %v4087 = vpop.f32.mrf.mxu0
    %4088 = vdwg.mxu0
    %4089 = vmatpush.bf16.msra.mxu0 %v3848
    %4090 = vmatpush.bf16.msra.mxu0 %v3844
    %4091 = vmatpush.bf16.msra.mxu0 %v3840
    %4092 = vmatpush.bf16.msra.mxu0 %v3836
    %4093 = vmatpush.bf16.msra.mxu0 %v3832
    %4094 = vmatpush.bf16.msra.mxu0 %v3828
    %4095 = vmatpush.bf16.msra.mxu0 %v3824
    %4096 = vmatpush.bf16.msra.mxu0 %v3820
    %4097 = vmatmul.bf16.gmra.mxu0 %v3231
    %v4098 = vpop.f32.mrf.mxu0
    %v4099 = vadd.f32 %v4086, %v4098
    %v4100 = vpop.f32.mrf.mxu0
    %4101 = vdwg.mxu0
    %4102 = vmatpush.bf16.msra.mxu0 %v3880
    %4103 = vmatpush.bf16.msra.mxu0 %v3876
    %4104 = vmatpush.bf16.msra.mxu0 %v3872
    %4105 = vmatpush.bf16.msra.mxu0 %v3868
    %4106 = vmatpush.bf16.msra.mxu0 %v3864
    %4107 = vmatpush.bf16.msra.mxu0 %v3860
    %4108 = vmatpush.bf16.msra.mxu0 %v3856
    %4109 = vmatpush.bf16.msra.mxu0 %v3852
    %4110 = vmatmul.bf16.gmra.mxu0 %v3232
    %v4111 = vpop.f32.mrf.mxu0
    %v4112 = vadd.f32 %v4099, %v4111
    %v4113 = vpop.f32.mrf.mxu0
    %4114 = vdwg.mxu0
    %4115 = vmatpush.bf16.msra.mxu0 %v3785
    %4116 = vmatpush.bf16.msra.mxu0 %v3781
    %4117 = vmatpush.bf16.msra.mxu0 %v3777
    %4118 = vmatpush.bf16.msra.mxu0 %v3773
    %4119 = vmatpush.bf16.msra.mxu0 %v3769
    %4120 = vmatpush.bf16.msra.mxu0 %v3765
    %4121 = vmatpush.bf16.msra.mxu0 %v3761
    %4122 = vmatpush.bf16.msra.mxu0 %v3757
    %4123 = vmatmul.bf16.gmra.mxu0 %v3229
    %v4124 = vpop.f32.mrf.mxu0
    %v4125 = vadd.f32 %v3365, %v4124
    %v4126 = vpop.f32.mrf.mxu0
    %4127 = vdwg.mxu0
    %4128 = vmatpush.bf16.msra.mxu0 %v3817
    %4129 = vmatpush.bf16.msra.mxu0 %v3813
    %4130 = vmatpush.bf16.msra.mxu0 %v3809
    %4131 = vmatpush.bf16.msra.mxu0 %v3805
    %4132 = vmatpush.bf16.msra.mxu0 %v3801
    %4133 = vmatpush.bf16.msra.mxu0 %v3797
    %4134 = vmatpush.bf16.msra.mxu0 %v3793
    %4135 = vmatpush.bf16.msra.mxu0 %v3789
    %4136 = vmatmul.bf16.gmra.mxu0 %v3230
    %v4137 = vpop.f32.mrf.mxu0
    %v4138 = vadd.f32 %v4125, %v4137
    %v4139 = vpop.f32.mrf.mxu0
    %4140 = vdwg.mxu0
    %4141 = vmatpush.bf16.msra.mxu0 %v3849
    %4142 = vmatpush.bf16.msra.mxu0 %v3845
    %4143 = vmatpush.bf16.msra.mxu0 %v3841
    %4144 = vmatpush.bf16.msra.mxu0 %v3837
    %4145 = vmatpush.bf16.msra.mxu0 %v3833
    %4146 = vmatpush.bf16.msra.mxu0 %v3829
    %4147 = vmatpush.bf16.msra.mxu0 %v3825
    %4148 = vmatpush.bf16.msra.mxu0 %v3821
    %4149 = vmatmul.bf16.gmra.mxu0 %v3231
    %v4150 = vpop.f32.mrf.mxu0
    %v4151 = vadd.f32 %v4138, %v4150
    %v4152 = vpop.f32.mrf.mxu0
    %4153 = vdwg.mxu0
    %4154 = vmatpush.bf16.msra.mxu0 %v3881
    %4155 = vmatpush.bf16.msra.mxu0 %v3877
    %4156 = vmatpush.bf16.msra.mxu0 %v3873
    %4157 = vmatpush.bf16.msra.mxu0 %v3869
    %4158 = vmatpush.bf16.msra.mxu0 %v3865
    %4159 = vmatpush.bf16.msra.mxu0 %v3861
    %4160 = vmatpush.bf16.msra.mxu0 %v3857
    %4161 = vmatpush.bf16.msra.mxu0 %v3853
    %4162 = vmatmul.bf16.gmra.mxu0 %v3232
    %v4163 = vpop.f32.mrf.mxu0
    %v4164 = vadd.f32 %v4151, %v4163
    %v4165 = vpop.f32.mrf.mxu0
    %4166 = vdwg.mxu0
    %4167 = vmatpush.bf16.msra.mxu0 %v3786
    %4168 = vmatpush.bf16.msra.mxu0 %v3782
    %4169 = vmatpush.bf16.msra.mxu0 %v3778
    %4170 = vmatpush.bf16.msra.mxu0 %v3774
    %4171 = vmatpush.bf16.msra.mxu0 %v3770
    %4172 = vmatpush.bf16.msra.mxu0 %v3766
    %4173 = vmatpush.bf16.msra.mxu0 %v3762
    %4174 = vmatpush.bf16.msra.mxu0 %v3758
    %4175 = vmatmul.bf16.gmra.mxu0 %v3229
    %v4176 = vpop.f32.mrf.mxu0
    %v4177 = vadd.f32 %v3366, %v4176
    %v4178 = vpop.f32.mrf.mxu0
    %4179 = vdwg.mxu0
    %4180 = vmatpush.bf16.msra.mxu0 %v3818
    %4181 = vmatpush.bf16.msra.mxu0 %v3814
    %4182 = vmatpush.bf16.msra.mxu0 %v3810
    %4183 = vmatpush.bf16.msra.mxu0 %v3806
    %4184 = vmatpush.bf16.msra.mxu0 %v3802
    %4185 = vmatpush.bf16.msra.mxu0 %v3798
    %4186 = vmatpush.bf16.msra.mxu0 %v3794
    %4187 = vmatpush.bf16.msra.mxu0 %v3790
    %4188 = vmatmul.bf16.gmra.mxu0 %v3230
    %v4189 = vpop.f32.mrf.mxu0
    %v4190 = vadd.f32 %v4177, %v4189
    %v4191 = vpop.f32.mrf.mxu0
    %4192 = vdwg.mxu0
    %4193 = vmatpush.bf16.msra.mxu0 %v3850
    %4194 = vmatpush.bf16.msra.mxu0 %v3846
    %4195 = vmatpush.bf16.msra.mxu0 %v3842
    %4196 = vmatpush.bf16.msra.mxu0 %v3838
    %4197 = vmatpush.bf16.msra.mxu0 %v3834
    %4198 = vmatpush.bf16.msra.mxu0 %v3830
    %4199 = vmatpush.bf16.msra.mxu0 %v3826
    %4200 = vmatpush.bf16.msra.mxu0 %v3822
    %4201 = vmatmul.bf16.gmra.mxu0 %v3231
    %v4202 = vpop.f32.mrf.mxu0
    %v4203 = vadd.f32 %v4190, %v4202
    %v4204 = vpop.f32.mrf.mxu0
    %4205 = vdwg.mxu0
    %4206 = vmatpush.bf16.msra.mxu0 %v3882
    %4207 = vmatpush.bf16.msra.mxu0 %v3878
    %4208 = vmatpush.bf16.msra.mxu0 %v3874
    %4209 = vmatpush.bf16.msra.mxu0 %v3870
    %4210 = vmatpush.bf16.msra.mxu0 %v3866
    %4211 = vmatpush.bf16.msra.mxu0 %v3862
    %4212 = vmatpush.bf16.msra.mxu0 %v3858
    %4213 = vmatpush.bf16.msra.mxu0 %v3854
    %4214 = vmatmul.bf16.gmra.mxu0 %v3232
    %v4215 = vpop.f32.mrf.mxu0
    %v4216 = vadd.f32 %v4203, %v4215
    %v4217 = vpop.f32.mrf.mxu0
    %4218 = vdwg.mxu0
    %v4219 = vmax.f32 %v4060, 0.0
    %v4220 = vmax.f32 %v4112, 0.0
    %v4221 = vmax.f32 %v4164, 0.0
    %v4222 = vmax.f32 %v4216, 0.0
    %v4223 = vpack.c.bf16 %v4219, %v4219
    %v4224 = vpack.c.bf16 %v4220, %v4220
    %v4225 = vpack.c.bf16 %v4221, %v4221
    %v4226 = vpack.c.bf16 %v4222, %v4222
    %v4227 = vld [vmem:[#allocation8] sm:$0xff]
    %v4228 = vld [vmem:[#allocation8 + $0x8] sm:$0xff]
    %v4229 = vld [vmem:[#allocation8 + $0x10] sm:$0xff]
    %v4230 = vld [vmem:[#allocation8 + $0x18] sm:$0xf]
    %v4231 = vld [vmem:[#allocation8 + $0x1c] sm:$0xff]
    %v4232 = vld [vmem:[#allocation8 + $0x24] sm:$0xff]
    %v4233 = vld [vmem:[#allocation8 + $0x2c] sm:$0xff]
    %v4234 = vld [vmem:[#allocation8 + $0x34] sm:$0xf]
    %v4235 = vld [vmem:[#allocation8 + $0x38] sm:$0xff]
    %v4236 = vld [vmem:[#allocation8 + $0x40] sm:$0xff]
    %v4237 = vld [vmem:[#allocation8 + $0x48] sm:$0xff]
    %v4238 = vld [vmem:[#allocation8 + $0x50] sm:$0xf]
    %v4239 = vld [vmem:[#allocation8 + $0x54] sm:$0xff]
    %v4240 = vld [vmem:[#allocation8 + $0x5c] sm:$0xff]
    %v4241 = vld [vmem:[#allocation8 + $0x64] sm:$0xff]
    %v4242 = vld [vmem:[#allocation8 + $0x6c] sm:$0xf]
    %v4243 = vld [vmem:[#allocation8 + $0x70] sm:$0xff]
    %v4244 = vld [vmem:[#allocation8 + $0x78] sm:$0xff]
    %v4245 = vld [vmem:[#allocation8 + $0x80] sm:$0xff]
    %v4246 = vld [vmem:[#allocation8 + $0x88] sm:$0xf]
    %v4247 = vld [vmem:[#allocation8 + $0x8c] sm:$0xff]
    %v4248 = vld [vmem:[#allocation8 + $0x94] sm:$0xff]
    %v4249 = vld [vmem:[#allocation8 + $0x9c] sm:$0xff]
    %v4250 = vld [vmem:[#allocation8 + $0xa4] sm:$0xf]
    %v4251 = vld [vmem:[#allocation8 + $0xa8] sm:$0xff]
    %v4252 = vld [vmem:[#allocation8 + $0xb0] sm:$0xff]
    %v4253 = vld [vmem:[#allocation8 + $0xb8] sm:$0xff]
    %v4254 = vld [vmem:[#allocation8 + $0xc0] sm:$0xf]
    %v4255 = vld [vmem:[#allocation8 + $0xc4] sm:$0xff]
    %v4256 = vld [vmem:[#allocation8 + $0xcc] sm:$0xff]
    %v4257 = vld [vmem:[#allocation8 + $0xd4] sm:$0xff]
    %v4258 = vld [vmem:[#allocation8 + $0xdc] sm:$0xf]
    %v4259 = vld [vmem:[#allocation8 + $0xe0] sm:$0xff]
    %v4260 = vld [vmem:[#allocation8 + $0xe8] sm:$0xff]
    %v4261 = vld [vmem:[#allocation8 + $0xf0] sm:$0xff]
    %v4262 = vld [vmem:[#allocation8 + $0xf8] sm:$0xf]
    %v4263 = vld [vmem:[#allocation8 + $0xfc] sm:$0xff]
    %v4264 = vld [vmem:[#allocation8 + $0x104] sm:$0xff]
    %v4265 = vld [vmem:[#allocation8 + $0x10c] sm:$0xff]
    %v4266 = vld [vmem:[#allocation8 + $0x114] sm:$0xf]
    %v4267 = vld [vmem:[#allocation8 + $0x118] sm:$0xff]
    %v4268 = vld [vmem:[#allocation8 + $0x120] sm:$0xff]
    %v4269 = vld [vmem:[#allocation8 + $0x128] sm:$0xff]
    %v4270 = vld [vmem:[#allocation8 + $0x130] sm:$0xf]
    %v4271 = vld [vmem:[#allocation8 + $0x134] sm:$0xff]
    %v4272 = vld [vmem:[#allocation8 + $0x13c] sm:$0xff]
    %v4273 = vld [vmem:[#allocation8 + $0x144] sm:$0xff]
    %v4274 = vld [vmem:[#allocation8 + $0x14c] sm:$0xf]
    %v4275 = vld [vmem:[#allocation8 + $0x150] sm:$0xff]
    %v4276 = vld [vmem:[#allocation8 + $0x158] sm:$0xff]
    %v4277 = vld [vmem:[#allocation8 + $0x160] sm:$0xff]
    %v4278 = vld [vmem:[#allocation8 + $0x168] sm:$0xf]
    %v4279 = vld [vmem:[#allocation8 + $0x16c] sm:$0xff]
    %v4280 = vld [vmem:[#allocation8 + $0x174] sm:$0xff]
    %v4281 = vld [vmem:[#allocation8 + $0x17c] sm:$0xff]
    %v4282 = vld [vmem:[#allocation8 + $0x184] sm:$0xf]
    %v4283 = vld [vmem:[#allocation8 + $0x188] sm:$0xff]
    %v4284 = vld [vmem:[#allocation8 + $0x190] sm:$0xff]
    %v4285 = vld [vmem:[#allocation8 + $0x198] sm:$0xff]
    %v4286 = vld [vmem:[#allocation8 + $0x1a0] sm:$0xf]
    %v4287 = vld [vmem:[#allocation8 + $0x1a4] sm:$0xff]
    %v4288 = vld [vmem:[#allocation8 + $0x1ac] sm:$0xff]
    %v4289 = vld [vmem:[#allocation8 + $0x1b4] sm:$0xff]
    %v4290 = vld [vmem:[#allocation8 + $0x1bc] sm:$0xf]
    %v4291 = vld [vmem:[#allocation8 + $0x1c0] sm:$0xff]
    %v4292 = vld [vmem:[#allocation8 + $0x1c8] sm:$0xff]
    %v4293 = vld [vmem:[#allocation8 + $0x1d0] sm:$0xff]
    %v4294 = vld [vmem:[#allocation8 + $0x1d8] sm:$0xf]
    %v4295 = vld [vmem:[#allocation8 + $0x1dc] sm:$0xff]
    %v4296 = vld [vmem:[#allocation8 + $0x1e4] sm:$0xff]
    %v4297 = vld [vmem:[#allocation8 + $0x1ec] sm:$0xff]
    %v4298 = vld [vmem:[#allocation8 + $0x1f4] sm:$0xf]
    %v4299 = vld [vmem:[#allocation8 + $0x1f8] sm:$0xff]
    %v4300 = vld [vmem:[#allocation8 + $0x200] sm:$0xff]
    %v4301 = vld [vmem:[#allocation8 + $0x208] sm:$0xff]
    %v4302 = vld [vmem:[#allocation8 + $0x210] sm:$0xf]
    %v4303 = vld [vmem:[#allocation8 + $0x214] sm:$0xff]
    %v4304 = vld [vmem:[#allocation8 + $0x21c] sm:$0xff]
    %v4305 = vld [vmem:[#allocation8 + $0x224] sm:$0xff]
    %v4306 = vld [vmem:[#allocation8 + $0x22c] sm:$0xf]
    %v4307 = vld [vmem:[#allocation8 + $0x230] sm:$0xff]
    %v4308 = vld [vmem:[#allocation8 + $0x238] sm:$0xff]
    %v4309 = vld [vmem:[#allocation8 + $0x240] sm:$0xff]
    %v4310 = vld [vmem:[#allocation8 + $0x248] sm:$0xf]
    %v4311 = vld [vmem:[#allocation8 + $0x24c] sm:$0xff]
    %v4312 = vld [vmem:[#allocation8 + $0x254] sm:$0xff]
    %v4313 = vld [vmem:[#allocation8 + $0x25c] sm:$0xff]
    %v4314 = vld [vmem:[#allocation8 + $0x264] sm:$0xf]
    %v4315 = vld [vmem:[#allocation8 + $0x268] sm:$0xff]
    %v4316 = vld [vmem:[#allocation8 + $0x270] sm:$0xff]
    %v4317 = vld [vmem:[#allocation8 + $0x278] sm:$0xff]
    %v4318 = vld [vmem:[#allocation8 + $0x280] sm:$0xf]
    %v4319 = vld [vmem:[#allocation8 + $0x284] sm:$0xff]
    %v4320 = vld [vmem:[#allocation8 + $0x28c] sm:$0xff]
    %v4321 = vld [vmem:[#allocation8 + $0x294] sm:$0xff]
    %v4322 = vld [vmem:[#allocation8 + $0x29c] sm:$0xf]
    %v4323 = vld [vmem:[#allocation8 + $0x2a0] sm:$0xff]
    %v4324 = vld [vmem:[#allocation8 + $0x2a8] sm:$0xff]
    %v4325 = vld [vmem:[#allocation8 + $0x2b0] sm:$0xff]
    %v4326 = vld [vmem:[#allocation8 + $0x2b8] sm:$0xf]
    %v4327 = vld [vmem:[#allocation8 + $0x2bc] sm:$0xff]
    %v4328 = vld [vmem:[#allocation8 + $0x2c4] sm:$0xff]
    %v4329 = vld [vmem:[#allocation8 + $0x2cc] sm:$0xff]
    %v4330 = vld [vmem:[#allocation8 + $0x2d4] sm:$0xf]
    %v4331 = vld [vmem:[#allocation8 + $0x2d8] sm:$0xff]
    %v4332 = vld [vmem:[#allocation8 + $0x2e0] sm:$0xff]
    %v4333 = vld [vmem:[#allocation8 + $0x2e8] sm:$0xff]
    %v4334 = vld [vmem:[#allocation8 + $0x2f0] sm:$0xf]
    %v4335 = vld [vmem:[#allocation8 + $0x2f4] sm:$0xff]
    %v4336 = vld [vmem:[#allocation8 + $0x2fc] sm:$0xff]
    %v4337 = vld [vmem:[#allocation8 + $0x304] sm:$0xff]
    %v4338 = vld [vmem:[#allocation8 + $0x30c] sm:$0xf]
    %v4339 = vld [vmem:[#allocation8 + $0x310] sm:$0xff]
    %v4340 = vld [vmem:[#allocation8 + $0x318] sm:$0xff]
    %v4341 = vld [vmem:[#allocation8 + $0x320] sm:$0xff]
    %v4342 = vld [vmem:[#allocation8 + $0x328] sm:$0xf]
    %v4343 = vld [vmem:[#allocation8 + $0x32c] sm:$0xff]
    %v4344 = vld [vmem:[#allocation8 + $0x334] sm:$0xff]
    %v4345 = vld [vmem:[#allocation8 + $0x33c] sm:$0xff]
    %v4346 = vld [vmem:[#allocation8 + $0x344] sm:$0xf]
    %v4347 = vld [vmem:[#allocation8 + $0x348] sm:$0xff]
    %v4348 = vld [vmem:[#allocation8 + $0x350] sm:$0xff]
    %v4349 = vld [vmem:[#allocation8 + $0x358] sm:$0xff]
    %v4350 = vld [vmem:[#allocation8 + $0x360] sm:$0xf]
    %v4351 = vld [vmem:[#allocation8 + $0x364] sm:$0xff]
    %v4352 = vld [vmem:[#allocation8 + $0x36c] sm:$0xff]
    %v4353 = vld [vmem:[#allocation8 + $0x374] sm:$0xff]
    %v4354 = vld [vmem:[#allocation8 + $0x37c] sm:$0xf]
    %v4355 = vld [vmem:[#allocation8 + $0x380] sm:$0xff]
    %v4356 = vld [vmem:[#allocation8 + $0x388] sm:$0xff]
    %v4357 = vld [vmem:[#allocation8 + $0x390] sm:$0xff]
    %v4358 = vld [vmem:[#allocation8 + $0x398] sm:$0xf]
    %v4359 = vld [vmem:[#allocation8 + $0x39c] sm:$0xff]
    %v4360 = vld [vmem:[#allocation8 + $0x3a4] sm:$0xff]
    %v4361 = vld [vmem:[#allocation8 + $0x3ac] sm:$0xff]
    %v4362 = vld [vmem:[#allocation8 + $0x3b4] sm:$0xf]
    %v4363 = vld [vmem:[#allocation8 + $0x3b8] sm:$0xff]
    %v4364 = vld [vmem:[#allocation8 + $0x3c0] sm:$0xff]
    %v4365 = vld [vmem:[#allocation8 + $0x3c8] sm:$0xff]
    %v4366 = vld [vmem:[#allocation8 + $0x3d0] sm:$0xf]
    %v4367 = vld [vmem:[#allocation8 + $0x3d4] sm:$0xff]
    %v4368 = vld [vmem:[#allocation8 + $0x3dc] sm:$0xff]
    %v4369 = vld [vmem:[#allocation8 + $0x3e4] sm:$0xff]
    %v4370 = vld [vmem:[#allocation8 + $0x3ec] sm:$0xf]
    %v4371 = vld [vmem:[#allocation8 + $0x3f0] sm:$0xff]
    %v4372 = vld [vmem:[#allocation8 + $0x3f8] sm:$0xff]
    %v4373 = vld [vmem:[#allocation8 + $0x400] sm:$0xff]
    %v4374 = vld [vmem:[#allocation8 + $0x408] sm:$0xf]
    %v4375 = vld [vmem:[#allocation8 + $0x40c] sm:$0xff]
    %v4376 = vld [vmem:[#allocation8 + $0x414] sm:$0xff]
    %v4377 = vld [vmem:[#allocation8 + $0x41c] sm:$0xff]
    %v4378 = vld [vmem:[#allocation8 + $0x424] sm:$0xf]
    %v4379 = vld [vmem:[#allocation8 + $0x428] sm:$0xff]
    %v4380 = vld [vmem:[#allocation8 + $0x430] sm:$0xff]
    %v4381 = vld [vmem:[#allocation8 + $0x438] sm:$0xff]
    %v4382 = vld [vmem:[#allocation8 + $0x440] sm:$0xf]
    %v4383 = vld [vmem:[#allocation8 + $0x444] sm:$0xff]
    %v4384 = vld [vmem:[#allocation8 + $0x44c] sm:$0xff]
    %v4385 = vld [vmem:[#allocation8 + $0x454] sm:$0xff]
    %v4386 = vld [vmem:[#allocation8 + $0x45c] sm:$0xf]
    %v4387 = vld [vmem:[#allocation8 + $0x460] sm:$0xff]
    %v4388 = vld [vmem:[#allocation8 + $0x468] sm:$0xff]
    %v4389 = vld [vmem:[#allocation8 + $0x470] sm:$0xff]
    %v4390 = vld [vmem:[#allocation8 + $0x478] sm:$0xf]
    %v4391 = vld [vmem:[#allocation8 + $0x47c] sm:$0xff]
    %v4392 = vld [vmem:[#allocation8 + $0x484] sm:$0xff]
    %v4393 = vld [vmem:[#allocation8 + $0x48c] sm:$0xff]
    %v4394 = vld [vmem:[#allocation8 + $0x494] sm:$0xf]
    %v4395 = vld [vmem:[#allocation8 + $0x498] sm:$0xff]
    %v4396 = vld [vmem:[#allocation8 + $0x4a0] sm:$0xff]
    %v4397 = vld [vmem:[#allocation8 + $0x4a8] sm:$0xff]
    %v4398 = vld [vmem:[#allocation8 + $0x4b0] sm:$0xf]
    %v4399 = vld [vmem:[#allocation8 + $0x4b4] sm:$0xff]
    %v4400 = vld [vmem:[#allocation8 + $0x4bc] sm:$0xff]
    %v4401 = vld [vmem:[#allocation8 + $0x4c4] sm:$0xff]
    %v4402 = vld [vmem:[#allocation8 + $0x4cc] sm:$0xf]
    %v4403 = vld [vmem:[#allocation8 + $0x4d0] sm:$0xff]
    %v4404 = vld [vmem:[#allocation8 + $0x4d8] sm:$0xff]
    %v4405 = vld [vmem:[#allocation8 + $0x4e0] sm:$0xff]
    %v4406 = vld [vmem:[#allocation8 + $0x4e8] sm:$0xf]
    %v4407 = vld [vmem:[#allocation8 + $0x4ec] sm:$0xff]
    %v4408 = vld [vmem:[#allocation8 + $0x4f4] sm:$0xff]
    %v4409 = vld [vmem:[#allocation8 + $0x4fc] sm:$0xff]
    %v4410 = vld [vmem:[#allocation8 + $0x504] sm:$0xf]
    %v4411 = vld [vmem:[#allocation8 + $0x508] sm:$0xff]
    %v4412 = vld [vmem:[#allocation8 + $0x510] sm:$0xff]
    %v4413 = vld [vmem:[#allocation8 + $0x518] sm:$0xff]
    %v4414 = vld [vmem:[#allocation8 + $0x520] sm:$0xf]
    %v4415 = vld [vmem:[#allocation8 + $0x524] sm:$0xff]
    %v4416 = vld [vmem:[#allocation8 + $0x52c] sm:$0xff]
    %v4417 = vld [vmem:[#allocation8 + $0x534] sm:$0xff]
    %v4418 = vld [vmem:[#allocation8 + $0x53c] sm:$0xf]
    %v4419 = vld [vmem:[#allocation8 + $0x540] sm:$0xff]
    %v4420 = vld [vmem:[#allocation8 + $0x548] sm:$0xff]
    %v4421 = vld [vmem:[#allocation8 + $0x550] sm:$0xff]
    %v4422 = vld [vmem:[#allocation8 + $0x558] sm:$0xf]
    %v4423 = vld [vmem:[#allocation8 + $0x55c] sm:$0xff]
    %v4424 = vld [vmem:[#allocation8 + $0x564] sm:$0xff]
    %v4425 = vld [vmem:[#allocation8 + $0x56c] sm:$0xff]
    %v4426 = vld [vmem:[#allocation8 + $0x574] sm:$0xf]
    %v4427 = vld [vmem:[#allocation8 + $0x578] sm:$0xff]
    %v4428 = vld [vmem:[#allocation8 + $0x580] sm:$0xff]
    %v4429 = vld [vmem:[#allocation8 + $0x588] sm:$0xff]
    %v4430 = vld [vmem:[#allocation8 + $0x590] sm:$0xf]
    %v4431 = vld [vmem:[#allocation8 + $0x594] sm:$0xff]
    %v4432 = vld [vmem:[#allocation8 + $0x59c] sm:$0xff]
    %v4433 = vld [vmem:[#allocation8 + $0x5a4] sm:$0xff]
    %v4434 = vld [vmem:[#allocation8 + $0x5ac] sm:$0xf]
    %v4435 = vld [vmem:[#allocation8 + $0x5b0] sm:$0xff]
    %v4436 = vld [vmem:[#allocation8 + $0x5b8] sm:$0xff]
    %v4437 = vld [vmem:[#allocation8 + $0x5c0] sm:$0xff]
    %v4438 = vld [vmem:[#allocation8 + $0x5c8] sm:$0xf]
    %v4439 = vld [vmem:[#allocation8 + $0x5cc] sm:$0xff]
    %v4440 = vld [vmem:[#allocation8 + $0x5d4] sm:$0xff]
    %v4441 = vld [vmem:[#allocation8 + $0x5dc] sm:$0xff]
    %v4442 = vld [vmem:[#allocation8 + $0x5e4] sm:$0xf]
    %v4443 = vld [vmem:[#allocation8 + $0x5e8] sm:$0xff]
    %v4444 = vld [vmem:[#allocation8 + $0x5f0] sm:$0xff]
    %v4445 = vld [vmem:[#allocation8 + $0x5f8] sm:$0xff]
    %v4446 = vld [vmem:[#allocation8 + $0x600] sm:$0xf]
    %v4447 = vld [vmem:[#allocation8 + $0x604] sm:$0xff]
    %v4448 = vld [vmem:[#allocation8 + $0x60c] sm:$0xff]
    %v4449 = vld [vmem:[#allocation8 + $0x614] sm:$0xff]
    %v4450 = vld [vmem:[#allocation8 + $0x61c] sm:$0xf]
    %v4451 = vld [vmem:[#allocation8 + $0x620] sm:$0xff]
    %v4452 = vld [vmem:[#allocation8 + $0x628] sm:$0xff]
    %v4453 = vld [vmem:[#allocation8 + $0x630] sm:$0xff]
    %v4454 = vld [vmem:[#allocation8 + $0x638] sm:$0xf]
    %v4455 = vld [vmem:[#allocation8 + $0x63c] sm:$0xff]
    %v4456 = vld [vmem:[#allocation8 + $0x644] sm:$0xff]
    %v4457 = vld [vmem:[#allocation8 + $0x64c] sm:$0xff]
    %v4458 = vld [vmem:[#allocation8 + $0x654] sm:$0xf]
    %v4459 = vld [vmem:[#allocation8 + $0x658] sm:$0xff]
    %v4460 = vld [vmem:[#allocation8 + $0x660] sm:$0xff]
    %v4461 = vld [vmem:[#allocation8 + $0x668] sm:$0xff]
    %v4462 = vld [vmem:[#allocation8 + $0x670] sm:$0xf]
    %v4463 = vld [vmem:[#allocation8 + $0x674] sm:$0xff]
    %v4464 = vld [vmem:[#allocation8 + $0x67c] sm:$0xff]
    %v4465 = vld [vmem:[#allocation8 + $0x684] sm:$0xff]
    %v4466 = vld [vmem:[#allocation8 + $0x68c] sm:$0xf]
    %v4467 = vld [vmem:[#allocation8 + $0x690] sm:$0xff]
    %v4468 = vld [vmem:[#allocation8 + $0x698] sm:$0xff]
    %v4469 = vld [vmem:[#allocation8 + $0x6a0] sm:$0xff]
    %v4470 = vld [vmem:[#allocation8 + $0x6a8] sm:$0xf]
    %v4471 = vld [vmem:[#allocation8 + $0x6ac] sm:$0xff]
    %v4472 = vld [vmem:[#allocation8 + $0x6b4] sm:$0xff]
    %v4473 = vld [vmem:[#allocation8 + $0x6bc] sm:$0xff]
    %v4474 = vld [vmem:[#allocation8 + $0x6c4] sm:$0xf]
    %v4475 = vld [vmem:[#allocation8 + $0x6c8] sm:$0xff]
    %v4476 = vld [vmem:[#allocation8 + $0x6d0] sm:$0xff]
    %v4477 = vld [vmem:[#allocation8 + $0x6d8] sm:$0xff]
    %v4478 = vld [vmem:[#allocation8 + $0x6e0] sm:$0xf]
    %v4479 = vld [vmem:[#allocation8 + $0x6e4] sm:$0xff]
    %v4480 = vld [vmem:[#allocation8 + $0x6ec] sm:$0xff]
    %v4481 = vld [vmem:[#allocation8 + $0x6f4] sm:$0xff]
    %v4482 = vld [vmem:[#allocation8 + $0x6fc] sm:$0xf]
    %v4483 = vld [vmem:[%s13] sm:$0xff]
    %v4485 = vperm.slane %v4483, 0
    %v4486 = vperm.slane %v4483, 1
    %v4487 = vperm.slane %v4483, 2
    %v4488 = vperm.slane %v4483, 3
    %v4489 = vperm.slane %v4483, 4
    %v4490 = vperm.slane %v4483, 5
    %v4491 = vperm.slane %v4483, 6
    %v4755 = vunpack.c.l.b16 %v4227
    %v4756 = vunpack.c.h.b16 %v4227
    %v4757 = vunpack.c.l.b16 %v4228
    %v4758 = vunpack.c.h.b16 %v4228
    %v4759 = vunpack.c.l.b16 %v4229
    %v4760 = vunpack.c.h.b16 %v4229
    %v4761 = vunpack.c.l.b16 %v4230
    %v4762 = vunpack.c.l.b16 %v4231
    %v4763 = vunpack.c.h.b16 %v4231
    %v4764 = vunpack.c.l.b16 %v4232
    %v4765 = vunpack.c.h.b16 %v4232
    %v4766 = vunpack.c.l.b16 %v4233
    %v4767 = vunpack.c.h.b16 %v4233
    %v4768 = vunpack.c.l.b16 %v4234
    %v4769 = vunpack.c.l.b16 %v4235
    %v4770 = vunpack.c.h.b16 %v4235
    %v4771 = vunpack.c.l.b16 %v4236
    %v4772 = vunpack.c.h.b16 %v4236
    %v4773 = vunpack.c.l.b16 %v4237
    %v4774 = vunpack.c.h.b16 %v4237
    %v4775 = vunpack.c.l.b16 %v4238
    %v4776 = vunpack.c.l.b16 %v4239
    %v4777 = vunpack.c.h.b16 %v4239
    %v4778 = vunpack.c.l.b16 %v4240
    %v4779 = vunpack.c.h.b16 %v4240
    %v4780 = vunpack.c.l.b16 %v4241
    %v4781 = vunpack.c.h.b16 %v4241
    %v4782 = vunpack.c.l.b16 %v4242
    %v4783 = vunpack.c.l.b16 %v4243
    %v4784 = vunpack.c.h.b16 %v4243
    %v4785 = vunpack.c.l.b16 %v4244
    %v4786 = vunpack.c.h.b16 %v4244
    %v4787 = vunpack.c.l.b16 %v4245
    %v4788 = vunpack.c.h.b16 %v4245
    %v4789 = vunpack.c.l.b16 %v4246
    %v4790 = vunpack.c.l.b16 %v4247
    %v4791 = vunpack.c.h.b16 %v4247
    %v4792 = vunpack.c.l.b16 %v4248
    %v4793 = vunpack.c.h.b16 %v4248
    %v4794 = vunpack.c.l.b16 %v4249
    %v4795 = vunpack.c.h.b16 %v4249
    %v4796 = vunpack.c.l.b16 %v4250
    %v4797 = vunpack.c.l.b16 %v4251
    %v4798 = vunpack.c.h.b16 %v4251
    %v4799 = vunpack.c.l.b16 %v4252
    %v4800 = vunpack.c.h.b16 %v4252
    %v4801 = vunpack.c.l.b16 %v4253
    %v4802 = vunpack.c.h.b16 %v4253
    %v4803 = vunpack.c.l.b16 %v4254
    %v4804 = vunpack.c.l.b16 %v4255
    %v4805 = vunpack.c.h.b16 %v4255
    %v4806 = vunpack.c.l.b16 %v4256
    %v4807 = vunpack.c.h.b16 %v4256
    %v4808 = vunpack.c.l.b16 %v4257
    %v4809 = vunpack.c.h.b16 %v4257
    %v4810 = vunpack.c.l.b16 %v4258
    %v4811 = vunpack.c.l.b16 %v4259
    %v4812 = vunpack.c.h.b16 %v4259
    %v4813 = vunpack.c.l.b16 %v4260
    %v4814 = vunpack.c.h.b16 %v4260
    %v4815 = vunpack.c.l.b16 %v4261
    %v4816 = vunpack.c.h.b16 %v4261
    %v4817 = vunpack.c.l.b16 %v4262
    %v4818 = vunpack.c.l.b16 %v4263
    %v4819 = vunpack.c.h.b16 %v4263
    %v4820 = vunpack.c.l.b16 %v4264
    %v4821 = vunpack.c.h.b16 %v4264
    %v4822 = vunpack.c.l.b16 %v4265
    %v4823 = vunpack.c.h.b16 %v4265
    %v4824 = vunpack.c.l.b16 %v4266
    %v4825 = vunpack.c.l.b16 %v4267
    %v4826 = vunpack.c.h.b16 %v4267
    %v4827 = vunpack.c.l.b16 %v4268
    %v4828 = vunpack.c.h.b16 %v4268
    %v4829 = vunpack.c.l.b16 %v4269
    %v4830 = vunpack.c.h.b16 %v4269
    %v4831 = vunpack.c.l.b16 %v4270
    %v4832 = vunpack.c.l.b16 %v4271
    %v4833 = vunpack.c.h.b16 %v4271
    %v4834 = vunpack.c.l.b16 %v4272
    %v4835 = vunpack.c.h.b16 %v4272
    %v4836 = vunpack.c.l.b16 %v4273
    %v4837 = vunpack.c.h.b16 %v4273
    %v4838 = vunpack.c.l.b16 %v4274
    %v4839 = vunpack.c.l.b16 %v4275
    %v4840 = vunpack.c.h.b16 %v4275
    %v4841 = vunpack.c.l.b16 %v4276
    %v4842 = vunpack.c.h.b16 %v4276
    %v4843 = vunpack.c.l.b16 %v4277
    %v4844 = vunpack.c.h.b16 %v4277
    %v4845 = vunpack.c.l.b16 %v4278
    %v4846 = vunpack.c.l.b16 %v4279
    %v4847 = vunpack.c.h.b16 %v4279
    %v4848 = vunpack.c.l.b16 %v4280
    %v4849 = vunpack.c.h.b16 %v4280
    %v4850 = vunpack.c.l.b16 %v4281
    %v4851 = vunpack.c.h.b16 %v4281
    %v4852 = vunpack.c.l.b16 %v4282
    %v4853 = vunpack.c.l.b16 %v4283
    %v4854 = vunpack.c.h.b16 %v4283
    %v4855 = vunpack.c.l.b16 %v4284
    %v4856 = vunpack.c.h.b16 %v4284
    %v4857 = vunpack.c.l.b16 %v4285
    %v4858 = vunpack.c.h.b16 %v4285
    %v4859 = vunpack.c.l.b16 %v4286
    %v4860 = vunpack.c.l.b16 %v4287
    %v4861 = vunpack.c.h.b16 %v4287
    %v4862 = vunpack.c.l.b16 %v4288
    %v4863 = vunpack.c.h.b16 %v4288
    %v4864 = vunpack.c.l.b16 %v4289
    %v4865 = vunpack.c.h.b16 %v4289
    %v4866 = vunpack.c.l.b16 %v4290
    %v4867 = vunpack.c.l.b16 %v4291
    %v4868 = vunpack.c.h.b16 %v4291
    %v4869 = vunpack.c.l.b16 %v4292
    %v4870 = vunpack.c.h.b16 %v4292
    %v4871 = vunpack.c.l.b16 %v4293
    %v4872 = vunpack.c.h.b16 %v4293
    %v4873 = vunpack.c.l.b16 %v4294
    %v4874 = vunpack.c.l.b16 %v4295
    %v4875 = vunpack.c.h.b16 %v4295
    %v4876 = vunpack.c.l.b16 %v4296
    %v4877 = vunpack.c.h.b16 %v4296
    %v4878 = vunpack.c.l.b16 %v4297
    %v4879 = vunpack.c.h.b16 %v4297
    %v4880 = vunpack.c.l.b16 %v4298
    %v4881 = vunpack.c.l.b16 %v4299
    %v4882 = vunpack.c.h.b16 %v4299
    %v4883 = vunpack.c.l.b16 %v4300
    %v4884 = vunpack.c.h.b16 %v4300
    %v4885 = vunpack.c.l.b16 %v4301
    %v4886 = vunpack.c.h.b16 %v4301
    %v4887 = vunpack.c.l.b16 %v4302
    %v4888 = vunpack.c.l.b16 %v4303
    %v4889 = vunpack.c.h.b16 %v4303
    %v4890 = vunpack.c.l.b16 %v4304
    %v4891 = vunpack.c.h.b16 %v4304
    %v4892 = vunpack.c.l.b16 %v4305
    %v4893 = vunpack.c.h.b16 %v4305
    %v4894 = vunpack.c.l.b16 %v4306
    %v4895 = vunpack.c.l.b16 %v4307
    %v4896 = vunpack.c.h.b16 %v4307
    %v4897 = vunpack.c.l.b16 %v4308
    %v4898 = vunpack.c.h.b16 %v4308
    %v4899 = vunpack.c.l.b16 %v4309
    %v4900 = vunpack.c.h.b16 %v4309
    %v4901 = vunpack.c.l.b16 %v4310
    %v4902 = vunpack.c.l.b16 %v4311
    %v4903 = vunpack.c.h.b16 %v4311
    %v4904 = vunpack.c.l.b16 %v4312
    %v4905 = vunpack.c.h.b16 %v4312
    %v4906 = vunpack.c.l.b16 %v4313
    %v4907 = vunpack.c.h.b16 %v4313
    %v4908 = vunpack.c.l.b16 %v4314
    %v4909 = vunpack.c.l.b16 %v4315
    %v4910 = vunpack.c.h.b16 %v4315
    %v4911 = vunpack.c.l.b16 %v4316
    %v4912 = vunpack.c.h.b16 %v4316
    %v4913 = vunpack.c.l.b16 %v4317
    %v4914 = vunpack.c.h.b16 %v4317
    %v4915 = vunpack.c.l.b16 %v4318
    %v4916 = vunpack.c.l.b16 %v4319
    %v4917 = vunpack.c.h.b16 %v4319
    %v4918 = vunpack.c.l.b16 %v4320
    %v4919 = vunpack.c.h.b16 %v4320
    %v4920 = vunpack.c.l.b16 %v4321
    %v4921 = vunpack.c.h.b16 %v4321
    %v4922 = vunpack.c.l.b16 %v4322
    %v4923 = vunpack.c.l.b16 %v4323
    %v4924 = vunpack.c.h.b16 %v4323
    %v4925 = vunpack.c.l.b16 %v4324
    %v4926 = vunpack.c.h.b16 %v4324
    %v4927 = vunpack.c.l.b16 %v4325
    %v4928 = vunpack.c.h.b16 %v4325
    %v4929 = vunpack.c.l.b16 %v4326
    %v4930 = vunpack.c.l.b16 %v4327
    %v4931 = vunpack.c.h.b16 %v4327
    %v4932 = vunpack.c.l.b16 %v4328
    %v4933 = vunpack.c.h.b16 %v4328
    %v4934 = vunpack.c.l.b16 %v4329
    %v4935 = vunpack.c.h.b16 %v4329
    %v4936 = vunpack.c.l.b16 %v4330
    %v4937 = vunpack.c.l.b16 %v4331
    %v4938 = vunpack.c.h.b16 %v4331
    %v4939 = vunpack.c.l.b16 %v4332
    %v4940 = vunpack.c.h.b16 %v4332
    %v4941 = vunpack.c.l.b16 %v4333
    %v4942 = vunpack.c.h.b16 %v4333
    %v4943 = vunpack.c.l.b16 %v4334
    %v4944 = vunpack.c.l.b16 %v4335
    %v4945 = vunpack.c.h.b16 %v4335
    %v4946 = vunpack.c.l.b16 %v4336
    %v4947 = vunpack.c.h.b16 %v4336
    %v4948 = vunpack.c.l.b16 %v4337
    %v4949 = vunpack.c.h.b16 %v4337
    %v4950 = vunpack.c.l.b16 %v4338
    %v4951 = vunpack.c.l.b16 %v4339
    %v4952 = vunpack.c.h.b16 %v4339
    %v4953 = vunpack.c.l.b16 %v4340
    %v4954 = vunpack.c.h.b16 %v4340
    %v4955 = vunpack.c.l.b16 %v4341
    %v4956 = vunpack.c.h.b16 %v4341
    %v4957 = vunpack.c.l.b16 %v4342
    %v4958 = vunpack.c.l.b16 %v4343
    %v4959 = vunpack.c.h.b16 %v4343
    %v4960 = vunpack.c.l.b16 %v4344
    %v4961 = vunpack.c.h.b16 %v4344
    %v4962 = vunpack.c.l.b16 %v4345
    %v4963 = vunpack.c.h.b16 %v4345
    %v4964 = vunpack.c.l.b16 %v4346
    %v4965 = vunpack.c.l.b16 %v4347
    %v4966 = vunpack.c.h.b16 %v4347
    %v4967 = vunpack.c.l.b16 %v4348
    %v4968 = vunpack.c.h.b16 %v4348
    %v4969 = vunpack.c.l.b16 %v4349
    %v4970 = vunpack.c.h.b16 %v4349
    %v4971 = vunpack.c.l.b16 %v4350
    %v4972 = vunpack.c.l.b16 %v4351
    %v4973 = vunpack.c.h.b16 %v4351
    %v4974 = vunpack.c.l.b16 %v4352
    %v4975 = vunpack.c.h.b16 %v4352
    %v4976 = vunpack.c.l.b16 %v4353
    %v4977 = vunpack.c.h.b16 %v4353
    %v4978 = vunpack.c.l.b16 %v4354
    %v4979 = vunpack.c.l.b16 %v4355
    %v4980 = vunpack.c.h.b16 %v4355
    %v4981 = vunpack.c.l.b16 %v4356
    %v4982 = vunpack.c.h.b16 %v4356
    %v4983 = vunpack.c.l.b16 %v4357
    %v4984 = vunpack.c.h.b16 %v4357
    %v4985 = vunpack.c.l.b16 %v4358
    %v4986 = vunpack.c.l.b16 %v4359
    %v4987 = vunpack.c.h.b16 %v4359
    %v4988 = vunpack.c.l.b16 %v4360
    %v4989 = vunpack.c.h.b16 %v4360
    %v4990 = vunpack.c.l.b16 %v4361
    %v4991 = vunpack.c.h.b16 %v4361
    %v4992 = vunpack.c.l.b16 %v4362
    %v4993 = vunpack.c.l.b16 %v4363
    %v4994 = vunpack.c.h.b16 %v4363
    %v4995 = vunpack.c.l.b16 %v4364
    %v4996 = vunpack.c.h.b16 %v4364
    %v4997 = vunpack.c.l.b16 %v4365
    %v4998 = vunpack.c.h.b16 %v4365
    %v4999 = vunpack.c.l.b16 %v4366
    %v5000 = vunpack.c.l.b16 %v4367
    %v5001 = vunpack.c.h.b16 %v4367
    %v5002 = vunpack.c.l.b16 %v4368
    %v5003 = vunpack.c.h.b16 %v4368
    %v5004 = vunpack.c.l.b16 %v4369
    %v5005 = vunpack.c.h.b16 %v4369
    %v5006 = vunpack.c.l.b16 %v4370
    %v5007 = vunpack.c.l.b16 %v4371
    %v5008 = vunpack.c.h.b16 %v4371
    %v5009 = vunpack.c.l.b16 %v4372
    %v5010 = vunpack.c.h.b16 %v4372
    %v5011 = vunpack.c.l.b16 %v4373
    %v5012 = vunpack.c.h.b16 %v4373
    %v5013 = vunpack.c.l.b16 %v4374
    %v5014 = vunpack.c.l.b16 %v4375
    %v5015 = vunpack.c.h.b16 %v4375
    %v5016 = vunpack.c.l.b16 %v4376
    %v5017 = vunpack.c.h.b16 %v4376
    %v5018 = vunpack.c.l.b16 %v4377
    %v5019 = vunpack.c.h.b16 %v4377
    %v5020 = vunpack.c.l.b16 %v4378
    %v5021 = vunpack.c.l.b16 %v4379
    %v5022 = vunpack.c.h.b16 %v4379
    %v5023 = vunpack.c.l.b16 %v4380
    %v5024 = vunpack.c.h.b16 %v4380
    %v5025 = vunpack.c.l.b16 %v4381
    %v5026 = vunpack.c.h.b16 %v4381
    %v5027 = vunpack.c.l.b16 %v4382
    %v5028 = vunpack.c.l.b16 %v4383
    %v5029 = vunpack.c.h.b16 %v4383
    %v5030 = vunpack.c.l.b16 %v4384
    %v5031 = vunpack.c.h.b16 %v4384
    %v5032 = vunpack.c.l.b16 %v4385
    %v5033 = vunpack.c.h.b16 %v4385
    %v5034 = vunpack.c.l.b16 %v4386
    %v5035 = vunpack.c.l.b16 %v4387
    %v5036 = vunpack.c.h.b16 %v4387
    %v5037 = vunpack.c.l.b16 %v4388
    %v5038 = vunpack.c.h.b16 %v4388
    %v5039 = vunpack.c.l.b16 %v4389
    %v5040 = vunpack.c.h.b16 %v4389
    %v5041 = vunpack.c.l.b16 %v4390
    %v5042 = vunpack.c.l.b16 %v4391
    %v5043 = vunpack.c.h.b16 %v4391
    %v5044 = vunpack.c.l.b16 %v4392
    %v5045 = vunpack.c.h.b16 %v4392
    %v5046 = vunpack.c.l.b16 %v4393
    %v5047 = vunpack.c.h.b16 %v4393
    %v5048 = vunpack.c.l.b16 %v4394
    %v5049 = vunpack.c.l.b16 %v4395
    %v5050 = vunpack.c.h.b16 %v4395
    %v5051 = vunpack.c.l.b16 %v4396
    %v5052 = vunpack.c.h.b16 %v4396
    %v5053 = vunpack.c.l.b16 %v4397
    %v5054 = vunpack.c.h.b16 %v4397
    %v5055 = vunpack.c.l.b16 %v4398
    %v5056 = vunpack.c.l.b16 %v4399
    %v5057 = vunpack.c.h.b16 %v4399
    %v5058 = vunpack.c.l.b16 %v4400
    %v5059 = vunpack.c.h.b16 %v4400
    %v5060 = vunpack.c.l.b16 %v4401
    %v5061 = vunpack.c.h.b16 %v4401
    %v5062 = vunpack.c.l.b16 %v4402
    %v5063 = vunpack.c.l.b16 %v4403
    %v5064 = vunpack.c.h.b16 %v4403
    %v5065 = vunpack.c.l.b16 %v4404
    %v5066 = vunpack.c.h.b16 %v4404
    %v5067 = vunpack.c.l.b16 %v4405
    %v5068 = vunpack.c.h.b16 %v4405
    %v5069 = vunpack.c.l.b16 %v4406
    %v5070 = vunpack.c.l.b16 %v4407
    %v5071 = vunpack.c.h.b16 %v4407
    %v5072 = vunpack.c.l.b16 %v4408
    %v5073 = vunpack.c.h.b16 %v4408
    %v5074 = vunpack.c.l.b16 %v4409
    %v5075 = vunpack.c.h.b16 %v4409
    %v5076 = vunpack.c.l.b16 %v4410
    %v5077 = vunpack.c.l.b16 %v4411
    %v5078 = vunpack.c.h.b16 %v4411
    %v5079 = vunpack.c.l.b16 %v4412
    %v5080 = vunpack.c.h.b16 %v4412
    %v5081 = vunpack.c.l.b16 %v4413
    %v5082 = vunpack.c.h.b16 %v4413
    %v5083 = vunpack.c.l.b16 %v4414
    %v5084 = vunpack.c.l.b16 %v4415
    %v5085 = vunpack.c.h.b16 %v4415
    %v5086 = vunpack.c.l.b16 %v4416
    %v5087 = vunpack.c.h.b16 %v4416
    %v5088 = vunpack.c.l.b16 %v4417
    %v5089 = vunpack.c.h.b16 %v4417
    %v5090 = vunpack.c.l.b16 %v4418
    %v5091 = vunpack.c.l.b16 %v4419
    %v5092 = vunpack.c.h.b16 %v4419
    %v5093 = vunpack.c.l.b16 %v4420
    %v5094 = vunpack.c.h.b16 %v4420
    %v5095 = vunpack.c.l.b16 %v4421
    %v5096 = vunpack.c.h.b16 %v4421
    %v5097 = vunpack.c.l.b16 %v4422
    %v5098 = vunpack.c.l.b16 %v4423
    %v5099 = vunpack.c.h.b16 %v4423
    %v5100 = vunpack.c.l.b16 %v4424
    %v5101 = vunpack.c.h.b16 %v4424
    %v5102 = vunpack.c.l.b16 %v4425
    %v5103 = vunpack.c.h.b16 %v4425
    %v5104 = vunpack.c.l.b16 %v4426
    %v5105 = vunpack.c.l.b16 %v4427
    %v5106 = vunpack.c.h.b16 %v4427
    %v5107 = vunpack.c.l.b16 %v4428
    %v5108 = vunpack.c.h.b16 %v4428
    %v5109 = vunpack.c.l.b16 %v4429
    %v5110 = vunpack.c.h.b16 %v4429
    %v5111 = vunpack.c.l.b16 %v4430
    %v5112 = vunpack.c.l.b16 %v4431
    %v5113 = vunpack.c.h.b16 %v4431
    %v5114 = vunpack.c.l.b16 %v4432
    %v5115 = vunpack.c.h.b16 %v4432
    %v5116 = vunpack.c.l.b16 %v4433
    %v5117 = vunpack.c.h.b16 %v4433
    %v5118 = vunpack.c.l.b16 %v4434
    %v5119 = vunpack.c.l.b16 %v4435
    %v5120 = vunpack.c.h.b16 %v4435
    %v5121 = vunpack.c.l.b16 %v4436
    %v5122 = vunpack.c.h.b16 %v4436
    %v5123 = vunpack.c.l.b16 %v4437
    %v5124 = vunpack.c.h.b16 %v4437
    %v5125 = vunpack.c.l.b16 %v4438
    %v5126 = vunpack.c.l.b16 %v4439
    %v5127 = vunpack.c.h.b16 %v4439
    %v5128 = vunpack.c.l.b16 %v4440
    %v5129 = vunpack.c.h.b16 %v4440
    %v5130 = vunpack.c.l.b16 %v4441
    %v5131 = vunpack.c.h.b16 %v4441
    %v5132 = vunpack.c.l.b16 %v4442
    %v5133 = vunpack.c.l.b16 %v4443
    %v5134 = vunpack.c.h.b16 %v4443
    %v5135 = vunpack.c.l.b16 %v4444
    %v5136 = vunpack.c.h.b16 %v4444
    %v5137 = vunpack.c.l.b16 %v4445
    %v5138 = vunpack.c.h.b16 %v4445
    %v5139 = vunpack.c.l.b16 %v4446
    %v5140 = vunpack.c.l.b16 %v4447
    %v5141 = vunpack.c.h.b16 %v4447
    %v5142 = vunpack.c.l.b16 %v4448
    %v5143 = vunpack.c.h.b16 %v4448
    %v5144 = vunpack.c.l.b16 %v4449
    %v5145 = vunpack.c.h.b16 %v4449
    %v5146 = vunpack.c.l.b16 %v4450
    %v5147 = vunpack.c.l.b16 %v4451
    %v5148 = vunpack.c.h.b16 %v4451
    %v5149 = vunpack.c.l.b16 %v4452
    %v5150 = vunpack.c.h.b16 %v4452
    %v5151 = vunpack.c.l.b16 %v4453
    %v5152 = vunpack.c.h.b16 %v4453
    %v5153 = vunpack.c.l.b16 %v4454
    %v5154 = vunpack.c.l.b16 %v4455
    %v5155 = vunpack.c.h.b16 %v4455
    %v5156 = vunpack.c.l.b16 %v4456
    %v5157 = vunpack.c.h.b16 %v4456
    %v5158 = vunpack.c.l.b16 %v4457
    %v5159 = vunpack.c.h.b16 %v4457
    %v5160 = vunpack.c.l.b16 %v4458
    %v5161 = vunpack.c.l.b16 %v4459
    %v5162 = vunpack.c.h.b16 %v4459
    %v5163 = vunpack.c.l.b16 %v4460
    %v5164 = vunpack.c.h.b16 %v4460
    %v5165 = vunpack.c.l.b16 %v4461
    %v5166 = vunpack.c.h.b16 %v4461
    %v5167 = vunpack.c.l.b16 %v4462
    %v5168 = vunpack.c.l.b16 %v4463
    %v5169 = vunpack.c.h.b16 %v4463
    %v5170 = vunpack.c.l.b16 %v4464
    %v5171 = vunpack.c.h.b16 %v4464
    %v5172 = vunpack.c.l.b16 %v4465
    %v5173 = vunpack.c.h.b16 %v4465
    %v5174 = vunpack.c.l.b16 %v4466
    %v5175 = vunpack.c.l.b16 %v4467
    %v5176 = vunpack.c.h.b16 %v4467
    %v5177 = vunpack.c.l.b16 %v4468
    %v5178 = vunpack.c.h.b16 %v4468
    %v5179 = vunpack.c.l.b16 %v4469
    %v5180 = vunpack.c.h.b16 %v4469
    %v5181 = vunpack.c.l.b16 %v4470
    %v5182 = vunpack.c.l.b16 %v4471
    %v5183 = vunpack.c.h.b16 %v4471
    %v5184 = vunpack.c.l.b16 %v4472
    %v5185 = vunpack.c.h.b16 %v4472
    %v5186 = vunpack.c.l.b16 %v4473
    %v5187 = vunpack.c.h.b16 %v4473
    %v5188 = vunpack.c.l.b16 %v4474
    %v5189 = vunpack.c.l.b16 %v4475
    %v5190 = vunpack.c.h.b16 %v4475
    %v5191 = vunpack.c.l.b16 %v4476
    %v5192 = vunpack.c.h.b16 %v4476
    %v5193 = vunpack.c.l.b16 %v4477
    %v5194 = vunpack.c.h.b16 %v4477
    %v5195 = vunpack.c.l.b16 %v4478
    %v5196 = vunpack.c.l.b16 %v4479
    %v5197 = vunpack.c.h.b16 %v4479
    %v5198 = vunpack.c.l.b16 %v4480
    %v5199 = vunpack.c.h.b16 %v4480
    %v5200 = vunpack.c.l.b16 %v4481
    %v5201 = vunpack.c.h.b16 %v4481
    %v5202 = vunpack.c.l.b16 %v4482
    %v5203 = vpack.c.b16 %v4762, %v4755
    %v5204 = vpack.c.b16 %v4763, %v4756
    %v5205 = vpack.c.b16 %v4764, %v4757
    %v5206 = vpack.c.b16 %v4765, %v4758
    %v5207 = vpack.c.b16 %v4766, %v4759
    %v5208 = vpack.c.b16 %v4767, %v4760
    %v5209 = vpack.c.b16 %v4768, %v4761
    %v5210 = vpack.c.b16 %v4776, %v4769
    %v5211 = vpack.c.b16 %v4777, %v4770
    %v5212 = vpack.c.b16 %v4778, %v4771
    %v5213 = vpack.c.b16 %v4779, %v4772
    %v5214 = vpack.c.b16 %v4780, %v4773
    %v5215 = vpack.c.b16 %v4781, %v4774
    %v5216 = vpack.c.b16 %v4782, %v4775
    %v5217 = vpack.c.b16 %v4790, %v4783
    %v5218 = vpack.c.b16 %v4791, %v4784
    %v5219 = vpack.c.b16 %v4792, %v4785
    %v5220 = vpack.c.b16 %v4793, %v4786
    %v5221 = vpack.c.b16 %v4794, %v4787
    %v5222 = vpack.c.b16 %v4795, %v4788
    %v5223 = vpack.c.b16 %v4796, %v4789
    %v5224 = vpack.c.b16 %v4804, %v4797
    %v5225 = vpack.c.b16 %v4805, %v4798
    %v5226 = vpack.c.b16 %v4806, %v4799
    %v5227 = vpack.c.b16 %v4807, %v4800
    %v5228 = vpack.c.b16 %v4808, %v4801
    %v5229 = vpack.c.b16 %v4809, %v4802
    %v5230 = vpack.c.b16 %v4810, %v4803
    %v5231 = vpack.c.b16 %v4818, %v4811
    %v5232 = vpack.c.b16 %v4819, %v4812
    %v5233 = vpack.c.b16 %v4820, %v4813
    %v5234 = vpack.c.b16 %v4821, %v4814
    %v5235 = vpack.c.b16 %v4822, %v4815
    %v5236 = vpack.c.b16 %v4823, %v4816
    %v5237 = vpack.c.b16 %v4824, %v4817
    %v5238 = vpack.c.b16 %v4832, %v4825
    %v5239 = vpack.c.b16 %v4833, %v4826
    %v5240 = vpack.c.b16 %v4834, %v4827
    %v5241 = vpack.c.b16 %v4835, %v4828
    %v5242 = vpack.c.b16 %v4836, %v4829
    %v5243 = vpack.c.b16 %v4837, %v4830
    %v5244 = vpack.c.b16 %v4838, %v4831
    %v5245 = vpack.c.b16 %v4846, %v4839
    %v5246 = vpack.c.b16 %v4847, %v4840
    %v5247 = vpack.c.b16 %v4848, %v4841
    %v5248 = vpack.c.b16 %v4849, %v4842
    %v5249 = vpack.c.b16 %v4850, %v4843
    %v5250 = vpack.c.b16 %v4851, %v4844
    %v5251 = vpack.c.b16 %v4852, %v4845
    %v5252 = vpack.c.b16 %v4860, %v4853
    %v5253 = vpack.c.b16 %v4861, %v4854
    %v5254 = vpack.c.b16 %v4862, %v4855
    %v5255 = vpack.c.b16 %v4863, %v4856
    %v5256 = vpack.c.b16 %v4864, %v4857
    %v5257 = vpack.c.b16 %v4865, %v4858
    %v5258 = vpack.c.b16 %v4866, %v4859
    %v5259 = vpack.c.b16 %v4874, %v4867
    %v5260 = vpack.c.b16 %v4875, %v4868
    %v5261 = vpack.c.b16 %v4876, %v4869
    %v5262 = vpack.c.b16 %v4877, %v4870
    %v5263 = vpack.c.b16 %v4878, %v4871
    %v5264 = vpack.c.b16 %v4879, %v4872
    %v5265 = vpack.c.b16 %v4880, %v4873
    %v5266 = vpack.c.b16 %v4888, %v4881
    %v5267 = vpack.c.b16 %v4889, %v4882
    %v5268 = vpack.c.b16 %v4890, %v4883
    %v5269 = vpack.c.b16 %v4891, %v4884
    %v5270 = vpack.c.b16 %v4892, %v4885
    %v5271 = vpack.c.b16 %v4893, %v4886
    %v5272 = vpack.c.b16 %v4894, %v4887
    %v5273 = vpack.c.b16 %v4902, %v4895
    %v5274 = vpack.c.b16 %v4903, %v4896
    %v5275 = vpack.c.b16 %v4904, %v4897
    %v5276 = vpack.c.b16 %v4905, %v4898
    %v5277 = vpack.c.b16 %v4906, %v4899
    %v5278 = vpack.c.b16 %v4907, %v4900
    %v5279 = vpack.c.b16 %v4908, %v4901
    %v5280 = vpack.c.b16 %v4916, %v4909
    %v5281 = vpack.c.b16 %v4917, %v4910
    %v5282 = vpack.c.b16 %v4918, %v4911
    %v5283 = vpack.c.b16 %v4919, %v4912
    %v5284 = vpack.c.b16 %v4920, %v4913
    %v5285 = vpack.c.b16 %v4921, %v4914
    %v5286 = vpack.c.b16 %v4922, %v4915
    %v5287 = vpack.c.b16 %v4930, %v4923
    %v5288 = vpack.c.b16 %v4931, %v4924
    %v5289 = vpack.c.b16 %v4932, %v4925
    %v5290 = vpack.c.b16 %v4933, %v4926
    %v5291 = vpack.c.b16 %v4934, %v4927
    %v5292 = vpack.c.b16 %v4935, %v4928
    %v5293 = vpack.c.b16 %v4936, %v4929
    %v5294 = vpack.c.b16 %v4944, %v4937
    %v5295 = vpack.c.b16 %v4945, %v4938
    %v5296 = vpack.c.b16 %v4946, %v4939
    %v5297 = vpack.c.b16 %v4947, %v4940
    %v5298 = vpack.c.b16 %v4948, %v4941
    %v5299 = vpack.c.b16 %v4949, %v4942
    %v5300 = vpack.c.b16 %v4950, %v4943
    %v5301 = vpack.c.b16 %v4958, %v4951
    %v5302 = vpack.c.b16 %v4959, %v4952
    %v5303 = vpack.c.b16 %v4960, %v4953
    %v5304 = vpack.c.b16 %v4961, %v4954
    %v5305 = vpack.c.b16 %v4962, %v4955
    %v5306 = vpack.c.b16 %v4963, %v4956
    %v5307 = vpack.c.b16 %v4964, %v4957
    %v5308 = vpack.c.b16 %v4972, %v4965
    %v5309 = vpack.c.b16 %v4973, %v4966
    %v5310 = vpack.c.b16 %v4974, %v4967
    %v5311 = vpack.c.b16 %v4975, %v4968
    %v5312 = vpack.c.b16 %v4976, %v4969
    %v5313 = vpack.c.b16 %v4977, %v4970
    %v5314 = vpack.c.b16 %v4978, %v4971
    %v5315 = vpack.c.b16 %v4986, %v4979
    %v5316 = vpack.c.b16 %v4987, %v4980
    %v5317 = vpack.c.b16 %v4988, %v4981
    %v5318 = vpack.c.b16 %v4989, %v4982
    %v5319 = vpack.c.b16 %v4990, %v4983
    %v5320 = vpack.c.b16 %v4991, %v4984
    %v5321 = vpack.c.b16 %v4992, %v4985
    %v5322 = vpack.c.b16 %v5000, %v4993
    %v5323 = vpack.c.b16 %v5001, %v4994
    %v5324 = vpack.c.b16 %v5002, %v4995
    %v5325 = vpack.c.b16 %v5003, %v4996
    %v5326 = vpack.c.b16 %v5004, %v4997
    %v5327 = vpack.c.b16 %v5005, %v4998
    %v5328 = vpack.c.b16 %v5006, %v4999
    %v5329 = vpack.c.b16 %v5014, %v5007
    %v5330 = vpack.c.b16 %v5015, %v5008
    %v5331 = vpack.c.b16 %v5016, %v5009
    %v5332 = vpack.c.b16 %v5017, %v5010
    %v5333 = vpack.c.b16 %v5018, %v5011
    %v5334 = vpack.c.b16 %v5019, %v5012
    %v5335 = vpack.c.b16 %v5020, %v5013
    %v5336 = vpack.c.b16 %v5028, %v5021
    %v5337 = vpack.c.b16 %v5029, %v5022
    %v5338 = vpack.c.b16 %v5030, %v5023
    %v5339 = vpack.c.b16 %v5031, %v5024
    %v5340 = vpack.c.b16 %v5032, %v5025
    %v5341 = vpack.c.b16 %v5033, %v5026
    %v5342 = vpack.c.b16 %v5034, %v5027
    %v5343 = vpack.c.b16 %v5042, %v5035
    %v5344 = vpack.c.b16 %v5043, %v5036
    %v5345 = vpack.c.b16 %v5044, %v5037
    %v5346 = vpack.c.b16 %v5045, %v5038
    %v5347 = vpack.c.b16 %v5046, %v5039
    %v5348 = vpack.c.b16 %v5047, %v5040
    %v5349 = vpack.c.b16 %v5048, %v5041
    %v5350 = vpack.c.b16 %v5056, %v5049
    %v5351 = vpack.c.b16 %v5057, %v5050
    %v5352 = vpack.c.b16 %v5058, %v5051
    %v5353 = vpack.c.b16 %v5059, %v5052
    %v5354 = vpack.c.b16 %v5060, %v5053
    %v5355 = vpack.c.b16 %v5061, %v5054
    %v5356 = vpack.c.b16 %v5062, %v5055
    %v5357 = vpack.c.b16 %v5070, %v5063
    %v5358 = vpack.c.b16 %v5071, %v5064
    %v5359 = vpack.c.b16 %v5072, %v5065
    %v5360 = vpack.c.b16 %v5073, %v5066
    %v5361 = vpack.c.b16 %v5074, %v5067
    %v5362 = vpack.c.b16 %v5075, %v5068
    %v5363 = vpack.c.b16 %v5076, %v5069
    %v5364 = vpack.c.b16 %v5084, %v5077
    %v5365 = vpack.c.b16 %v5085, %v5078
    %v5366 = vpack.c.b16 %v5086, %v5079
    %v5367 = vpack.c.b16 %v5087, %v5080
    %v5368 = vpack.c.b16 %v5088, %v5081
    %v5369 = vpack.c.b16 %v5089, %v5082
    %v5370 = vpack.c.b16 %v5090, %v5083
    %v5371 = vpack.c.b16 %v5098, %v5091
    %v5372 = vpack.c.b16 %v5099, %v5092
    %v5373 = vpack.c.b16 %v5100, %v5093
    %v5374 = vpack.c.b16 %v5101, %v5094
    %v5375 = vpack.c.b16 %v5102, %v5095
    %v5376 = vpack.c.b16 %v5103, %v5096
    %v5377 = vpack.c.b16 %v5104, %v5097
    %v5378 = vpack.c.b16 %v5112, %v5105
    %v5379 = vpack.c.b16 %v5113, %v5106
    %v5380 = vpack.c.b16 %v5114, %v5107
    %v5381 = vpack.c.b16 %v5115, %v5108
    %v5382 = vpack.c.b16 %v5116, %v5109
    %v5383 = vpack.c.b16 %v5117, %v5110
    %v5384 = vpack.c.b16 %v5118, %v5111
    %v5385 = vpack.c.b16 %v5126, %v5119
    %v5386 = vpack.c.b16 %v5127, %v5120
    %v5387 = vpack.c.b16 %v5128, %v5121
    %v5388 = vpack.c.b16 %v5129, %v5122
    %v5389 = vpack.c.b16 %v5130, %v5123
    %v5390 = vpack.c.b16 %v5131, %v5124
    %v5391 = vpack.c.b16 %v5132, %v5125
    %v5392 = vpack.c.b16 %v5140, %v5133
    %v5393 = vpack.c.b16 %v5141, %v5134
    %v5394 = vpack.c.b16 %v5142, %v5135
    %v5395 = vpack.c.b16 %v5143, %v5136
    %v5396 = vpack.c.b16 %v5144, %v5137
    %v5397 = vpack.c.b16 %v5145, %v5138
    %v5398 = vpack.c.b16 %v5146, %v5139
    %v5399 = vpack.c.b16 %v5154, %v5147
    %v5400 = vpack.c.b16 %v5155, %v5148
    %v5401 = vpack.c.b16 %v5156, %v5149
    %v5402 = vpack.c.b16 %v5157, %v5150
    %v5403 = vpack.c.b16 %v5158, %v5151
    %v5404 = vpack.c.b16 %v5159, %v5152
    %v5405 = vpack.c.b16 %v5160, %v5153
    %v5406 = vpack.c.b16 %v5168, %v5161
    %v5407 = vpack.c.b16 %v5169, %v5162
    %v5408 = vpack.c.b16 %v5170, %v5163
    %v5409 = vpack.c.b16 %v5171, %v5164
    %v5410 = vpack.c.b16 %v5172, %v5165
    %v5411 = vpack.c.b16 %v5173, %v5166
    %v5412 = vpack.c.b16 %v5174, %v5167
    %v5413 = vpack.c.b16 %v5182, %v5175
    %v5414 = vpack.c.b16 %v5183, %v5176
    %v5415 = vpack.c.b16 %v5184, %v5177
    %v5416 = vpack.c.b16 %v5185, %v5178
    %v5417 = vpack.c.b16 %v5186, %v5179
    %v5418 = vpack.c.b16 %v5187, %v5180
    %v5419 = vpack.c.b16 %v5188, %v5181
    %v5420 = vpack.c.b16 %v5196, %v5189
    %v5421 = vpack.c.b16 %v5197, %v5190
    %v5422 = vpack.c.b16 %v5198, %v5191
    %v5423 = vpack.c.b16 %v5199, %v5192
    %v5424 = vpack.c.b16 %v5200, %v5193
    %v5425 = vpack.c.b16 %v5201, %v5194
    %v5426 = vpack.c.b16 %v5202, %v5195
    %5651 = vmatpush.bf16.msra.mxu0 %v5252
    %5652 = vmatpush.bf16.msra.mxu0 %v5245
    %5653 = vmatpush.bf16.msra.mxu0 %v5238
    %5654 = vmatpush.bf16.msra.mxu0 %v5231
    %5655 = vmatpush.bf16.msra.mxu0 %v5224
    %5656 = vmatpush.bf16.msra.mxu0 %v5217
    %5657 = vmatpush.bf16.msra.mxu0 %v5210
    %5658 = vmatpush.bf16.msra.mxu0 %v5203
    %5659 = vmatmul.bf16.gmra.mxu0 %v4223
    %v5660 = vpop.f32.mrf.mxu0
    %v5661 = vadd.f32 %v4485, %v5660
    %v5662 = vpop.f32.mrf.mxu0
    %5663 = vdwg.mxu0
    %5664 = vmatpush.bf16.msra.mxu0 %v5308
    %5665 = vmatpush.bf16.msra.mxu0 %v5301
    %5666 = vmatpush.bf16.msra.mxu0 %v5294
    %5667 = vmatpush.bf16.msra.mxu0 %v5287
    %5668 = vmatpush.bf16.msra.mxu0 %v5280
    %5669 = vmatpush.bf16.msra.mxu0 %v5273
    %5670 = vmatpush.bf16.msra.mxu0 %v5266
    %5671 = vmatpush.bf16.msra.mxu0 %v5259
    %5672 = vmatmul.bf16.gmra.mxu0 %v4224
    %v5673 = vpop.f32.mrf.mxu0
    %v5674 = vadd.f32 %v5661, %v5673
    %v5675 = vpop.f32.mrf.mxu0
    %5676 = vdwg.mxu0
    %5677 = vmatpush.bf16.msra.mxu0 %v5364
    %5678 = vmatpush.bf16.msra.mxu0 %v5357
    %5679 = vmatpush.bf16.msra.mxu0 %v5350
    %5680 = vmatpush.bf16.msra.mxu0 %v5343
    %5681 = vmatpush.bf16.msra.mxu0 %v5336
    %5682 = vmatpush.bf16.msra.mxu0 %v5329
    %5683 = vmatpush.bf16.msra.mxu0 %v5322
    %5684 = vmatpush.bf16.msra.mxu0 %v5315
    %5685 = vmatmul.bf16.gmra.mxu0 %v4225
    %v5686 = vpop.f32.mrf.mxu0
    %v5687 = vadd.f32 %v5674, %v5686
    %v5688 = vpop.f32.mrf.mxu0
    %5689 = vdwg.mxu0
    %5690 = vmatpush.bf16.msra.mxu0 %v5420
    %5691 = vmatpush.bf16.msra.mxu0 %v5413
    %5692 = vmatpush.bf16.msra.mxu0 %v5406
    %5693 = vmatpush.bf16.msra.mxu0 %v5399
    %5694 = vmatpush.bf16.msra.mxu0 %v5392
    %5695 = vmatpush.bf16.msra.mxu0 %v5385
    %5696 = vmatpush.bf16.msra.mxu0 %v5378
    %5697 = vmatpush.bf16.msra.mxu0 %v5371
    %5698 = vmatmul.bf16.gmra.mxu0 %v4226
    %v5699 = vpop.f32.mrf.mxu0
    %v5700 = vadd.f32 %v5687, %v5699
    %v5701 = vpop.f32.mrf.mxu0
    %5702 = vdwg.mxu0
    %5703 = vmatpush.bf16.msra.mxu0 %v5253
    %5704 = vmatpush.bf16.msra.mxu0 %v5246
    %5705 = vmatpush.bf16.msra.mxu0 %v5239
    %5706 = vmatpush.bf16.msra.mxu0 %v5232
    %5707 = vmatpush.bf16.msra.mxu0 %v5225
    %5708 = vmatpush.bf16.msra.mxu0 %v5218
    %5709 = vmatpush.bf16.msra.mxu0 %v5211
    %5710 = vmatpush.bf16.msra.mxu0 %v5204
    %5711 = vmatmul.bf16.gmra.mxu0 %v4223
    %v5712 = vpop.f32.mrf.mxu0
    %v5713 = vadd.f32 %v4486, %v5712
    %v5714 = vpop.f32.mrf.mxu0
    %5715 = vdwg.mxu0
    %5716 = vmatpush.bf16.msra.mxu0 %v5309
    %5717 = vmatpush.bf16.msra.mxu0 %v5302
    %5718 = vmatpush.bf16.msra.mxu0 %v5295
    %5719 = vmatpush.bf16.msra.mxu0 %v5288
    %5720 = vmatpush.bf16.msra.mxu0 %v5281
    %5721 = vmatpush.bf16.msra.mxu0 %v5274
    %5722 = vmatpush.bf16.msra.mxu0 %v5267
    %5723 = vmatpush.bf16.msra.mxu0 %v5260
    %5724 = vmatmul.bf16.gmra.mxu0 %v4224
    %v5725 = vpop.f32.mrf.mxu0
    %v5726 = vadd.f32 %v5713, %v5725
    %v5727 = vpop.f32.mrf.mxu0
    %5728 = vdwg.mxu0
    %5729 = vmatpush.bf16.msra.mxu0 %v5365
    %5730 = vmatpush.bf16.msra.mxu0 %v5358
    %5731 = vmatpush.bf16.msra.mxu0 %v5351
    %5732 = vmatpush.bf16.msra.mxu0 %v5344
    %5733 = vmatpush.bf16.msra.mxu0 %v5337
    %5734 = vmatpush.bf16.msra.mxu0 %v5330
    %5735 = vmatpush.bf16.msra.mxu0 %v5323
    %5736 = vmatpush.bf16.msra.mxu0 %v5316
    %5737 = vmatmul.bf16.gmra.mxu0 %v4225
    %v5738 = vpop.f32.mrf.mxu0
    %v5739 = vadd.f32 %v5726, %v5738
    %v5740 = vpop.f32.mrf.mxu0
    %5741 = vdwg.mxu0
    %5742 = vmatpush.bf16.msra.mxu0 %v5421
    %5743 = vmatpush.bf16.msra.mxu0 %v5414
    %5744 = vmatpush.bf16.msra.mxu0 %v5407
    %5745 = vmatpush.bf16.msra.mxu0 %v5400
    %5746 = vmatpush.bf16.msra.mxu0 %v5393
    %5747 = vmatpush.bf16.msra.mxu0 %v5386
    %5748 = vmatpush.bf16.msra.mxu0 %v5379
    %5749 = vmatpush.bf16.msra.mxu0 %v5372
    %5750 = vmatmul.bf16.gmra.mxu0 %v4226
    %v5751 = vpop.f32.mrf.mxu0
    %v5752 = vadd.f32 %v5739, %v5751
    %v5753 = vpop.f32.mrf.mxu0
    %5754 = vdwg.mxu0
    %5755 = vmatpush.bf16.msra.mxu0 %v5254
    %5756 = vmatpush.bf16.msra.mxu0 %v5247
    %5757 = vmatpush.bf16.msra.mxu0 %v5240
    %5758 = vmatpush.bf16.msra.mxu0 %v5233
    %5759 = vmatpush.bf16.msra.mxu0 %v5226
    %5760 = vmatpush.bf16.msra.mxu0 %v5219
    %5761 = vmatpush.bf16.msra.mxu0 %v5212
    %5762 = vmatpush.bf16.msra.mxu0 %v5205
    %5763 = vmatmul.bf16.gmra.mxu0 %v4223
    %v5764 = vpop.f32.mrf.mxu0
    %v5765 = vadd.f32 %v4487, %v5764
    %v5766 = vpop.f32.mrf.mxu0
    %5767 = vdwg.mxu0
    %5768 = vmatpush.bf16.msra.mxu0 %v5310
    %5769 = vmatpush.bf16.msra.mxu0 %v5303
    %5770 = vmatpush.bf16.msra.mxu0 %v5296
    %5771 = vmatpush.bf16.msra.mxu0 %v5289
    %5772 = vmatpush.bf16.msra.mxu0 %v5282
    %5773 = vmatpush.bf16.msra.mxu0 %v5275
    %5774 = vmatpush.bf16.msra.mxu0 %v5268
    %5775 = vmatpush.bf16.msra.mxu0 %v5261
    %5776 = vmatmul.bf16.gmra.mxu0 %v4224
    %v5777 = vpop.f32.mrf.mxu0
    %v5778 = vadd.f32 %v5765, %v5777
    %v5779 = vpop.f32.mrf.mxu0
    %5780 = vdwg.mxu0
    %5781 = vmatpush.bf16.msra.mxu0 %v5366
    %5782 = vmatpush.bf16.msra.mxu0 %v5359
    %5783 = vmatpush.bf16.msra.mxu0 %v5352
    %5784 = vmatpush.bf16.msra.mxu0 %v5345
    %5785 = vmatpush.bf16.msra.mxu0 %v5338
    %5786 = vmatpush.bf16.msra.mxu0 %v5331
    %5787 = vmatpush.bf16.msra.mxu0 %v5324
    %5788 = vmatpush.bf16.msra.mxu0 %v5317
    %5789 = vmatmul.bf16.gmra.mxu0 %v4225
    %v5790 = vpop.f32.mrf.mxu0
    %v5791 = vadd.f32 %v5778, %v5790
    %v5792 = vpop.f32.mrf.mxu0
    %5793 = vdwg.mxu0
    %5794 = vmatpush.bf16.msra.mxu0 %v5422
    %5795 = vmatpush.bf16.msra.mxu0 %v5415
    %5796 = vmatpush.bf16.msra.mxu0 %v5408
    %5797 = vmatpush.bf16.msra.mxu0 %v5401
    %5798 = vmatpush.bf16.msra.mxu0 %v5394
    %5799 = vmatpush.bf16.msra.mxu0 %v5387
    %5800 = vmatpush.bf16.msra.mxu0 %v5380
    %5801 = vmatpush.bf16.msra.mxu0 %v5373
    %5802 = vmatmul.bf16.gmra.mxu0 %v4226
    %v5803 = vpop.f32.mrf.mxu0
    %v5804 = vadd.f32 %v5791, %v5803
    %v5805 = vpop.f32.mrf.mxu0
    %5806 = vdwg.mxu0
    %5807 = vmatpush.bf16.msra.mxu0 %v5255
    %5808 = vmatpush.bf16.msra.mxu0 %v5248
    %5809 = vmatpush.bf16.msra.mxu0 %v5241
    %5810 = vmatpush.bf16.msra.mxu0 %v5234
    %5811 = vmatpush.bf16.msra.mxu0 %v5227
    %5812 = vmatpush.bf16.msra.mxu0 %v5220
    %5813 = vmatpush.bf16.msra.mxu0 %v5213
    %5814 = vmatpush.bf16.msra.mxu0 %v5206
    %5815 = vmatmul.bf16.gmra.mxu0 %v4223
    %v5816 = vpop.f32.mrf.mxu0
    %v5817 = vadd.f32 %v4488, %v5816
    %v5818 = vpop.f32.mrf.mxu0
    %5819 = vdwg.mxu0
    %5820 = vmatpush.bf16.msra.mxu0 %v5311
    %5821 = vmatpush.bf16.msra.mxu0 %v5304
    %5822 = vmatpush.bf16.msra.mxu0 %v5297
    %5823 = vmatpush.bf16.msra.mxu0 %v5290
    %5824 = vmatpush.bf16.msra.mxu0 %v5283
    %5825 = vmatpush.bf16.msra.mxu0 %v5276
    %5826 = vmatpush.bf16.msra.mxu0 %v5269
    %5827 = vmatpush.bf16.msra.mxu0 %v5262
    %5828 = vmatmul.bf16.gmra.mxu0 %v4224
    %v5829 = vpop.f32.mrf.mxu0
    %v5830 = vadd.f32 %v5817, %v5829
    %v5831 = vpop.f32.mrf.mxu0
    %5832 = vdwg.mxu0
    %5833 = vmatpush.bf16.msra.mxu0 %v5367
    %5834 = vmatpush.bf16.msra.mxu0 %v5360
    %5835 = vmatpush.bf16.msra.mxu0 %v5353
    %5836 = vmatpush.bf16.msra.mxu0 %v5346
    %5837 = vmatpush.bf16.msra.mxu0 %v5339
    %5838 = vmatpush.bf16.msra.mxu0 %v5332
    %5839 = vmatpush.bf16.msra.mxu0 %v5325
    %5840 = vmatpush.bf16.msra.mxu0 %v5318
    %5841 = vmatmul.bf16.gmra.mxu0 %v4225
    %v5842 = vpop.f32.mrf.mxu0
    %v5843 = vadd.f32 %v5830, %v5842
    %v5844 = vpop.f32.mrf.mxu0
    %5845 = vdwg.mxu0
    %5846 = vmatpush.bf16.msra.mxu0 %v5423
    %5847 = vmatpush.bf16.msra.mxu0 %v5416
    %5848 = vmatpush.bf16.msra.mxu0 %v5409
    %5849 = vmatpush.bf16.msra.mxu0 %v5402
    %5850 = vmatpush.bf16.msra.mxu0 %v5395
    %5851 = vmatpush.bf16.msra.mxu0 %v5388
    %5852 = vmatpush.bf16.msra.mxu0 %v5381
    %5853 = vmatpush.bf16.msra.mxu0 %v5374
    %5854 = vmatmul.bf16.gmra.mxu0 %v4226
    %v5855 = vpop.f32.mrf.mxu0
    %v5856 = vadd.f32 %v5843, %v5855
    %v5857 = vpop.f32.mrf.mxu0
    %5858 = vdwg.mxu0
    %5859 = vmatpush.bf16.msra.mxu0 %v5256
    %5860 = vmatpush.bf16.msra.mxu0 %v5249
    %5861 = vmatpush.bf16.msra.mxu0 %v5242
    %5862 = vmatpush.bf16.msra.mxu0 %v5235
    %5863 = vmatpush.bf16.msra.mxu0 %v5228
    %5864 = vmatpush.bf16.msra.mxu0 %v5221
    %5865 = vmatpush.bf16.msra.mxu0 %v5214
    %5866 = vmatpush.bf16.msra.mxu0 %v5207
    %5867 = vmatmul.bf16.gmra.mxu0 %v4223
    %v5868 = vpop.f32.mrf.mxu0
    %v5869 = vadd.f32 %v4489, %v5868
    %v5870 = vpop.f32.mrf.mxu0
    %5871 = vdwg.mxu0
    %5872 = vmatpush.bf16.msra.mxu0 %v5312
    %5873 = vmatpush.bf16.msra.mxu0 %v5305
    %5874 = vmatpush.bf16.msra.mxu0 %v5298
    %5875 = vmatpush.bf16.msra.mxu0 %v5291
    %5876 = vmatpush.bf16.msra.mxu0 %v5284
    %5877 = vmatpush.bf16.msra.mxu0 %v5277
    %5878 = vmatpush.bf16.msra.mxu0 %v5270
    %5879 = vmatpush.bf16.msra.mxu0 %v5263
    %5880 = vmatmul.bf16.gmra.mxu0 %v4224
    %v5881 = vpop.f32.mrf.mxu0
    %v5882 = vadd.f32 %v5869, %v5881
    %v5883 = vpop.f32.mrf.mxu0
    %5884 = vdwg.mxu0
    %5885 = vmatpush.bf16.msra.mxu0 %v5368
    %5886 = vmatpush.bf16.msra.mxu0 %v5361
    %5887 = vmatpush.bf16.msra.mxu0 %v5354
    %5888 = vmatpush.bf16.msra.mxu0 %v5347
    %5889 = vmatpush.bf16.msra.mxu0 %v5340
    %5890 = vmatpush.bf16.msra.mxu0 %v5333
    %5891 = vmatpush.bf16.msra.mxu0 %v5326
    %5892 = vmatpush.bf16.msra.mxu0 %v5319
    %5893 = vmatmul.bf16.gmra.mxu0 %v4225
    %v5894 = vpop.f32.mrf.mxu0
    %v5895 = vadd.f32 %v5882, %v5894
    %v5896 = vpop.f32.mrf.mxu0
    %5897 = vdwg.mxu0
    %5898 = vmatpush.bf16.msra.mxu0 %v5424
    %5899 = vmatpush.bf16.msra.mxu0 %v5417
    %5900 = vmatpush.bf16.msra.mxu0 %v5410
    %5901 = vmatpush.bf16.msra.mxu0 %v5403
    %5902 = vmatpush.bf16.msra.mxu0 %v5396
    %5903 = vmatpush.bf16.msra.mxu0 %v5389
    %5904 = vmatpush.bf16.msra.mxu0 %v5382
    %5905 = vmatpush.bf16.msra.mxu0 %v5375
    %5906 = vmatmul.bf16.gmra.mxu0 %v4226
    %v5907 = vpop.f32.mrf.mxu0
    %v5908 = vadd.f32 %v5895, %v5907
    %v5909 = vpop.f32.mrf.mxu0
    %5910 = vdwg.mxu0
    %5911 = vmatpush.bf16.msra.mxu0 %v5257
    %5912 = vmatpush.bf16.msra.mxu0 %v5250
    %5913 = vmatpush.bf16.msra.mxu0 %v5243
    %5914 = vmatpush.bf16.msra.mxu0 %v5236
    %5915 = vmatpush.bf16.msra.mxu0 %v5229
    %5916 = vmatpush.bf16.msra.mxu0 %v5222
    %5917 = vmatpush.bf16.msra.mxu0 %v5215
    %5918 = vmatpush.bf16.msra.mxu0 %v5208
    %5919 = vmatmul.bf16.gmra.mxu0 %v4223
    %v5920 = vpop.f32.mrf.mxu0
    %v5921 = vadd.f32 %v4490, %v5920
    %v5922 = vpop.f32.mrf.mxu0
    %5923 = vdwg.mxu0
    %5924 = vmatpush.bf16.msra.mxu0 %v5313
    %5925 = vmatpush.bf16.msra.mxu0 %v5306
    %5926 = vmatpush.bf16.msra.mxu0 %v5299
    %5927 = vmatpush.bf16.msra.mxu0 %v5292
    %5928 = vmatpush.bf16.msra.mxu0 %v5285
    %5929 = vmatpush.bf16.msra.mxu0 %v5278
    %5930 = vmatpush.bf16.msra.mxu0 %v5271
    %5931 = vmatpush.bf16.msra.mxu0 %v5264
    %5932 = vmatmul.bf16.gmra.mxu0 %v4224
    %v5933 = vpop.f32.mrf.mxu0
    %v5934 = vadd.f32 %v5921, %v5933
    %v5935 = vpop.f32.mrf.mxu0
    %5936 = vdwg.mxu0
    %5937 = vmatpush.bf16.msra.mxu0 %v5369
    %5938 = vmatpush.bf16.msra.mxu0 %v5362
    %5939 = vmatpush.bf16.msra.mxu0 %v5355
    %5940 = vmatpush.bf16.msra.mxu0 %v5348
    %5941 = vmatpush.bf16.msra.mxu0 %v5341
    %5942 = vmatpush.bf16.msra.mxu0 %v5334
    %5943 = vmatpush.bf16.msra.mxu0 %v5327
    %5944 = vmatpush.bf16.msra.mxu0 %v5320
    %5945 = vmatmul.bf16.gmra.mxu0 %v4225
    %v5946 = vpop.f32.mrf.mxu0
    %v5947 = vadd.f32 %v5934, %v5946
    %v5948 = vpop.f32.mrf.mxu0
    %5949 = vdwg.mxu0
    %5950 = vmatpush.bf16.msra.mxu0 %v5425
    %5951 = vmatpush.bf16.msra.mxu0 %v5418
    %5952 = vmatpush.bf16.msra.mxu0 %v5411
    %5953 = vmatpush.bf16.msra.mxu0 %v5404
    %5954 = vmatpush.bf16.msra.mxu0 %v5397
    %5955 = vmatpush.bf16.msra.mxu0 %v5390
    %5956 = vmatpush.bf16.msra.mxu0 %v5383
    %5957 = vmatpush.bf16.msra.mxu0 %v5376
    %5958 = vmatmul.bf16.gmra.mxu0 %v4226
    %v5959 = vpop.f32.mrf.mxu0
    %v5960 = vadd.f32 %v5947, %v5959
    %v5961 = vpop.f32.mrf.mxu0
    %5962 = vdwg.mxu0
    %5963 = vmatpush.bf16.msra.mxu0 %v5258
    %5964 = vmatpush.bf16.msra.mxu0 %v5251
    %5965 = vmatpush.bf16.msra.mxu0 %v5244
    %5966 = vmatpush.bf16.msra.mxu0 %v5237
    %5967 = vmatpush.bf16.msra.mxu0 %v5230
    %5968 = vmatpush.bf16.msra.mxu0 %v5223
    %5969 = vmatpush.bf16.msra.mxu0 %v5216
    %5970 = vmatpush.bf16.msra.mxu0 %v5209
    %5971 = vmatmul.bf16.gmra.mxu0 %v4223
    %v5972 = vpop.f32.mrf.mxu0
    %v5973 = vadd.f32 %v4491, %v5972
    %v5974 = vpop.f32.mrf.mxu0
    %5975 = vdwg.mxu0
    %5976 = vmatpush.bf16.msra.mxu0 %v5314
    %5977 = vmatpush.bf16.msra.mxu0 %v5307
    %5978 = vmatpush.bf16.msra.mxu0 %v5300
    %5979 = vmatpush.bf16.msra.mxu0 %v5293
    %5980 = vmatpush.bf16.msra.mxu0 %v5286
    %5981 = vmatpush.bf16.msra.mxu0 %v5279
    %5982 = vmatpush.bf16.msra.mxu0 %v5272
    %5983 = vmatpush.bf16.msra.mxu0 %v5265
    %5984 = vmatmul.bf16.gmra.mxu0 %v4224
    %v5985 = vpop.f32.mrf.mxu0
    %v5986 = vadd.f32 %v5973, %v5985
    %v5987 = vpop.f32.mrf.mxu0
    %5988 = vdwg.mxu0
    %5989 = vmatpush.bf16.msra.mxu0 %v5370
    %5990 = vmatpush.bf16.msra.mxu0 %v5363
    %5991 = vmatpush.bf16.msra.mxu0 %v5356
    %5992 = vmatpush.bf16.msra.mxu0 %v5349
    %5993 = vmatpush.bf16.msra.mxu0 %v5342
    %5994 = vmatpush.bf16.msra.mxu0 %v5335
    %5995 = vmatpush.bf16.msra.mxu0 %v5328
    %5996 = vmatpush.bf16.msra.mxu0 %v5321
    %5997 = vmatmul.bf16.gmra.mxu0 %v4225
    %v5998 = vpop.f32.mrf.mxu0
    %v5999 = vadd.f32 %v5986, %v5998
    %v6000 = vpop.f32.mrf.mxu0
    %6001 = vdwg.mxu0
    %6002 = vmatpush.bf16.msra.mxu0 %v5426
    %6003 = vmatpush.bf16.msra.mxu0 %v5419
    %6004 = vmatpush.bf16.msra.mxu0 %v5412
    %6005 = vmatpush.bf16.msra.mxu0 %v5405
    %6006 = vmatpush.bf16.msra.mxu0 %v5398
    %6007 = vmatpush.bf16.msra.mxu0 %v5391
    %6008 = vmatpush.bf16.msra.mxu0 %v5384
    %6009 = vmatpush.bf16.msra.mxu0 %v5377
    %6010 = vmatmul.bf16.gmra.mxu0 %v4226
    %v6011 = vpop.f32.mrf.mxu0
    %v6012 = vadd.f32 %v5999, %v6011
    %v6013 = vpop.f32.mrf.mxu0
    %6014 = vdwg.mxu0
    %v6015 = vxor.u32 %v5700, 2147483648
    %v6016 = vxor.u32 %v5752, 2147483648
    %v6017 = vxor.u32 %v5804, 2147483648
    %v6018 = vxor.u32 %v5856, 2147483648
    %v6019 = vxor.u32 %v5908, 2147483648
    %v6020 = vxor.u32 %v5960, 2147483648
    %v6021 = vxor.u32 %v6012, 2147483648
    %v6022 = vmul.f32 %v6015, 1.442695
    %v6023 = vpow.pop %v6022
    %v6024 = vmul.f32 %v6016, 1.442695
    %v6025 = vpow.pop %v6024
    %v6026 = vmul.f32 %v6017, 1.442695
    %v6027 = vpow.pop %v6026
    %v6028 = vmul.f32 %v6018, 1.442695
    %v6029 = vpow.pop %v6028
    %v6030 = vmul.f32 %v6019, 1.442695
    %v6031 = vpow.pop %v6030
    %v6032 = vmul.f32 %v6020, 1.442695
    %v6033 = vpow.pop %v6032
    %v6034 = vmul.f32 %v6021, 1.442695
    %v6035 = vpow.pop %v6034
    %v6036 = vadd.f32 %v6023, 1.0
    %v6037 = vadd.f32 %v6025, 1.0
    %v6038 = vadd.f32 %v6027, 1.0
    %v6039 = vadd.f32 %v6029, 1.0
    %v6040 = vadd.f32 %v6031, 1.0
    %v6041 = vadd.f32 %v6033, 1.0
    %v6042 = vadd.f32 %v6035, 1.0
    %v6043 = vrcp.pop %v6036
    %v6044 = vmul.f32 %v6036, %v6043
    %v6045 = vsub.f32 1.0, %v6044
    %v6046 = vmul.f32 %v6043, %v6045
    %v6047 = vadd.f32 %v6043, %v6046
    %vm6048 = vweird.f32 %v6036
    %vm6049 = vweird.f32 %v6043
    %vm6050 = vmor %vm6048, %vm6049
    %v6051 = vsel %vm6050, %v6043, %v6047
    %v6052 = vand.u32 2147483647, %v6036
    %vm6053 = vcmp.eq.f32.partialorder %v6052, 8.507059e+37
    %v6054 = vand.u32 %v6036, 2147483648
    %v6055 = vor.u32 1.1754944e-38, %v6054
    %v6056 = vsel %vm6053, %v6055, %v6051
    %v6057 = vmul.f32 1.0, %v6056
    %v6058 = vrcp.pop %v6037
    %v6059 = vmul.f32 %v6037, %v6058
    %v6060 = vsub.f32 1.0, %v6059
    %v6061 = vmul.f32 %v6058, %v6060
    %v6062 = vadd.f32 %v6058, %v6061
    %vm6063 = vweird.f32 %v6037
    %vm6064 = vweird.f32 %v6058
    %vm6065 = vmor %vm6063, %vm6064
    %v6066 = vsel %vm6065, %v6058, %v6062
    %v6067 = vand.u32 2147483647, %v6037
    %vm6068 = vcmp.eq.f32.partialorder %v6067, 8.507059e+37
    %v6069 = vand.u32 %v6037, 2147483648
    %v6070 = vor.u32 1.1754944e-38, %v6069
    %v6071 = vsel %vm6068, %v6070, %v6066
    %v6072 = vmul.f32 1.0, %v6071
    %v6073 = vrcp.pop %v6038
    %v6074 = vmul.f32 %v6038, %v6073
    %v6075 = vsub.f32 1.0, %v6074
    %v6076 = vmul.f32 %v6073, %v6075
    %v6077 = vadd.f32 %v6073, %v6076
    %vm6078 = vweird.f32 %v6038
    %vm6079 = vweird.f32 %v6073
    %vm6080 = vmor %vm6078, %vm6079
    %v6081 = vsel %vm6080, %v6073, %v6077
    %v6082 = vand.u32 2147483647, %v6038
    %vm6083 = vcmp.eq.f32.partialorder %v6082, 8.507059e+37
    %v6084 = vand.u32 %v6038, 2147483648
    %v6085 = vor.u32 1.1754944e-38, %v6084
    %v6086 = vsel %vm6083, %v6085, %v6081
    %v6087 = vmul.f32 1.0, %v6086
    %v6088 = vrcp.pop %v6039
    %v6089 = vmul.f32 %v6039, %v6088
    %v6090 = vsub.f32 1.0, %v6089
    %v6091 = vmul.f32 %v6088, %v6090
    %v6092 = vadd.f32 %v6088, %v6091
    %vm6093 = vweird.f32 %v6039
    %vm6094 = vweird.f32 %v6088
    %vm6095 = vmor %vm6093, %vm6094
    %v6096 = vsel %vm6095, %v6088, %v6092
    %v6097 = vand.u32 2147483647, %v6039
    %vm6098 = vcmp.eq.f32.partialorder %v6097, 8.507059e+37
    %v6099 = vand.u32 %v6039, 2147483648
    %v6100 = vor.u32 1.1754944e-38, %v6099
    %v6101 = vsel %vm6098, %v6100, %v6096
    %v6102 = vmul.f32 1.0, %v6101
    %v6103 = vrcp.pop %v6040
    %v6104 = vmul.f32 %v6040, %v6103
    %v6105 = vsub.f32 1.0, %v6104
    %v6106 = vmul.f32 %v6103, %v6105
    %v6107 = vadd.f32 %v6103, %v6106
    %vm6108 = vweird.f32 %v6040
    %vm6109 = vweird.f32 %v6103
    %vm6110 = vmor %vm6108, %vm6109
    %v6111 = vsel %vm6110, %v6103, %v6107
    %v6112 = vand.u32 2147483647, %v6040
    %vm6113 = vcmp.eq.f32.partialorder %v6112, 8.507059e+37
    %v6114 = vand.u32 %v6040, 2147483648
    %v6115 = vor.u32 1.1754944e-38, %v6114
    %v6116 = vsel %vm6113, %v6115, %v6111
    %v6117 = vmul.f32 1.0, %v6116
    %v6118 = vrcp.pop %v6041
    %v6119 = vmul.f32 %v6041, %v6118
    %v6120 = vsub.f32 1.0, %v6119
    %v6121 = vmul.f32 %v6118, %v6120
    %v6122 = vadd.f32 %v6118, %v6121
    %vm6123 = vweird.f32 %v6041
    %vm6124 = vweird.f32 %v6118
    %vm6125 = vmor %vm6123, %vm6124
    %v6126 = vsel %vm6125, %v6118, %v6122
    %v6127 = vand.u32 2147483647, %v6041
    %vm6128 = vcmp.eq.f32.partialorder %v6127, 8.507059e+37
    %v6129 = vand.u32 %v6041, 2147483648
    %v6130 = vor.u32 1.1754944e-38, %v6129
    %v6131 = vsel %vm6128, %v6130, %v6126
    %v6132 = vmul.f32 1.0, %v6131
    %v6133 = vrcp.pop %v6042
    %v6134 = vmul.f32 %v6042, %v6133
    %v6135 = vsub.f32 1.0, %v6134
    %v6136 = vmul.f32 %v6133, %v6135
    %v6137 = vadd.f32 %v6133, %v6136
    %vm6138 = vweird.f32 %v6042
    %vm6139 = vweird.f32 %v6133
    %vm6140 = vmor %vm6138, %vm6139
    %v6141 = vsel %vm6140, %v6133, %v6137
    %v6142 = vand.u32 2147483647, %v6042
    %vm6143 = vcmp.eq.f32.partialorder %v6142, 8.507059e+37
    %v6144 = vand.u32 %v6042, 2147483648
    %v6145 = vor.u32 1.1754944e-38, %v6144
    %v6146 = vsel %vm6143, %v6145, %v6141
    %v6147 = vmul.f32 1.0, %v6146
    %6148 = vst [vmem:[#allocation10] sm:$0xff] %v6057
    %6149 = vst [vmem:[#allocation10 + $0x8] sm:$0xff] %v6072
    %6150 = vst [vmem:[#allocation10 + $0x10] sm:$0xff] %v6087
    %6151 = vst [vmem:[#allocation10 + $0x18] sm:$0xff] %v6102
    %6152 = vst [vmem:[#allocation10 + $0x20] sm:$0xff] %v6117
    %6153 = vst [vmem:[#allocation10 + $0x28] sm:$0xff] %v6132
    %6154 = vst [vmem:[#allocation10 + $0x30] sm:$0xff] %v6147
    %vm6155 = vcmask 31744
    %6156 = vst.msk [vmem:[%s15] sm:$0xff] %vm6155, %v3156
    // Predicated region
    $region74: #{vae_forward.1} parent=1 // pred_check
      _
    $region75: #{vae_forward.1} parent=1 // pred_check_branch
      %6158 = sbr.rel (0) target = $region77
    $region76: #{vae_forward.1} parent=1 // pred_region
      %6160 = vsyncadd [#allocation4], 0
      %s6162 = sshll.u32 [#allocation10], 4
      %s6163 = int_to_ptr.vmem [resolvable:$true] %s6162
      %s6164 = sshll.u32 %s14, 4
      %s6165 = int_to_ptr.hbm [resolvable:$true] %s6164
      %6167 = dma.vmem_to_hbm [thread:$0]  %s6163, 896, %s6165, [#allocation4]
    $region77: #{vae_forward.1} parent=1 // pred_fallthru
      _
    // Predicated region
    $region78: #{vae_forward.1} parent=1 // pred_check
      _
    $region79: #{vae_forward.1} parent=1 // pred_check_branch
      %6169 = sbr.rel (0) target = $region81
    $region80: #{vae_forward.1} parent=1 // pred_region
      _
    $region81: #{vae_forward.1} parent=1 // pred_fallthru
      _
    // Predicated region
    $region82: #{vae_forward.1} parent=1 // pred_check
      _
    $region83: #{vae_forward.1} parent=1 // pred_check_branch
      %6171 = sbr.rel (0) target = $region85
    $region84: #{vae_forward.1} parent=1 // pred_region
      %6173 = dma.done [#allocation4], 896
    $region85: #{vae_forward.1} parent=1 // pred_fallthru
      _
    // Predicated region
    $region86: #{vae_forward.1} parent=1 // pred_check
      _
    $region87: #{vae_forward.1} parent=1 // pred_check_branch
      %6175 = sbr.rel (0) target = $region89
    $region88: #{vae_forward.1} parent=1 // pred_region
      _
    $region89: #{vae_forward.1} parent=1 // pred_fallthru
      _
    %6176 = vsyncpa [#allocation3], 1
    %6177 = vsyncpa [#allocation6], 1
    %6178 = vsyncpa [#allocation9], 1
    %6179 = vsyncpa [#allocation4], 1

</llo_original>
